<compile_context>
chip_gen: v5e
topology: v5e:2x2
jax: 0.10.0
libtpu: 0.0.40
codegen_flags: <defaults>
</compile_context>

<pallas_src>
import functools

import jax
import jax.numpy as jnp
import numpy as np
from jax.experimental import pallas as pl
from jax.experimental.pallas import tpu as pltpu


def _tv3d_kernel(lut_ref, w_ref, out_ref, *, dim, inv_n):
    """lut_ref: (C, D, D*D) VMEM, w_ref: (2, D*D-1) VMEM, out_ref: (1, 2) SMEM."""
    D = dim
    M = D * D
    C = lut_ref.shape[0]

    # Precomputed R-direction weight rows (host constants, column-index only):
    #   w_tv_r: 0 where the merged-column pair crosses a G row (r == D-1),
    #           2 on the r in {0, D-2} boundary, 1 elsewhere.
    #   w_mn_r: validity mask (0 where r == D-1, else 1).
    w_tv_r = w_ref[0]                                 # (M-1,)
    w_mn_r = w_ref[1]                                 # (M-1,)

    tv = jnp.float32(0.0)
    mn = jnp.float32(0.0)

    for c in range(C):                                # static, unrolled (C == 3)
        x = lut_ref[c]                                # (D, M) f32, one channel

        # ---- R direction: adjacent merged columns --------------------------
        dr = x[:, : M - 1] - x[:, 1:]                 # (D, M-1)
        tv += jnp.sum(dr * dr * w_tv_r)
        mn += jnp.sum(jnp.maximum(dr, 0.0) * w_mn_r)

        # ---- G direction: columns offset by D (all pairs valid) ------------
        # boundary weight 2 on g in {0, D-2}  ==  extra edge-slab contribution
        dg = x[:, : M - D] - x[:, D:]                 # (D, M-D)
        dg2 = dg * dg
        tv += jnp.sum(dg2) + jnp.sum(dg2[:, :D]) + jnp.sum(dg2[:, M - 2 * D:])
        mn += jnp.sum(jnp.maximum(dg, 0.0))

        # ---- B direction: rows offset by 1 (all pairs valid) ---------------
        # boundary weight 2 on b in {0, D-2}  ==  first / last diff-row slabs
        db = x[: D - 1, :] - x[1:, :]                 # (D-1, M)
        db2 = db * db
        tv += jnp.sum(db2) + jnp.sum(db2[:1, :]) + jnp.sum(db2[D - 2: D - 1, :])
        mn += jnp.sum(jnp.maximum(db, 0.0))

    out_ref[0, 0] = tv * inv_n
    out_ref[0, 1] = mn * inv_n


def tv_3d(lut):
    """Returns (tv, mn) scalars, matching TV_3D.forward(LUT).

    lut: (3, dim, dim, dim) float32 — the LUT.LUT tensor of the PyTorch module.
    """
    C, D = lut.shape[0], lut.shape[1]
    M = D * D
    # All three diff tensors have the same element count C*D*D*(D-1), so one
    # shared mean divisor is exact.
    inv_n = 1.0 / float(C * D * D * (D - 1))
    lut2 = lut.reshape(C, D, M)                       # free: merges minor dims

    # R-direction weight rows, precomputed on host (D is static at trace time).
    r_of = np.arange(M - 1) % D
    valid = (r_of != D - 1).astype(np.float32)        # pair crosses a G row -> 0
    w_tv = np.where((r_of == 0) | (r_of == D - 2), 2.0, 1.0).astype(np.float32) * valid
    w_rows = jnp.asarray(np.stack([w_tv, valid]), dtype=jnp.float32)   # (2, M-1)

    bytes_accessed = C * D * M * 4 + 2 * (M - 1) * 4 + 8
    flops = 3 * 4 * C * D * (D - 1) * D               # ~4 VALU ops/elem/direction

    out = pl.pallas_call(
        functools.partial(_tv3d_kernel, dim=D, inv_n=inv_n),
        out_shape=jax.ShapeDtypeStruct((1, 2), jnp.float32),
        grid=(1,),
        in_specs=[pl.BlockSpec((C, D, M), lambda i: (0, 0, 0)),
                  pl.BlockSpec((2, M - 1), lambda i: (0, 0))],
        out_specs=pl.BlockSpec((1, 2), lambda i: (0, 0), memory_space=pltpu.SMEM),
        compiler_params=pltpu.CompilerParams(dimension_semantics=("arbitrary",)),
        cost_estimate=pl.CostEstimate(flops=flops, transcendentals=0,
                                      bytes_accessed=bytes_accessed),
    )(lut2, w_rows)
    return out[0, 0], out[0, 1]


# ---------------------------------------------------------------------------
# Reference (explicit PyTorch-style weight tensors), used only for validation.
# ---------------------------------------------------------------------------
def make_tv3d_weights(dim=33, dtype=jnp.float32):
    wr = np.ones((3, dim, dim, dim - 1), dtype=np.float32)
    wr[:, :, :, (0, dim - 2)] *= 2.0
    wg = np.ones((3, dim, dim - 1, dim), dtype=np.float32)
    wg[:, :, (0, dim - 2), :] *= 2.0
    wb = np.ones((3, dim - 1, dim, dim), dtype=np.float32)
    wb[:, (0, dim - 2), :, :] *= 2.0
    return (jnp.asarray(wr, dtype), jnp.asarray(wg, dtype), jnp.asarray(wb, dtype))


def tv_3d_ref(lut, wr, wg, wb):
    dif_r = lut[:, :, :, :-1] - lut[:, :, :, 1:]
    dif_g = lut[:, :, :-1, :] - lut[:, :, 1:, :]
    dif_b = lut[:, :-1, :, :] - lut[:, 1:, :, :]
    tv = (jnp.mean(dif_r ** 2 * wr) + jnp.mean(dif_g ** 2 * wg)
          + jnp.mean(dif_b ** 2 * wb))
    mn = (jnp.mean(jax.nn.relu(dif_r)) + jnp.mean(jax.nn.relu(dif_g))
          + jnp.mean(jax.nn.relu(dif_b)))
    return tv, mn


if __name__ == "__main__":
    dim = 33
    key = jax.random.PRNGKey(0)
    lut = jax.random.normal(key, (3, dim, dim, dim), dtype=jnp.float32)

    tv, mn = jax.jit(tv_3d)(lut)
    jax.block_until_ready((tv, mn))

    wr, wg, wb = make_tv3d_weights(dim)
    tv_r, mn_r = tv_3d_ref(lut, wr, wg, wb)
    np.testing.assert_allclose(np.asarray(tv), np.asarray(tv_r), rtol=2e-4, atol=1e-5)
    np.testing.assert_allclose(np.asarray(mn), np.asarray(mn_r), rtol=2e-4, atol=1e-5)

    print("KERNEL_OK")
</pallas_src>

<mosaic_0001>
module attributes {stable_mosaic.version = 11 : i64} {
  func.func @_tv3d_kernel(%arg0: i32, %arg1: memref<3x33x1089xf32, #tpu.memory_space<vmem>>, %arg2: memref<2x1088xf32, #tpu.memory_space<vmem>>, %arg3: memref<1x2xf32, #tpu.memory_space<smem>>) attributes {dimension_semantics = [#tpu.dimension_semantics<arbitrary>], iteration_bounds = array<i64: 1>, scalar_prefetch = 0 : i64, scratch_operands = 0 : i64, tpu.core_type = #tpu.core_type<tc>, window_params = [{pipeline_mode = #tpu.pipeline_mode<synchronous>, transform_indices = @transform_0, window_bounds = array<i64: 3, 33, 1089>}, {pipeline_mode = #tpu.pipeline_mode<synchronous>, transform_indices = @transform_1, window_bounds = array<i64: 2, 1088>}, {transform_indices = @transform_2, window_bounds = array<i64: 1, 2>}]} {
    %c0 = arith.constant 0 : index
    %c0_0 = arith.constant 0 : index
    %0 = vector.load %arg2[%c0, %c0_0] : memref<2x1088xf32, #tpu.memory_space<vmem>>, vector<1x1088xf32>
    %1 = vector.shape_cast %0 : vector<1x1088xf32> to vector<1088xf32>
    %c1 = arith.constant 1 : index
    %c0_1 = arith.constant 0 : index
    %2 = vector.load %arg2[%c1, %c0_1] : memref<2x1088xf32, #tpu.memory_space<vmem>>, vector<1x1088xf32>
    %3 = vector.shape_cast %2 : vector<1x1088xf32> to vector<1088xf32>
    %c0_2 = arith.constant 0 : index
    %c0_3 = arith.constant 0 : index
    %c0_4 = arith.constant 0 : index
    %4 = vector.load %arg1[%c0_2, %c0_3, %c0_4] : memref<3x33x1089xf32, #tpu.memory_space<vmem>>, vector<1x33x1089xf32>
    %5 = vector.shape_cast %4 : vector<1x33x1089xf32> to vector<33x1089xf32>
    %6 = vector.extract_strided_slice %5 {offsets = [0, 0], sizes = [33, 1088], strides = [1, 1]} : vector<33x1089xf32> to vector<33x1088xf32>
    %7 = vector.extract_strided_slice %5 {offsets = [0, 1], sizes = [33, 1088], strides = [1, 1]} : vector<33x1089xf32> to vector<33x1088xf32>
    %8 = arith.subf %6, %7 : vector<33x1088xf32>
    %9 = arith.mulf %8, %8 : vector<33x1088xf32>
    %10 = vector.shape_cast %1 : vector<1088xf32> to vector<1x1088xf32>
    %11 = vector.broadcast %10 : vector<1x1088xf32> to vector<33x1088xf32>
    %12 = arith.mulf %9, %11 : vector<33x1088xf32>
    %13 = vector.shape_cast %12 : vector<33x1088xf32> to vector<1x33x1088xf32>
    %cst = arith.constant dense<0.000000e+00> : vector<1xf32>
    %14 = vector.multi_reduction <add>, %13, %cst [1, 2] : vector<1x33x1088xf32> to vector<1xf32>
    %15 = vector.shape_cast %14 : vector<1xf32> to vector<1x1x1xf32>
    %16 = vector.extract %15[0, 0, 0] : f32 from vector<1x1x1xf32>
    %cst_5 = arith.constant 0.000000e+00 : f32
    %17 = arith.addf %cst_5, %16 : f32
    %cst_6 = arith.constant 0.000000e+00 : f32
    %18 = vector.broadcast %cst_6 : f32 to vector<33x1088xf32>
    %19 = arith.maximumf %8, %18 : vector<33x1088xf32>
    %20 = vector.shape_cast %3 : vector<1088xf32> to vector<1x1088xf32>
    %21 = vector.broadcast %20 : vector<1x1088xf32> to vector<33x1088xf32>
    %22 = arith.mulf %19, %21 : vector<33x1088xf32>
    %23 = vector.shape_cast %22 : vector<33x1088xf32> to vector<1x33x1088xf32>
    %cst_7 = arith.constant dense<0.000000e+00> : vector<1xf32>
    %24 = vector.multi_reduction <add>, %23, %cst_7 [1, 2] : vector<1x33x1088xf32> to vector<1xf32>
    %25 = vector.shape_cast %24 : vector<1xf32> to vector<1x1x1xf32>
    %26 = vector.extract %25[0, 0, 0] : f32 from vector<1x1x1xf32>
    %cst_8 = arith.constant 0.000000e+00 : f32
    %27 = arith.addf %cst_8, %26 : f32
    %28 = vector.extract_strided_slice %5 {offsets = [0, 0], sizes = [33, 1056], strides = [1, 1]} : vector<33x1089xf32> to vector<33x1056xf32>
    %29 = vector.extract_strided_slice %5 {offsets = [0, 33], sizes = [33, 1056], strides = [1, 1]} : vector<33x1089xf32> to vector<33x1056xf32>
    %30 = arith.subf %28, %29 : vector<33x1056xf32>
    %31 = arith.mulf %30, %30 : vector<33x1056xf32>
    %32 = vector.shape_cast %31 : vector<33x1056xf32> to vector<1x33x1056xf32>
    %cst_9 = arith.constant dense<0.000000e+00> : vector<1xf32>
    %33 = vector.multi_reduction <add>, %32, %cst_9 [1, 2] : vector<1x33x1056xf32> to vector<1xf32>
    %34 = vector.shape_cast %33 : vector<1xf32> to vector<1x1x1xf32>
    %35 = vector.extract %34[0, 0, 0] : f32 from vector<1x1x1xf32>
    %36 = vector.extract_strided_slice %31 {offsets = [0, 0], sizes = [33, 33], strides = [1, 1]} : vector<33x1056xf32> to vector<33x33xf32>
    %37 = vector.shape_cast %36 : vector<33x33xf32> to vector<1x33x33xf32>
    %cst_10 = arith.constant dense<0.000000e+00> : vector<1xf32>
    %38 = vector.multi_reduction <add>, %37, %cst_10 [1, 2] : vector<1x33x33xf32> to vector<1xf32>
    %39 = vector.shape_cast %38 : vector<1xf32> to vector<1x1x1xf32>
    %40 = vector.extract %39[0, 0, 0] : f32 from vector<1x1x1xf32>
    %41 = arith.addf %35, %40 : f32
    %42 = vector.extract_strided_slice %31 {offsets = [0, 1023], sizes = [33, 33], strides = [1, 1]} : vector<33x1056xf32> to vector<33x33xf32>
    %43 = vector.shape_cast %42 : vector<33x33xf32> to vector<1x33x33xf32>
    %cst_11 = arith.constant dense<0.000000e+00> : vector<1xf32>
    %44 = vector.multi_reduction <add>, %43, %cst_11 [1, 2] : vector<1x33x33xf32> to vector<1xf32>
    %45 = vector.shape_cast %44 : vector<1xf32> to vector<1x1x1xf32>
    %46 = vector.extract %45[0, 0, 0] : f32 from vector<1x1x1xf32>
    %47 = arith.addf %41, %46 : f32
    %48 = arith.addf %17, %47 : f32
    %cst_12 = arith.constant 0.000000e+00 : f32
    %49 = vector.broadcast %cst_12 : f32 to vector<33x1056xf32>
    %50 = arith.maximumf %30, %49 : vector<33x1056xf32>
    %51 = vector.shape_cast %50 : vector<33x1056xf32> to vector<1x33x1056xf32>
    %cst_13 = arith.constant dense<0.000000e+00> : vector<1xf32>
    %52 = vector.multi_reduction <add>, %51, %cst_13 [1, 2] : vector<1x33x1056xf32> to vector<1xf32>
    %53 = vector.shape_cast %52 : vector<1xf32> to vector<1x1x1xf32>
    %54 = vector.extract %53[0, 0, 0] : f32 from vector<1x1x1xf32>
    %55 = arith.addf %27, %54 : f32
    %56 = vector.extract_strided_slice %5 {offsets = [0, 0], sizes = [32, 1089], strides = [1, 1]} : vector<33x1089xf32> to vector<32x1089xf32>
    %57 = vector.extract_strided_slice %5 {offsets = [1, 0], sizes = [32, 1089], strides = [1, 1]} : vector<33x1089xf32> to vector<32x1089xf32>
    %58 = arith.subf %56, %57 : vector<32x1089xf32>
    %59 = arith.mulf %58, %58 : vector<32x1089xf32>
    %60 = vector.shape_cast %59 : vector<32x1089xf32> to vector<1x32x1089xf32>
    %cst_14 = arith.constant dense<0.000000e+00> : vector<1xf32>
    %61 = vector.multi_reduction <add>, %60, %cst_14 [1, 2] : vector<1x32x1089xf32> to vector<1xf32>
    %62 = vector.shape_cast %61 : vector<1xf32> to vector<1x1x1xf32>
    %63 = vector.extract %62[0, 0, 0] : f32 from vector<1x1x1xf32>
    %64 = vector.extract_strided_slice %59 {offsets = [0, 0], sizes = [1, 1089], strides = [1, 1]} : vector<32x1089xf32> to vector<1x1089xf32>
    %65 = vector.shape_cast %64 : vector<1x1089xf32> to vector<1x1x1089xf32>
    %cst_15 = arith.constant dense<0.000000e+00> : vector<1xf32>
    %66 = vector.multi_reduction <add>, %65, %cst_15 [1, 2] : vector<1x1x1089xf32> to vector<1xf32>
    %67 = vector.shape_cast %66 : vector<1xf32> to vector<1x1x1xf32>
    %68 = vector.extract %67[0, 0, 0] : f32 from vector<1x1x1xf32>
    %69 = arith.addf %63, %68 : f32
    %70 = vector.extract_strided_slice %59 {offsets = [31, 0], sizes = [1, 1089], strides = [1, 1]} : vector<32x1089xf32> to vector<1x1089xf32>
    %71 = vector.shape_cast %70 : vector<1x1089xf32> to vector<1x1x1089xf32>
    %cst_16 = arith.constant dense<0.000000e+00> : vector<1xf32>
    %72 = vector.multi_reduction <add>, %71, %cst_16 [1, 2] : vector<1x1x1089xf32> to vector<1xf32>
    %73 = vector.shape_cast %72 : vector<1xf32> to vector<1x1x1xf32>
    %74 = vector.extract %73[0, 0, 0] : f32 from vector<1x1x1xf32>
    %75 = arith.addf %69, %74 : f32
    %76 = arith.addf %48, %75 : f32
    %cst_17 = arith.constant 0.000000e+00 : f32
    %77 = vector.broadcast %cst_17 : f32 to vector<32x1089xf32>
    %78 = arith.maximumf %58, %77 : vector<32x1089xf32>
    %79 = vector.shape_cast %78 : vector<32x1089xf32> to vector<1x32x1089xf32>
    %cst_18 = arith.constant dense<0.000000e+00> : vector<1xf32>
    %80 = vector.multi_reduction <add>, %79, %cst_18 [1, 2] : vector<1x32x1089xf32> to vector<1xf32>
    %81 = vector.shape_cast %80 : vector<1xf32> to vector<1x1x1xf32>
    %82 = vector.extract %81[0, 0, 0] : f32 from vector<1x1x1xf32>
    %83 = arith.addf %55, %82 : f32
    %c1_19 = arith.constant 1 : index
    %c0_20 = arith.constant 0 : index
    %c0_21 = arith.constant 0 : index
    %84 = vector.load %arg1[%c1_19, %c0_20, %c0_21] : memref<3x33x1089xf32, #tpu.memory_space<vmem>>, vector<1x33x1089xf32>
    %85 = vector.shape_cast %84 : vector<1x33x1089xf32> to vector<33x1089xf32>
    %86 = vector.extract_strided_slice %85 {offsets = [0, 0], sizes = [33, 1088], strides = [1, 1]} : vector<33x1089xf32> to vector<33x1088xf32>
    %87 = vector.extract_strided_slice %85 {offsets = [0, 1], sizes = [33, 1088], strides = [1, 1]} : vector<33x1089xf32> to vector<33x1088xf32>
    %88 = arith.subf %86, %87 : vector<33x1088xf32>
    %89 = arith.mulf %88, %88 : vector<33x1088xf32>
    %90 = vector.shape_cast %1 : vector<1088xf32> to vector<1x1088xf32>
    %91 = vector.broadcast %90 : vector<1x1088xf32> to vector<33x1088xf32>
    %92 = arith.mulf %89, %91 : vector<33x1088xf32>
    %93 = vector.shape_cast %92 : vector<33x1088xf32> to vector<1x33x1088xf32>
    %cst_22 = arith.constant dense<0.000000e+00> : vector<1xf32>
    %94 = vector.multi_reduction <add>, %93, %cst_22 [1, 2] : vector<1x33x1088xf32> to vector<1xf32>
    %95 = vector.shape_cast %94 : vector<1xf32> to vector<1x1x1xf32>
    %96 = vector.extract %95[0, 0, 0] : f32 from vector<1x1x1xf32>
    %97 = arith.addf %76, %96 : f32
    %cst_23 = arith.constant 0.000000e+00 : f32
    %98 = vector.broadcast %cst_23 : f32 to vector<33x1088xf32>
    %99 = arith.maximumf %88, %98 : vector<33x1088xf32>
    %100 = vector.shape_cast %3 : vector<1088xf32> to vector<1x1088xf32>
    %101 = vector.broadcast %100 : vector<1x1088xf32> to vector<33x1088xf32>
    %102 = arith.mulf %99, %101 : vector<33x1088xf32>
    %103 = vector.shape_cast %102 : vector<33x1088xf32> to vector<1x33x1088xf32>
    %cst_24 = arith.constant dense<0.000000e+00> : vector<1xf32>
    %104 = vector.multi_reduction <add>, %103, %cst_24 [1, 2] : vector<1x33x1088xf32> to vector<1xf32>
    %105 = vector.shape_cast %104 : vector<1xf32> to vector<1x1x1xf32>
    %106 = vector.extract %105[0, 0, 0] : f32 from vector<1x1x1xf32>
    %107 = arith.addf %83, %106 : f32
    %108 = vector.extract_strided_slice %85 {offsets = [0, 0], sizes = [33, 1056], strides = [1, 1]} : vector<33x1089xf32> to vector<33x1056xf32>
    %109 = vector.extract_strided_slice %85 {offsets = [0, 33], sizes = [33, 1056], strides = [1, 1]} : vector<33x1089xf32> to vector<33x1056xf32>
    %110 = arith.subf %108, %109 : vector<33x1056xf32>
    %111 = arith.mulf %110, %110 : vector<33x1056xf32>
    %112 = vector.shape_cast %111 : vector<33x1056xf32> to vector<1x33x1056xf32>
    %cst_25 = arith.constant dense<0.000000e+00> : vector<1xf32>
    %113 = vector.multi_reduction <add>, %112, %cst_25 [1, 2] : vector<1x33x1056xf32> to vector<1xf32>
    %114 = vector.shape_cast %113 : vector<1xf32> to vector<1x1x1xf32>
    %115 = vector.extract %114[0, 0, 0] : f32 from vector<1x1x1xf32>
    %116 = vector.extract_strided_slice %111 {offsets = [0, 0], sizes = [33, 33], strides = [1, 1]} : vector<33x1056xf32> to vector<33x33xf32>
    %117 = vector.shape_cast %116 : vector<33x33xf32> to vector<1x33x33xf32>
    %cst_26 = arith.constant dense<0.000000e+00> : vector<1xf32>
    %118 = vector.multi_reduction <add>, %117, %cst_26 [1, 2] : vector<1x33x33xf32> to vector<1xf32>
    %119 = vector.shape_cast %118 : vector<1xf32> to vector<1x1x1xf32>
    %120 = vector.extract %119[0, 0, 0] : f32 from vector<1x1x1xf32>
    %121 = arith.addf %115, %120 : f32
    %122 = vector.extract_strided_slice %111 {offsets = [0, 1023], sizes = [33, 33], strides = [1, 1]} : vector<33x1056xf32> to vector<33x33xf32>
    %123 = vector.shape_cast %122 : vector<33x33xf32> to vector<1x33x33xf32>
    %cst_27 = arith.constant dense<0.000000e+00> : vector<1xf32>
    %124 = vector.multi_reduction <add>, %123, %cst_27 [1, 2] : vector<1x33x33xf32> to vector<1xf32>
    %125 = vector.shape_cast %124 : vector<1xf32> to vector<1x1x1xf32>
    %126 = vector.extract %125[0, 0, 0] : f32 from vector<1x1x1xf32>
    %127 = arith.addf %121, %126 : f32
    %128 = arith.addf %97, %127 : f32
    %cst_28 = arith.constant 0.000000e+00 : f32
    %129 = vector.broadcast %cst_28 : f32 to vector<33x1056xf32>
    %130 = arith.maximumf %110, %129 : vector<33x1056xf32>
    %131 = vector.shape_cast %130 : vector<33x1056xf32> to vector<1x33x1056xf32>
    %cst_29 = arith.constant dense<0.000000e+00> : vector<1xf32>
    %132 = vector.multi_reduction <add>, %131, %cst_29 [1, 2] : vector<1x33x1056xf32> to vector<1xf32>
    %133 = vector.shape_cast %132 : vector<1xf32> to vector<1x1x1xf32>
    %134 = vector.extract %133[0, 0, 0] : f32 from vector<1x1x1xf32>
    %135 = arith.addf %107, %134 : f32
    %136 = vector.extract_strided_slice %85 {offsets = [0, 0], sizes = [32, 1089], strides = [1, 1]} : vector<33x1089xf32> to vector<32x1089xf32>
    %137 = vector.extract_strided_slice %85 {offsets = [1, 0], sizes = [32, 1089], strides = [1, 1]} : vector<33x1089xf32> to vector<32x1089xf32>
    %138 = arith.subf %136, %137 : vector<32x1089xf32>
    %139 = arith.mulf %138, %138 : vector<32x1089xf32>
    %140 = vector.shape_cast %139 : vector<32x1089xf32> to vector<1x32x1089xf32>
    %cst_30 = arith.constant dense<0.000000e+00> : vector<1xf32>
    %141 = vector.multi_reduction <add>, %140, %cst_30 [1, 2] : vector<1x32x1089xf32> to vector<1xf32>
    %142 = vector.shape_cast %141 : vector<1xf32> to vector<1x1x1xf32>
    %143 = vector.extract %142[0, 0, 0] : f32 from vector<1x1x1xf32>
    %144 = vector.extract_strided_slice %139 {offsets = [0, 0], sizes = [1, 1089], strides = [1, 1]} : vector<32x1089xf32> to vector<1x1089xf32>
    %145 = vector.shape_cast %144 : vector<1x1089xf32> to vector<1x1x1089xf32>
    %cst_31 = arith.constant dense<0.000000e+00> : vector<1xf32>
    %146 = vector.multi_reduction <add>, %145, %cst_31 [1, 2] : vector<1x1x1089xf32> to vector<1xf32>
    %147 = vector.shape_cast %146 : vector<1xf32> to vector<1x1x1xf32>
    %148 = vector.extract %147[0, 0, 0] : f32 from vector<1x1x1xf32>
    %149 = arith.addf %143, %148 : f32
    %150 = vector.extract_strided_slice %139 {offsets = [31, 0], sizes = [1, 1089], strides = [1, 1]} : vector<32x1089xf32> to vector<1x1089xf32>
    %151 = vector.shape_cast %150 : vector<1x1089xf32> to vector<1x1x1089xf32>
    %cst_32 = arith.constant dense<0.000000e+00> : vector<1xf32>
    %152 = vector.multi_reduction <add>, %151, %cst_32 [1, 2] : vector<1x1x1089xf32> to vector<1xf32>
    %153 = vector.shape_cast %152 : vector<1xf32> to vector<1x1x1xf32>
    %154 = vector.extract %153[0, 0, 0] : f32 from vector<1x1x1xf32>
    %155 = arith.addf %149, %154 : f32
    %156 = arith.addf %128, %155 : f32
    %cst_33 = arith.constant 0.000000e+00 : f32
    %157 = vector.broadcast %cst_33 : f32 to vector<32x1089xf32>
    %158 = arith.maximumf %138, %157 : vector<32x1089xf32>
    %159 = vector.shape_cast %158 : vector<32x1089xf32> to vector<1x32x1089xf32>
    %cst_34 = arith.constant dense<0.000000e+00> : vector<1xf32>
    %160 = vector.multi_reduction <add>, %159, %cst_34 [1, 2] : vector<1x32x1089xf32> to vector<1xf32>
    %161 = vector.shape_cast %160 : vector<1xf32> to vector<1x1x1xf32>
    %162 = vector.extract %161[0, 0, 0] : f32 from vector<1x1x1xf32>
    %163 = arith.addf %135, %162 : f32
    %c2 = arith.constant 2 : index
    %c0_35 = arith.constant 0 : index
    %c0_36 = arith.constant 0 : index
    %164 = vector.load %arg1[%c2, %c0_35, %c0_36] : memref<3x33x1089xf32, #tpu.memory_space<vmem>>, vector<1x33x1089xf32>
    %165 = vector.shape_cast %164 : vector<1x33x1089xf32> to vector<33x1089xf32>
    %166 = vector.extract_strided_slice %165 {offsets = [0, 0], sizes = [33, 1088], strides = [1, 1]} : vector<33x1089xf32> to vector<33x1088xf32>
    %167 = vector.extract_strided_slice %165 {offsets = [0, 1], sizes = [33, 1088], strides = [1, 1]} : vector<33x1089xf32> to vector<33x1088xf32>
    %168 = arith.subf %166, %167 : vector<33x1088xf32>
    %169 = arith.mulf %168, %168 : vector<33x1088xf32>
    %170 = vector.shape_cast %1 : vector<1088xf32> to vector<1x1088xf32>
    %171 = vector.broadcast %170 : vector<1x1088xf32> to vector<33x1088xf32>
    %172 = arith.mulf %169, %171 : vector<33x1088xf32>
    %173 = vector.shape_cast %172 : vector<33x1088xf32> to vector<1x33x1088xf32>
    %cst_37 = arith.constant dense<0.000000e+00> : vector<1xf32>
    %174 = vector.multi_reduction <add>, %173, %cst_37 [1, 2] : vector<1x33x1088xf32> to vector<1xf32>
    %175 = vector.shape_cast %174 : vector<1xf32> to vector<1x1x1xf32>
    %176 = vector.extract %175[0, 0, 0] : f32 from vector<1x1x1xf32>
    %177 = arith.addf %156, %176 : f32
    %cst_38 = arith.constant 0.000000e+00 : f32
    %178 = vector.broadcast %cst_38 : f32 to vector<33x1088xf32>
    %179 = arith.maximumf %168, %178 : vector<33x1088xf32>
    %180 = vector.shape_cast %3 : vector<1088xf32> to vector<1x1088xf32>
    %181 = vector.broadcast %180 : vector<1x1088xf32> to vector<33x1088xf32>
    %182 = arith.mulf %179, %181 : vector<33x1088xf32>
    %183 = vector.shape_cast %182 : vector<33x1088xf32> to vector<1x33x1088xf32>
    %cst_39 = arith.constant dense<0.000000e+00> : vector<1xf32>
    %184 = vector.multi_reduction <add>, %183, %cst_39 [1, 2] : vector<1x33x1088xf32> to vector<1xf32>
    %185 = vector.shape_cast %184 : vector<1xf32> to vector<1x1x1xf32>
    %186 = vector.extract %185[0, 0, 0] : f32 from vector<1x1x1xf32>
    %187 = arith.addf %163, %186 : f32
    %188 = vector.extract_strided_slice %165 {offsets = [0, 0], sizes = [33, 1056], strides = [1, 1]} : vector<33x1089xf32> to vector<33x1056xf32>
    %189 = vector.extract_strided_slice %165 {offsets = [0, 33], sizes = [33, 1056], strides = [1, 1]} : vector<33x1089xf32> to vector<33x1056xf32>
    %190 = arith.subf %188, %189 : vector<33x1056xf32>
    %191 = arith.mulf %190, %190 : vector<33x1056xf32>
    %192 = vector.shape_cast %191 : vector<33x1056xf32> to vector<1x33x1056xf32>
    %cst_40 = arith.constant dense<0.000000e+00> : vector<1xf32>
    %193 = vector.multi_reduction <add>, %192, %cst_40 [1, 2] : vector<1x33x1056xf32> to vector<1xf32>
    %194 = vector.shape_cast %193 : vector<1xf32> to vector<1x1x1xf32>
    %195 = vector.extract %194[0, 0, 0] : f32 from vector<1x1x1xf32>
    %196 = vector.extract_strided_slice %191 {offsets = [0, 0], sizes = [33, 33], strides = [1, 1]} : vector<33x1056xf32> to vector<33x33xf32>
    %197 = vector.shape_cast %196 : vector<33x33xf32> to vector<1x33x33xf32>
    %cst_41 = arith.constant dense<0.000000e+00> : vector<1xf32>
    %198 = vector.multi_reduction <add>, %197, %cst_41 [1, 2] : vector<1x33x33xf32> to vector<1xf32>
    %199 = vector.shape_cast %198 : vector<1xf32> to vector<1x1x1xf32>
    %200 = vector.extract %199[0, 0, 0] : f32 from vector<1x1x1xf32>
    %201 = arith.addf %195, %200 : f32
    %202 = vector.extract_strided_slice %191 {offsets = [0, 1023], sizes = [33, 33], strides = [1, 1]} : vector<33x1056xf32> to vector<33x33xf32>
    %203 = vector.shape_cast %202 : vector<33x33xf32> to vector<1x33x33xf32>
    %cst_42 = arith.constant dense<0.000000e+00> : vector<1xf32>
    %204 = vector.multi_reduction <add>, %203, %cst_42 [1, 2] : vector<1x33x33xf32> to vector<1xf32>
    %205 = vector.shape_cast %204 : vector<1xf32> to vector<1x1x1xf32>
    %206 = vector.extract %205[0, 0, 0] : f32 from vector<1x1x1xf32>
    %207 = arith.addf %201, %206 : f32
    %208 = arith.addf %177, %207 : f32
    %cst_43 = arith.constant 0.000000e+00 : f32
    %209 = vector.broadcast %cst_43 : f32 to vector<33x1056xf32>
    %210 = arith.maximumf %190, %209 : vector<33x1056xf32>
    %211 = vector.shape_cast %210 : vector<33x1056xf32> to vector<1x33x1056xf32>
    %cst_44 = arith.constant dense<0.000000e+00> : vector<1xf32>
    %212 = vector.multi_reduction <add>, %211, %cst_44 [1, 2] : vector<1x33x1056xf32> to vector<1xf32>
    %213 = vector.shape_cast %212 : vector<1xf32> to vector<1x1x1xf32>
    %214 = vector.extract %213[0, 0, 0] : f32 from vector<1x1x1xf32>
    %215 = arith.addf %187, %214 : f32
    %216 = vector.extract_strided_slice %165 {offsets = [0, 0], sizes = [32, 1089], strides = [1, 1]} : vector<33x1089xf32> to vector<32x1089xf32>
    %217 = vector.extract_strided_slice %165 {offsets = [1, 0], sizes = [32, 1089], strides = [1, 1]} : vector<33x1089xf32> to vector<32x1089xf32>
    %218 = arith.subf %216, %217 : vector<32x1089xf32>
    %219 = arith.mulf %218, %218 : vector<32x1089xf32>
    %220 = vector.shape_cast %219 : vector<32x1089xf32> to vector<1x32x1089xf32>
    %cst_45 = arith.constant dense<0.000000e+00> : vector<1xf32>
    %221 = vector.multi_reduction <add>, %220, %cst_45 [1, 2] : vector<1x32x1089xf32> to vector<1xf32>
    %222 = vector.shape_cast %221 : vector<1xf32> to vector<1x1x1xf32>
    %223 = vector.extract %222[0, 0, 0] : f32 from vector<1x1x1xf32>
    %224 = vector.extract_strided_slice %219 {offsets = [0, 0], sizes = [1, 1089], strides = [1, 1]} : vector<32x1089xf32> to vector<1x1089xf32>
    %225 = vector.shape_cast %224 : vector<1x1089xf32> to vector<1x1x1089xf32>
    %cst_46 = arith.constant dense<0.000000e+00> : vector<1xf32>
    %226 = vector.multi_reduction <add>, %225, %cst_46 [1, 2] : vector<1x1x1089xf32> to vector<1xf32>
    %227 = vector.shape_cast %226 : vector<1xf32> to vector<1x1x1xf32>
    %228 = vector.extract %227[0, 0, 0] : f32 from vector<1x1x1xf32>
    %229 = arith.addf %223, %228 : f32
    %230 = vector.extract_strided_slice %219 {offsets = [31, 0], sizes = [1, 1089], strides = [1, 1]} : vector<32x1089xf32> to vector<1x1089xf32>
    %231 = vector.shape_cast %230 : vector<1x1089xf32> to vector<1x1x1089xf32>
    %cst_47 = arith.constant dense<0.000000e+00> : vector<1xf32>
    %232 = vector.multi_reduction <add>, %231, %cst_47 [1, 2] : vector<1x1x1089xf32> to vector<1xf32>
    %233 = vector.shape_cast %232 : vector<1xf32> to vector<1x1x1xf32>
    %234 = vector.extract %233[0, 0, 0] : f32 from vector<1x1x1xf32>
    %235 = arith.addf %229, %234 : f32
    %236 = arith.addf %208, %235 : f32
    %cst_48 = arith.constant 0.000000e+00 : f32
    %237 = vector.broadcast %cst_48 : f32 to vector<32x1089xf32>
    %238 = arith.maximumf %218, %237 : vector<32x1089xf32>
    %239 = vector.shape_cast %238 : vector<32x1089xf32> to vector<1x32x1089xf32>
    %cst_49 = arith.constant dense<0.000000e+00> : vector<1xf32>
    %240 = vector.multi_reduction <add>, %239, %cst_49 [1, 2] : vector<1x32x1089xf32> to vector<1xf32>
    %241 = vector.shape_cast %240 : vector<1xf32> to vector<1x1x1xf32>
    %242 = vector.extract %241[0, 0, 0] : f32 from vector<1x1x1xf32>
    %243 = arith.addf %215, %242 : f32
    %cst_50 = arith.constant 9.565350e-06 : f32
    %244 = arith.mulf %236, %cst_50 : f32
    %c0_51 = arith.constant 0 : index
    %c0_52 = arith.constant 0 : index
    %245 = memref.load %arg3[%c0_51, %c0_52] : memref<1x2xf32, #tpu.memory_space<smem>>
    memref.store %244, %arg3[%c0_51, %c0_52] : memref<1x2xf32, #tpu.memory_space<smem>>
    %cst_53 = arith.constant 9.565350e-06 : f32
    %246 = arith.mulf %243, %cst_53 : f32
    %c0_54 = arith.constant 0 : index
    %c1_55 = arith.constant 1 : index
    %247 = memref.load %arg3[%c0_54, %c1_55] : memref<1x2xf32, #tpu.memory_space<smem>>
    memref.store %246, %arg3[%c0_54, %c1_55] : memref<1x2xf32, #tpu.memory_space<smem>>
    return
  }
  func.func @transform_0(%arg0: i32) -> (i32, i32, i32) {
    %c0_i32 = arith.constant 0 : i32
    %c0_i32_0 = arith.constant 0 : i32
    %c0_i32_1 = arith.constant 0 : i32
    %c0_i32_2 = arith.constant 0 : i32
    return %c0_i32, %c0_i32_0, %c0_i32_1 : i32, i32, i32
  }
  func.func @transform_1(%arg0: i32) -> (i32, i32) {
    %c0_i32 = arith.constant 0 : i32
    %c0_i32_0 = arith.constant 0 : i32
    %c0_i32_1 = arith.constant 0 : i32
    return %c0_i32, %c0_i32_0 : i32, i32
  }
  func.func @transform_2(%arg0: i32) -> (i32, i32) {
    %c0_i32 = arith.constant 0 : i32
    %c0_i32_0 = arith.constant 0 : i32
    %c0_i32_1 = arith.constant 0 : i32
    return %c0_i32, %c0_i32_0 : i32, i32
  }
}

</mosaic_0001>

<llo_original>
// kernel: tv_3d.1
$region0: #{tv_3d.1}
  #allocation0 [shape = 'u32[]', space=smem, size = 0x4, offset = 0x4, fixed_abs, tag = 'smem constant byte address 0x4 - core index']
  #allocation1 [shape = 'u32[72,128]{1,0:T(1,128)}', space=vmem, size = 0x9000, scoped, tag = 'internal scratch']
  %s0 = inlined_call_operand.vmem [shape: f32[3,33,1089], index: 0, kind: input, shape index: {}]
  %s1 = inlined_call_operand.vmem [shape: f32[2,1088], index: 1, kind: input, shape index: {}]
  %s2 = inlined_call_operand.vmem [shape: f32[1,2], index: 2, kind: output, shape index: {}]
  %s3 = sld [smem:[#allocation0]]
  $region18: #{tv_3d.1} parent=0
    _
  %s5 = ssub.s32 1, %s3
  %s6 = scalar_select 0, %s5, %s3
  $region1: #{tv_3d.1} parent=0
    #allocation2 [shape = 'u8[512]{0}', space=smem, size = 0x200, scoped, tag = 'output window, operand 0, single buffered']
    #allocation3 [shape = 's32[1]{0}', space=sflag, size = 0x4, scoped, tag = 'scoped memory for tv_3d.1']
    %7 = vsyncpa [#allocation3], 0
    // Predicated region
    $region2: #{tv_3d.1} parent=1 // pred_check
      _
    $region3: #{tv_3d.1} parent=1 // pred_check_branch
      %9 = sbr.rel (0) target = $region5
    $region4: #{tv_3d.1} parent=1 // pred_region
      _
    $region5: #{tv_3d.1} parent=1 // pred_fallthru
      _
    // Predicated region
    $region6: #{tv_3d.1} parent=1 // pred_check
      _
    $region7: #{tv_3d.1} parent=1 // pred_check_branch
      %11 = sbr.rel (0) target = $region9
    $region8: #{tv_3d.1} parent=1 // pred_region
      _
    $region9: #{tv_3d.1} parent=1 // pred_fallthru
      _
    %v12 = vld [vmem:[%s1] ss:$2 sm:$0xff]
    %s13 = scalar_lea.vmem %s1, 16
    %v14 = vld [vmem:[%s13] ss:$2 sm:$0x1]
    %s15 = scalar_lea.vmem %s1, 1
    %v16 = vld [vmem:[%s15] ss:$2 sm:$0xff]
    %s17 = scalar_lea.vmem %s1, 17
    %v18 = vld [vmem:[%s17] ss:$2 sm:$0x1]
    %v19 = vld [vmem:[%s0] sm:$0xff]
    %v20 = vld [vmem:[%s0 + $0x8] sm:$0xff]
    %v21 = vld [vmem:[%s0 + $0x10] sm:$0xff]
    %v22 = vld [vmem:[%s0 + $0x18] sm:$0xff]
    %v23 = vld [vmem:[%s0 + $0x20] sm:$0xff]
    %v24 = vld [vmem:[%s0 + $0x28] sm:$0xff]
    %v25 = vld [vmem:[%s0 + $0x30] sm:$0xff]
    %v26 = vld [vmem:[%s0 + $0x38] sm:$0xff]
    %v27 = vld [vmem:[%s0 + $0x40] sm:$0xff]
    %v28 = vld [vmem:[%s0 + $0x48] sm:$0xff]
    %v29 = vld [vmem:[%s0 + $0x50] sm:$0xff]
    %v30 = vld [vmem:[%s0 + $0x58] sm:$0xff]
    %v31 = vld [vmem:[%s0 + $0x60] sm:$0xff]
    %v32 = vld [vmem:[%s0 + $0x68] sm:$0xff]
    %v33 = vld [vmem:[%s0 + $0x70] sm:$0xff]
    %v34 = vld [vmem:[%s0 + $0x78] sm:$0xff]
    %v35 = vld [vmem:[%s0 + $0x80] sm:$0xff]
    %v36 = vld [vmem:[%s0 + $0x88] sm:$0xff]
    %v37 = vld [vmem:[%s0 + $0x90] sm:$0xff]
    %v38 = vld [vmem:[%s0 + $0x98] sm:$0xff]
    %v39 = vld [vmem:[%s0 + $0xa0] sm:$0xff]
    %v40 = vld [vmem:[%s0 + $0xa8] sm:$0xff]
    %v41 = vld [vmem:[%s0 + $0xb0] sm:$0xff]
    %v42 = vld [vmem:[%s0 + $0xb8] sm:$0xff]
    %v43 = vld [vmem:[%s0 + $0xc0] sm:$0xff]
    %v44 = vld [vmem:[%s0 + $0xc8] sm:$0xff]
    %v45 = vld [vmem:[%s0 + $0xd0] sm:$0xff]
    %v46 = vld [vmem:[%s0 + $0xd8] sm:$0xff]
    %v47 = vld [vmem:[%s0 + $0xe0] sm:$0xff]
    %v48 = vld [vmem:[%s0 + $0xe8] sm:$0xff]
    %v49 = vld [vmem:[%s0 + $0xf0] sm:$0xff]
    %v50 = vld [vmem:[%s0 + $0xf8] sm:$0xff]
    %v51 = vld [vmem:[%s0 + $0x100] sm:$0xff]
    %v52 = vld [vmem:[%s0 + $0x108] sm:$0xff]
    %v53 = vld [vmem:[%s0 + $0x110] sm:$0xff]
    %v54 = vld [vmem:[%s0 + $0x118] sm:$0xff]
    %v55 = vld [vmem:[%s0 + $0x120] sm:$0x1]
    %v56 = vld [vmem:[%s0 + $0x128] sm:$0x1]
    %v57 = vld [vmem:[%s0 + $0x130] sm:$0x1]
    %v58 = vld [vmem:[%s0 + $0x138] sm:$0x1]
    %v59 = vld [vmem:[%s0 + $0x140] sm:$0x1]
    %v60 = vld [vmem:[%s0 + $0x148] sm:$0x1]
    %v61 = vld [vmem:[%s0 + $0x150] sm:$0x1]
    %v62 = vld [vmem:[%s0 + $0x158] sm:$0x1]
    %v63 = vld [vmem:[%s0 + $0x160] sm:$0x1]
    %109 = vrot.lane.b32.xlu0 %v19, 127
    %v110 = vpop.permute.xlu0 %109
    %111 = vrot.lane.b32.xlu0 %v20, 127
    %v112 = vpop.permute.xlu0 %111
    %113 = vrot.lane.b32.xlu0 %v21, 127
    %v114 = vpop.permute.xlu0 %113
    %115 = vrot.lane.b32.xlu0 %v22, 127
    %v116 = vpop.permute.xlu0 %115
    %117 = vrot.lane.b32.xlu0 %v23, 127
    %v118 = vpop.permute.xlu0 %117
    %119 = vrot.lane.b32.xlu0 %v24, 127
    %v120 = vpop.permute.xlu0 %119
    %121 = vrot.lane.b32.xlu0 %v25, 127
    %v122 = vpop.permute.xlu0 %121
    %123 = vrot.lane.b32.xlu0 %v26, 127
    %v124 = vpop.permute.xlu0 %123
    %125 = vrot.lane.b32.xlu0 %v27, 127
    %v126 = vpop.permute.xlu0 %125
    %127 = vrot.lane.b32.xlu0 %v28, 127
    %v128 = vpop.permute.xlu0 %127
    %129 = vrot.lane.b32.xlu0 %v29, 127
    %v130 = vpop.permute.xlu0 %129
    %131 = vrot.lane.b32.xlu0 %v30, 127
    %v132 = vpop.permute.xlu0 %131
    %133 = vrot.lane.b32.xlu0 %v31, 127
    %v134 = vpop.permute.xlu0 %133
    %135 = vrot.lane.b32.xlu0 %v32, 127
    %v136 = vpop.permute.xlu0 %135
    %137 = vrot.lane.b32.xlu0 %v33, 127
    %v138 = vpop.permute.xlu0 %137
    %139 = vrot.lane.b32.xlu0 %v34, 127
    %v140 = vpop.permute.xlu0 %139
    %141 = vrot.lane.b32.xlu0 %v35, 127
    %v142 = vpop.permute.xlu0 %141
    %143 = vrot.lane.b32.xlu0 %v36, 127
    %v144 = vpop.permute.xlu0 %143
    %145 = vrot.lane.b32.xlu0 %v37, 127
    %v146 = vpop.permute.xlu0 %145
    %147 = vrot.lane.b32.xlu0 %v38, 127
    %v148 = vpop.permute.xlu0 %147
    %149 = vrot.lane.b32.xlu0 %v39, 127
    %v150 = vpop.permute.xlu0 %149
    %151 = vrot.lane.b32.xlu0 %v40, 127
    %v152 = vpop.permute.xlu0 %151
    %153 = vrot.lane.b32.xlu0 %v41, 127
    %v154 = vpop.permute.xlu0 %153
    %155 = vrot.lane.b32.xlu0 %v42, 127
    %v156 = vpop.permute.xlu0 %155
    %157 = vrot.lane.b32.xlu0 %v43, 127
    %v158 = vpop.permute.xlu0 %157
    %159 = vrot.lane.b32.xlu0 %v44, 127
    %v160 = vpop.permute.xlu0 %159
    %161 = vrot.lane.b32.xlu0 %v45, 127
    %v162 = vpop.permute.xlu0 %161
    %163 = vrot.lane.b32.xlu0 %v46, 127
    %v164 = vpop.permute.xlu0 %163
    %165 = vrot.lane.b32.xlu0 %v47, 127
    %v166 = vpop.permute.xlu0 %165
    %167 = vrot.lane.b32.xlu0 %v48, 127
    %v168 = vpop.permute.xlu0 %167
    %169 = vrot.lane.b32.xlu0 %v49, 127
    %v170 = vpop.permute.xlu0 %169
    %171 = vrot.lane.b32.xlu0 %v50, 127
    %v172 = vpop.permute.xlu0 %171
    %173 = vrot.lane.b32.xlu0 %v51, 127
    %v174 = vpop.permute.xlu0 %173
    %175 = vrot.lane.b32.xlu0 %v52, 127
    %v176 = vpop.permute.xlu0 %175
    %177 = vrot.lane.b32.xlu0 %v53, 127
    %v178 = vpop.permute.xlu0 %177
    %179 = vrot.lane.b32.xlu0 %v54, 127
    %v180 = vpop.permute.xlu0 %179
    %181 = vrot.lane.b32.xlu0 %v55, 127
    %v182 = vpop.permute.xlu0 %181
    %183 = vrot.lane.b32.xlu0 %v56, 127
    %v184 = vpop.permute.xlu0 %183
    %185 = vrot.lane.b32.xlu0 %v57, 127
    %v186 = vpop.permute.xlu0 %185
    %187 = vrot.lane.b32.xlu0 %v58, 127
    %v188 = vpop.permute.xlu0 %187
    %189 = vrot.lane.b32.xlu0 %v59, 127
    %v190 = vpop.permute.xlu0 %189
    %191 = vrot.lane.b32.xlu0 %v60, 127
    %v192 = vpop.permute.xlu0 %191
    %193 = vrot.lane.b32.xlu0 %v61, 127
    %v194 = vpop.permute.xlu0 %193
    %195 = vrot.lane.b32.xlu0 %v62, 127
    %v196 = vpop.permute.xlu0 %195
    %197 = vrot.lane.b32.xlu0 %v63, 127
    %v198 = vpop.permute.xlu0 %197
    %vm199 = vcmask 1039360
    %v200 = vsel %vm199, %v110, %v112
    %v201 = vsel %vm199, %v112, %v114
    %v202 = vsel %vm199, %v114, %v116
    %v203 = vsel %vm199, %v116, %v118
    %v204 = vsel %vm199, %v118, %v120
    %v205 = vsel %vm199, %v120, %v122
    %v206 = vsel %vm199, %v122, %v124
    %v207 = vsel %vm199, %v124, %v126
    %v208 = vsel %vm199, %v128, %v130
    %v209 = vsel %vm199, %v130, %v132
    %v210 = vsel %vm199, %v132, %v134
    %v211 = vsel %vm199, %v134, %v136
    %v212 = vsel %vm199, %v136, %v138
    %v213 = vsel %vm199, %v138, %v140
    %v214 = vsel %vm199, %v140, %v142
    %v215 = vsel %vm199, %v142, %v144
    %v216 = vsel %vm199, %v146, %v148
    %v217 = vsel %vm199, %v148, %v150
    %v218 = vsel %vm199, %v150, %v152
    %v219 = vsel %vm199, %v152, %v154
    %v220 = vsel %vm199, %v154, %v156
    %v221 = vsel %vm199, %v156, %v158
    %v222 = vsel %vm199, %v158, %v160
    %v223 = vsel %vm199, %v160, %v162
    %v224 = vsel %vm199, %v164, %v166
    %v225 = vsel %vm199, %v166, %v168
    %v226 = vsel %vm199, %v168, %v170
    %v227 = vsel %vm199, %v170, %v172
    %v228 = vsel %vm199, %v172, %v174
    %v229 = vsel %vm199, %v174, %v176
    %v230 = vsel %vm199, %v176, %v178
    %v231 = vsel %vm199, %v178, %v180
    %v232 = vsel %vm199, %v182, %v184
    %v233 = vsel %vm199, %v184, %v186
    %v234 = vsel %vm199, %v186, %v188
    %v235 = vsel %vm199, %v188, %v190
    %v236 = vsel %vm199, %v190, %v192
    %v237 = vsel %vm199, %v192, %v194
    %v238 = vsel %vm199, %v194, %v196
    %v239 = vsel %vm199, %v196, %v198
    %v285 = vsub.f32 %v19, %v200
    %v286 = vsub.f32 %v20, %v201
    %v287 = vsub.f32 %v21, %v202
    %v288 = vsub.f32 %v22, %v203
    %v289 = vsub.f32 %v23, %v204
    %v290 = vsub.f32 %v24, %v205
    %v291 = vsub.f32 %v25, %v206
    %v292 = vsub.f32 %v26, %v207
    %v293 = vsub.f32 %v27, %v126
    %v294 = vsub.f32 %v28, %v208
    %v295 = vsub.f32 %v29, %v209
    %v296 = vsub.f32 %v30, %v210
    %v297 = vsub.f32 %v31, %v211
    %v298 = vsub.f32 %v32, %v212
    %v299 = vsub.f32 %v33, %v213
    %v300 = vsub.f32 %v34, %v214
    %v301 = vsub.f32 %v35, %v215
    %v302 = vsub.f32 %v36, %v144
    %v303 = vsub.f32 %v37, %v216
    %v304 = vsub.f32 %v38, %v217
    %v305 = vsub.f32 %v39, %v218
    %v306 = vsub.f32 %v40, %v219
    %v307 = vsub.f32 %v41, %v220
    %v308 = vsub.f32 %v42, %v221
    %v309 = vsub.f32 %v43, %v222
    %v310 = vsub.f32 %v44, %v223
    %v311 = vsub.f32 %v45, %v162
    %v312 = vsub.f32 %v46, %v224
    %v313 = vsub.f32 %v47, %v225
    %v314 = vsub.f32 %v48, %v226
    %v315 = vsub.f32 %v49, %v227
    %v316 = vsub.f32 %v50, %v228
    %v317 = vsub.f32 %v51, %v229
    %v318 = vsub.f32 %v52, %v230
    %v319 = vsub.f32 %v53, %v231
    %v320 = vsub.f32 %v54, %v180
    %v321 = vsub.f32 %v55, %v232
    %v322 = vsub.f32 %v56, %v233
    %v323 = vsub.f32 %v57, %v234
    %v324 = vsub.f32 %v58, %v235
    %v325 = vsub.f32 %v59, %v236
    %v326 = vsub.f32 %v60, %v237
    %v327 = vsub.f32 %v61, %v238
    %v328 = vsub.f32 %v62, %v239
    %v329 = vsub.f32 %v63, %v198
    %v330 = vmul.f32 %v285, %v285
    %v331 = vmul.f32 %v286, %v286
    %v332 = vmul.f32 %v287, %v287
    %v333 = vmul.f32 %v288, %v288
    %v334 = vmul.f32 %v289, %v289
    %v335 = vmul.f32 %v290, %v290
    %v336 = vmul.f32 %v291, %v291
    %v337 = vmul.f32 %v292, %v292
    %v338 = vmul.f32 %v293, %v293
    %v339 = vmul.f32 %v294, %v294
    %v340 = vmul.f32 %v295, %v295
    %v341 = vmul.f32 %v296, %v296
    %v342 = vmul.f32 %v297, %v297
    %v343 = vmul.f32 %v298, %v298
    %v344 = vmul.f32 %v299, %v299
    %v345 = vmul.f32 %v300, %v300
    %v346 = vmul.f32 %v301, %v301
    %v347 = vmul.f32 %v302, %v302
    %v348 = vmul.f32 %v303, %v303
    %v349 = vmul.f32 %v304, %v304
    %v350 = vmul.f32 %v305, %v305
    %v351 = vmul.f32 %v306, %v306
    %v352 = vmul.f32 %v307, %v307
    %v353 = vmul.f32 %v308, %v308
    %v354 = vmul.f32 %v309, %v309
    %v355 = vmul.f32 %v310, %v310
    %v356 = vmul.f32 %v311, %v311
    %v357 = vmul.f32 %v312, %v312
    %v358 = vmul.f32 %v313, %v313
    %v359 = vmul.f32 %v314, %v314
    %v360 = vmul.f32 %v315, %v315
    %v361 = vmul.f32 %v316, %v316
    %v362 = vmul.f32 %v317, %v317
    %v363 = vmul.f32 %v318, %v318
    %v364 = vmul.f32 %v319, %v319
    %v365 = vmul.f32 %v320, %v320
    %v366 = vmul.f32 %v321, %v321
    %v367 = vmul.f32 %v322, %v322
    %v368 = vmul.f32 %v323, %v323
    %v369 = vmul.f32 %v324, %v324
    %v370 = vmul.f32 %v325, %v325
    %v371 = vmul.f32 %v326, %v326
    %v372 = vmul.f32 %v327, %v327
    %v373 = vmul.f32 %v328, %v328
    %v374 = vmul.f32 %v329, %v329
    %v377 = vperm.slane %v12, 0
    %v378 = vperm.slane %v12, 1
    %v379 = vperm.slane %v12, 2
    %v380 = vperm.slane %v12, 3
    %v381 = vperm.slane %v12, 4
    %v382 = vperm.slane %v12, 5
    %v383 = vperm.slane %v12, 6
    %v384 = vperm.slane %v12, 7
    %v385 = vperm.slane %v14, 0
    %v395 = vmul.f32 %v330, %v377
    %v396 = vmul.f32 %v331, %v378
    %v397 = vmul.f32 %v332, %v379
    %v398 = vmul.f32 %v333, %v380
    %v399 = vmul.f32 %v334, %v381
    %v400 = vmul.f32 %v335, %v382
    %v401 = vmul.f32 %v336, %v383
    %v402 = vmul.f32 %v337, %v384
    %v403 = vmul.f32 %v338, %v385
    %v404 = vmul.f32 %v339, %v377
    %v405 = vmul.f32 %v340, %v378
    %v406 = vmul.f32 %v341, %v379
    %v407 = vmul.f32 %v342, %v380
    %v408 = vmul.f32 %v343, %v381
    %v409 = vmul.f32 %v344, %v382
    %v410 = vmul.f32 %v345, %v383
    %v411 = vmul.f32 %v346, %v384
    %v412 = vmul.f32 %v347, %v385
    %v413 = vmul.f32 %v348, %v377
    %v414 = vmul.f32 %v349, %v378
    %v415 = vmul.f32 %v350, %v379
    %v416 = vmul.f32 %v351, %v380
    %v417 = vmul.f32 %v352, %v381
    %v418 = vmul.f32 %v353, %v382
    %v419 = vmul.f32 %v354, %v383
    %v420 = vmul.f32 %v355, %v384
    %v421 = vmul.f32 %v356, %v385
    %v422 = vmul.f32 %v357, %v377
    %v423 = vmul.f32 %v358, %v378
    %v424 = vmul.f32 %v359, %v379
    %v425 = vmul.f32 %v360, %v380
    %v426 = vmul.f32 %v361, %v381
    %v427 = vmul.f32 %v362, %v382
    %v428 = vmul.f32 %v363, %v383
    %v429 = vmul.f32 %v364, %v384
    %v430 = vmul.f32 %v365, %v385
    %v431 = vmul.f32 %v366, %v377
    %v432 = vmul.f32 %v367, %v378
    %v433 = vmul.f32 %v368, %v379
    %v434 = vmul.f32 %v369, %v380
    %v435 = vmul.f32 %v370, %v381
    %v436 = vmul.f32 %v371, %v382
    %v437 = vmul.f32 %v372, %v383
    %v438 = vmul.f32 %v373, %v384
    %v439 = vmul.f32 %v374, %v385
    %v440 = vadd.f32 %v395, %v396
    %v441 = vadd.f32 %v440, %v397
    %v442 = vadd.f32 %v441, %v398
    %v443 = vadd.f32 %v442, %v399
    %v444 = vadd.f32 %v443, %v400
    %v445 = vadd.f32 %v444, %v401
    %v446 = vadd.f32 %v445, %v402
    %vm447 = vcmask 523264
    %v448 = vsel %vm447, %v403, 0.0
    %v449 = vadd.f32 %v446, %v448
    %v450 = vadd.f32 %v449, %v404
    %v451 = vadd.f32 %v450, %v405
    %v452 = vadd.f32 %v451, %v406
    %v453 = vadd.f32 %v452, %v407
    %v454 = vadd.f32 %v453, %v408
    %v455 = vadd.f32 %v454, %v409
    %v456 = vadd.f32 %v455, %v410
    %v457 = vadd.f32 %v456, %v411
    %v458 = vsel %vm447, %v412, 0.0
    %v459 = vadd.f32 %v457, %v458
    %v460 = vadd.f32 %v459, %v413
    %v461 = vadd.f32 %v460, %v414
    %v462 = vadd.f32 %v461, %v415
    %v463 = vadd.f32 %v462, %v416
    %v464 = vadd.f32 %v463, %v417
    %v465 = vadd.f32 %v464, %v418
    %v466 = vadd.f32 %v465, %v419
    %v467 = vadd.f32 %v466, %v420
    %v468 = vsel %vm447, %v421, 0.0
    %v469 = vadd.f32 %v467, %v468
    %v470 = vadd.f32 %v469, %v422
    %v471 = vadd.f32 %v470, %v423
    %v472 = vadd.f32 %v471, %v424
    %v473 = vadd.f32 %v472, %v425
    %v474 = vadd.f32 %v473, %v426
    %v475 = vadd.f32 %v474, %v427
    %v476 = vadd.f32 %v475, %v428
    %v477 = vadd.f32 %v476, %v429
    %v478 = vsel %vm447, %v430, 0.0
    %v479 = vadd.f32 %v477, %v478
    %vm480 = vcmask 1040384
    %v481 = vsel %vm480, %v431, 0.0
    %v482 = vadd.f32 %v479, %v481
    %v483 = vsel %vm480, %v432, 0.0
    %v484 = vadd.f32 %v482, %v483
    %v485 = vsel %vm480, %v433, 0.0
    %v486 = vadd.f32 %v484, %v485
    %v487 = vsel %vm480, %v434, 0.0
    %v488 = vadd.f32 %v486, %v487
    %v489 = vsel %vm480, %v435, 0.0
    %v490 = vadd.f32 %v488, %v489
    %v491 = vsel %vm480, %v436, 0.0
    %v492 = vadd.f32 %v490, %v491
    %v493 = vsel %vm480, %v437, 0.0
    %v494 = vadd.f32 %v492, %v493
    %v495 = vsel %vm480, %v438, 0.0
    %v496 = vadd.f32 %v494, %v495
    %vm497 = vcmask 516096
    %v498 = vsel %vm497, %v439, 0.0
    %v499 = vadd.f32 %v496, %v498
    %500 = vadd.xlane.f32.xlu0 %v499
    %v501 = vpop.xlane.xlu0 %500
    %v502 = vrot.slane %v501, 4
    %v503 = vadd.f32 %v501, %v502
    %v504 = vrot.slane %v503, 2
    %v505 = vadd.f32 %v503, %v504
    %v506 = vrot.slane %v505, 1
    %v507 = vadd.f32 %v505, %v506
    %s508 = vtos %v507
    %s509 = sadd.f32 %s508, 0.0
    %v510 = vmax.f32 %v285, 0.0
    %v511 = vmax.f32 %v286, 0.0
    %v512 = vmax.f32 %v287, 0.0
    %v513 = vmax.f32 %v288, 0.0
    %v514 = vmax.f32 %v289, 0.0
    %v515 = vmax.f32 %v290, 0.0
    %v516 = vmax.f32 %v291, 0.0
    %v517 = vmax.f32 %v292, 0.0
    %v518 = vmax.f32 %v293, 0.0
    %v519 = vmax.f32 %v294, 0.0
    %v520 = vmax.f32 %v295, 0.0
    %v521 = vmax.f32 %v296, 0.0
    %v522 = vmax.f32 %v297, 0.0
    %v523 = vmax.f32 %v298, 0.0
    %v524 = vmax.f32 %v299, 0.0
    %v525 = vmax.f32 %v300, 0.0
    %v526 = vmax.f32 %v301, 0.0
    %v527 = vmax.f32 %v302, 0.0
    %v528 = vmax.f32 %v303, 0.0
    %v529 = vmax.f32 %v304, 0.0
    %v530 = vmax.f32 %v305, 0.0
    %v531 = vmax.f32 %v306, 0.0
    %v532 = vmax.f32 %v307, 0.0
    %v533 = vmax.f32 %v308, 0.0
    %v534 = vmax.f32 %v309, 0.0
    %v535 = vmax.f32 %v310, 0.0
    %v536 = vmax.f32 %v311, 0.0
    %v537 = vmax.f32 %v312, 0.0
    %v538 = vmax.f32 %v313, 0.0
    %v539 = vmax.f32 %v314, 0.0
    %v540 = vmax.f32 %v315, 0.0
    %v541 = vmax.f32 %v316, 0.0
    %v542 = vmax.f32 %v317, 0.0
    %v543 = vmax.f32 %v318, 0.0
    %v544 = vmax.f32 %v319, 0.0
    %v545 = vmax.f32 %v320, 0.0
    %v546 = vmax.f32 %v321, 0.0
    %v547 = vmax.f32 %v322, 0.0
    %v548 = vmax.f32 %v323, 0.0
    %v549 = vmax.f32 %v324, 0.0
    %v550 = vmax.f32 %v325, 0.0
    %v551 = vmax.f32 %v326, 0.0
    %v552 = vmax.f32 %v327, 0.0
    %v553 = vmax.f32 %v328, 0.0
    %v554 = vmax.f32 %v329, 0.0
    %v557 = vperm.slane %v16, 0
    %v558 = vperm.slane %v16, 1
    %v559 = vperm.slane %v16, 2
    %v560 = vperm.slane %v16, 3
    %v561 = vperm.slane %v16, 4
    %v562 = vperm.slane %v16, 5
    %v563 = vperm.slane %v16, 6
    %v564 = vperm.slane %v16, 7
    %v565 = vperm.slane %v18, 0
    %v575 = vmul.f32 %v510, %v557
    %v576 = vmul.f32 %v511, %v558
    %v577 = vmul.f32 %v512, %v559
    %v578 = vmul.f32 %v513, %v560
    %v579 = vmul.f32 %v514, %v561
    %v580 = vmul.f32 %v515, %v562
    %v581 = vmul.f32 %v516, %v563
    %v582 = vmul.f32 %v517, %v564
    %v583 = vmul.f32 %v518, %v565
    %v584 = vmul.f32 %v519, %v557
    %v585 = vmul.f32 %v520, %v558
    %v586 = vmul.f32 %v521, %v559
    %v587 = vmul.f32 %v522, %v560
    %v588 = vmul.f32 %v523, %v561
    %v589 = vmul.f32 %v524, %v562
    %v590 = vmul.f32 %v525, %v563
    %v591 = vmul.f32 %v526, %v564
    %v592 = vmul.f32 %v527, %v565
    %v593 = vmul.f32 %v528, %v557
    %v594 = vmul.f32 %v529, %v558
    %v595 = vmul.f32 %v530, %v559
    %v596 = vmul.f32 %v531, %v560
    %v597 = vmul.f32 %v532, %v561
    %v598 = vmul.f32 %v533, %v562
    %v599 = vmul.f32 %v534, %v563
    %v600 = vmul.f32 %v535, %v564
    %v601 = vmul.f32 %v536, %v565
    %v602 = vmul.f32 %v537, %v557
    %v603 = vmul.f32 %v538, %v558
    %v604 = vmul.f32 %v539, %v559
    %v605 = vmul.f32 %v540, %v560
    %v606 = vmul.f32 %v541, %v561
    %v607 = vmul.f32 %v542, %v562
    %v608 = vmul.f32 %v543, %v563
    %v609 = vmul.f32 %v544, %v564
    %v610 = vmul.f32 %v545, %v565
    %v611 = vmul.f32 %v546, %v557
    %v612 = vmul.f32 %v547, %v558
    %v613 = vmul.f32 %v548, %v559
    %v614 = vmul.f32 %v549, %v560
    %v615 = vmul.f32 %v550, %v561
    %v616 = vmul.f32 %v551, %v562
    %v617 = vmul.f32 %v552, %v563
    %v618 = vmul.f32 %v553, %v564
    %v619 = vmul.f32 %v554, %v565
    %v620 = vadd.f32 %v575, %v576
    %v621 = vadd.f32 %v620, %v577
    %v622 = vadd.f32 %v621, %v578
    %v623 = vadd.f32 %v622, %v579
    %v624 = vadd.f32 %v623, %v580
    %v625 = vadd.f32 %v624, %v581
    %v626 = vadd.f32 %v625, %v582
    %v627 = vsel %vm447, %v583, 0.0
    %v628 = vadd.f32 %v626, %v627
    %v629 = vadd.f32 %v628, %v584
    %v630 = vadd.f32 %v629, %v585
    %v631 = vadd.f32 %v630, %v586
    %v632 = vadd.f32 %v631, %v587
    %v633 = vadd.f32 %v632, %v588
    %v634 = vadd.f32 %v633, %v589
    %v635 = vadd.f32 %v634, %v590
    %v636 = vadd.f32 %v635, %v591
    %v637 = vsel %vm447, %v592, 0.0
    %v638 = vadd.f32 %v636, %v637
    %v639 = vadd.f32 %v638, %v593
    %v640 = vadd.f32 %v639, %v594
    %v641 = vadd.f32 %v640, %v595
    %v642 = vadd.f32 %v641, %v596
    %v643 = vadd.f32 %v642, %v597
    %v644 = vadd.f32 %v643, %v598
    %v645 = vadd.f32 %v644, %v599
    %v646 = vadd.f32 %v645, %v600
    %v647 = vsel %vm447, %v601, 0.0
    %v648 = vadd.f32 %v646, %v647
    %v649 = vadd.f32 %v648, %v602
    %v650 = vadd.f32 %v649, %v603
    %v651 = vadd.f32 %v650, %v604
    %v652 = vadd.f32 %v651, %v605
    %v653 = vadd.f32 %v652, %v606
    %v654 = vadd.f32 %v653, %v607
    %v655 = vadd.f32 %v654, %v608
    %v656 = vadd.f32 %v655, %v609
    %v657 = vsel %vm447, %v610, 0.0
    %v658 = vadd.f32 %v656, %v657
    %v659 = vsel %vm480, %v611, 0.0
    %v660 = vadd.f32 %v658, %v659
    %v661 = vsel %vm480, %v612, 0.0
    %v662 = vadd.f32 %v660, %v661
    %v663 = vsel %vm480, %v613, 0.0
    %v664 = vadd.f32 %v662, %v663
    %v665 = vsel %vm480, %v614, 0.0
    %v666 = vadd.f32 %v664, %v665
    %v667 = vsel %vm480, %v615, 0.0
    %v668 = vadd.f32 %v666, %v667
    %v669 = vsel %vm480, %v616, 0.0
    %v670 = vadd.f32 %v668, %v669
    %v671 = vsel %vm480, %v617, 0.0
    %v672 = vadd.f32 %v670, %v671
    %v673 = vsel %vm480, %v618, 0.0
    %v674 = vadd.f32 %v672, %v673
    %v675 = vsel %vm497, %v619, 0.0
    %v676 = vadd.f32 %v674, %v675
    %677 = vadd.xlane.f32.xlu0 %v676
    %v678 = vpop.xlane.xlu0 %677
    %v679 = vrot.slane %v678, 4
    %v680 = vadd.f32 %v678, %v679
    %v681 = vrot.slane %v680, 2
    %v682 = vadd.f32 %v680, %v681
    %v683 = vrot.slane %v682, 1
    %v684 = vadd.f32 %v682, %v683
    %s685 = vtos %v684
    %s686 = sadd.f32 %s685, 0.0
    %687 = vrot.lane.b32.xlu0 %v19, 95
    %v688 = vpop.permute.xlu0 %687
    %689 = vrot.lane.b32.xlu0 %v20, 95
    %v690 = vpop.permute.xlu0 %689
    %691 = vrot.lane.b32.xlu0 %v21, 95
    %v692 = vpop.permute.xlu0 %691
    %693 = vrot.lane.b32.xlu0 %v22, 95
    %v694 = vpop.permute.xlu0 %693
    %695 = vrot.lane.b32.xlu0 %v23, 95
    %v696 = vpop.permute.xlu0 %695
    %697 = vrot.lane.b32.xlu0 %v24, 95
    %v698 = vpop.permute.xlu0 %697
    %699 = vrot.lane.b32.xlu0 %v25, 95
    %v700 = vpop.permute.xlu0 %699
    %701 = vrot.lane.b32.xlu0 %v26, 95
    %v702 = vpop.permute.xlu0 %701
    %703 = vrot.lane.b32.xlu0 %v27, 95
    %v704 = vpop.permute.xlu0 %703
    %705 = vrot.lane.b32.xlu0 %v28, 95
    %v706 = vpop.permute.xlu0 %705
    %707 = vrot.lane.b32.xlu0 %v29, 95
    %v708 = vpop.permute.xlu0 %707
    %709 = vrot.lane.b32.xlu0 %v30, 95
    %v710 = vpop.permute.xlu0 %709
    %711 = vrot.lane.b32.xlu0 %v31, 95
    %v712 = vpop.permute.xlu0 %711
    %713 = vrot.lane.b32.xlu0 %v32, 95
    %v714 = vpop.permute.xlu0 %713
    %715 = vrot.lane.b32.xlu0 %v33, 95
    %v716 = vpop.permute.xlu0 %715
    %717 = vrot.lane.b32.xlu0 %v34, 95
    %v718 = vpop.permute.xlu0 %717
    %719 = vrot.lane.b32.xlu0 %v35, 95
    %v720 = vpop.permute.xlu0 %719
    %721 = vrot.lane.b32.xlu0 %v36, 95
    %v722 = vpop.permute.xlu0 %721
    %723 = vrot.lane.b32.xlu0 %v37, 95
    %v724 = vpop.permute.xlu0 %723
    %725 = vrot.lane.b32.xlu0 %v38, 95
    %v726 = vpop.permute.xlu0 %725
    %727 = vrot.lane.b32.xlu0 %v39, 95
    %v728 = vpop.permute.xlu0 %727
    %729 = vrot.lane.b32.xlu0 %v40, 95
    %v730 = vpop.permute.xlu0 %729
    %731 = vrot.lane.b32.xlu0 %v41, 95
    %v732 = vpop.permute.xlu0 %731
    %733 = vrot.lane.b32.xlu0 %v42, 95
    %v734 = vpop.permute.xlu0 %733
    %735 = vrot.lane.b32.xlu0 %v43, 95
    %v736 = vpop.permute.xlu0 %735
    %737 = vrot.lane.b32.xlu0 %v44, 95
    %v738 = vpop.permute.xlu0 %737
    %739 = vrot.lane.b32.xlu0 %v45, 95
    %v740 = vpop.permute.xlu0 %739
    %741 = vrot.lane.b32.xlu0 %v46, 95
    %v742 = vpop.permute.xlu0 %741
    %743 = vrot.lane.b32.xlu0 %v47, 95
    %v744 = vpop.permute.xlu0 %743
    %745 = vrot.lane.b32.xlu0 %v48, 95
    %v746 = vpop.permute.xlu0 %745
    %747 = vrot.lane.b32.xlu0 %v49, 95
    %v748 = vpop.permute.xlu0 %747
    %749 = vrot.lane.b32.xlu0 %v50, 95
    %v750 = vpop.permute.xlu0 %749
    %751 = vrot.lane.b32.xlu0 %v51, 95
    %v752 = vpop.permute.xlu0 %751
    %753 = vrot.lane.b32.xlu0 %v52, 95
    %v754 = vpop.permute.xlu0 %753
    %755 = vrot.lane.b32.xlu0 %v53, 95
    %v756 = vpop.permute.xlu0 %755
    %757 = vrot.lane.b32.xlu0 %v54, 95
    %v758 = vpop.permute.xlu0 %757
    %759 = vrot.lane.b32.xlu0 %v55, 95
    %v760 = vpop.permute.xlu0 %759
    %761 = vrot.lane.b32.xlu0 %v56, 95
    %v762 = vpop.permute.xlu0 %761
    %763 = vrot.lane.b32.xlu0 %v57, 95
    %v764 = vpop.permute.xlu0 %763
    %765 = vrot.lane.b32.xlu0 %v58, 95
    %v766 = vpop.permute.xlu0 %765
    %767 = vrot.lane.b32.xlu0 %v59, 95
    %v768 = vpop.permute.xlu0 %767
    %769 = vrot.lane.b32.xlu0 %v60, 95
    %v770 = vpop.permute.xlu0 %769
    %771 = vrot.lane.b32.xlu0 %v61, 95
    %v772 = vpop.permute.xlu0 %771
    %773 = vrot.lane.b32.xlu0 %v62, 95
    %v774 = vpop.permute.xlu0 %773
    %775 = vrot.lane.b32.xlu0 %v63, 95
    %v776 = vpop.permute.xlu0 %775
    %vm777 = vcmask 777216
    %v778 = vsel %vm777, %v688, %v690
    %v779 = vsel %vm777, %v690, %v692
    %v780 = vsel %vm777, %v692, %v694
    %v781 = vsel %vm777, %v694, %v696
    %v782 = vsel %vm777, %v696, %v698
    %v783 = vsel %vm777, %v698, %v700
    %v784 = vsel %vm777, %v700, %v702
    %v785 = vsel %vm777, %v702, %v704
    %v786 = vsel %vm777, %v706, %v708
    %v787 = vsel %vm777, %v708, %v710
    %v788 = vsel %vm777, %v710, %v712
    %v789 = vsel %vm777, %v712, %v714
    %v790 = vsel %vm777, %v714, %v716
    %v791 = vsel %vm777, %v716, %v718
    %v792 = vsel %vm777, %v718, %v720
    %v793 = vsel %vm777, %v720, %v722
    %v794 = vsel %vm777, %v724, %v726
    %v795 = vsel %vm777, %v726, %v728
    %v796 = vsel %vm777, %v728, %v730
    %v797 = vsel %vm777, %v730, %v732
    %v798 = vsel %vm777, %v732, %v734
    %v799 = vsel %vm777, %v734, %v736
    %v800 = vsel %vm777, %v736, %v738
    %v801 = vsel %vm777, %v738, %v740
    %v802 = vsel %vm777, %v742, %v744
    %v803 = vsel %vm777, %v744, %v746
    %v804 = vsel %vm777, %v746, %v748
    %v805 = vsel %vm777, %v748, %v750
    %v806 = vsel %vm777, %v750, %v752
    %v807 = vsel %vm777, %v752, %v754
    %v808 = vsel %vm777, %v754, %v756
    %v809 = vsel %vm777, %v756, %v758
    %v810 = vsel %vm777, %v760, %v762
    %v811 = vsel %vm777, %v762, %v764
    %v812 = vsel %vm777, %v764, %v766
    %v813 = vsel %vm777, %v766, %v768
    %v814 = vsel %vm777, %v768, %v770
    %v815 = vsel %vm777, %v770, %v772
    %v816 = vsel %vm777, %v772, %v774
    %v817 = vsel %vm777, %v774, %v776
    %v863 = vsub.f32 %v19, %v778
    %v864 = vsub.f32 %v20, %v779
    %v865 = vsub.f32 %v21, %v780
    %v866 = vsub.f32 %v22, %v781
    %v867 = vsub.f32 %v23, %v782
    %v868 = vsub.f32 %v24, %v783
    %v869 = vsub.f32 %v25, %v784
    %v870 = vsub.f32 %v26, %v785
    %v871 = vsub.f32 %v27, %v704
    %v872 = vsub.f32 %v28, %v786
    %v873 = vsub.f32 %v29, %v787
    %v874 = vsub.f32 %v30, %v788
    %v875 = vsub.f32 %v31, %v789
    %v876 = vsub.f32 %v32, %v790
    %v877 = vsub.f32 %v33, %v791
    %v878 = vsub.f32 %v34, %v792
    %v879 = vsub.f32 %v35, %v793
    %v880 = vsub.f32 %v36, %v722
    %v881 = vsub.f32 %v37, %v794
    %v882 = vsub.f32 %v38, %v795
    %v883 = vsub.f32 %v39, %v796
    %v884 = vsub.f32 %v40, %v797
    %v885 = vsub.f32 %v41, %v798
    %v886 = vsub.f32 %v42, %v799
    %v887 = vsub.f32 %v43, %v800
    %v888 = vsub.f32 %v44, %v801
    %v889 = vsub.f32 %v45, %v740
    %v890 = vsub.f32 %v46, %v802
    %v891 = vsub.f32 %v47, %v803
    %v892 = vsub.f32 %v48, %v804
    %v893 = vsub.f32 %v49, %v805
    %v894 = vsub.f32 %v50, %v806
    %v895 = vsub.f32 %v51, %v807
    %v896 = vsub.f32 %v52, %v808
    %v897 = vsub.f32 %v53, %v809
    %v898 = vsub.f32 %v54, %v758
    %v899 = vsub.f32 %v55, %v810
    %v900 = vsub.f32 %v56, %v811
    %v901 = vsub.f32 %v57, %v812
    %v902 = vsub.f32 %v58, %v813
    %v903 = vsub.f32 %v59, %v814
    %v904 = vsub.f32 %v60, %v815
    %v905 = vsub.f32 %v61, %v816
    %v906 = vsub.f32 %v62, %v817
    %v907 = vsub.f32 %v63, %v776
    %v908 = vmul.f32 %v863, %v863
    %v909 = vmul.f32 %v864, %v864
    %v910 = vmul.f32 %v865, %v865
    %v911 = vmul.f32 %v866, %v866
    %v912 = vmul.f32 %v867, %v867
    %v913 = vmul.f32 %v868, %v868
    %v914 = vmul.f32 %v869, %v869
    %v915 = vmul.f32 %v870, %v870
    %v916 = vmul.f32 %v871, %v871
    %v917 = vmul.f32 %v872, %v872
    %v918 = vmul.f32 %v873, %v873
    %v919 = vmul.f32 %v874, %v874
    %v920 = vmul.f32 %v875, %v875
    %v921 = vmul.f32 %v876, %v876
    %v922 = vmul.f32 %v877, %v877
    %v923 = vmul.f32 %v878, %v878
    %v924 = vmul.f32 %v879, %v879
    %v925 = vmul.f32 %v880, %v880
    %v926 = vmul.f32 %v881, %v881
    %v927 = vmul.f32 %v882, %v882
    %v928 = vmul.f32 %v883, %v883
    %v929 = vmul.f32 %v884, %v884
    %v930 = vmul.f32 %v885, %v885
    %v931 = vmul.f32 %v886, %v886
    %v932 = vmul.f32 %v887, %v887
    %v933 = vmul.f32 %v888, %v888
    %v934 = vmul.f32 %v889, %v889
    %v935 = vmul.f32 %v890, %v890
    %v936 = vmul.f32 %v891, %v891
    %v937 = vmul.f32 %v892, %v892
    %v938 = vmul.f32 %v893, %v893
    %v939 = vmul.f32 %v894, %v894
    %v940 = vmul.f32 %v895, %v895
    %v941 = vmul.f32 %v896, %v896
    %v942 = vmul.f32 %v897, %v897
    %v943 = vmul.f32 %v898, %v898
    %v944 = vmul.f32 %v899, %v899
    %v945 = vmul.f32 %v900, %v900
    %v946 = vmul.f32 %v901, %v901
    %v947 = vmul.f32 %v902, %v902
    %v948 = vmul.f32 %v903, %v903
    %v949 = vmul.f32 %v904, %v904
    %v950 = vmul.f32 %v905, %v905
    %v951 = vmul.f32 %v906, %v906
    %v952 = vmul.f32 %v907, %v907
    %v953 = vadd.f32 %v908, %v909
    %v954 = vadd.f32 %v953, %v910
    %v955 = vadd.f32 %v954, %v911
    %v956 = vadd.f32 %v955, %v912
    %v957 = vadd.f32 %v956, %v913
    %v958 = vadd.f32 %v957, %v914
    %v959 = vadd.f32 %v958, %v915
    %vm960 = vcmask 261120
    %v961 = vsel %vm960, %v916, 0.0
    %v962 = vadd.f32 %v959, %v961
    %v963 = vadd.f32 %v962, %v917
    %v964 = vadd.f32 %v963, %v918
    %v965 = vadd.f32 %v964, %v919
    %v966 = vadd.f32 %v965, %v920
    %v967 = vadd.f32 %v966, %v921
    %v968 = vadd.f32 %v967, %v922
    %v969 = vadd.f32 %v968, %v923
    %v970 = vadd.f32 %v969, %v924
    %v971 = vsel %vm960, %v925, 0.0
    %v972 = vadd.f32 %v970, %v971
    %v973 = vadd.f32 %v972, %v926
    %v974 = vadd.f32 %v973, %v927
    %v975 = vadd.f32 %v974, %v928
    %v976 = vadd.f32 %v975, %v929
    %v977 = vadd.f32 %v976, %v930
    %v978 = vadd.f32 %v977, %v931
    %v979 = vadd.f32 %v978, %v932
    %v980 = vadd.f32 %v979, %v933
    %v981 = vsel %vm960, %v934, 0.0
    %v982 = vadd.f32 %v980, %v981
    %v983 = vadd.f32 %v982, %v935
    %v984 = vadd.f32 %v983, %v936
    %v985 = vadd.f32 %v984, %v937
    %v986 = vadd.f32 %v985, %v938
    %v987 = vadd.f32 %v986, %v939
    %v988 = vadd.f32 %v987, %v940
    %v989 = vadd.f32 %v988, %v941
    %v990 = vadd.f32 %v989, %v942
    %v991 = vsel %vm960, %v943, 0.0
    %v992 = vadd.f32 %v990, %v991
    %v993 = vsel %vm480, %v944, 0.0
    %v994 = vadd.f32 %v992, %v993
    %v995 = vsel %vm480, %v945, 0.0
    %v996 = vadd.f32 %v994, %v995
    %v997 = vsel %vm480, %v946, 0.0
    %v998 = vadd.f32 %v996, %v997
    %v999 = vsel %vm480, %v947, 0.0
    %v1000 = vadd.f32 %v998, %v999
    %v1001 = vsel %vm480, %v948, 0.0
    %v1002 = vadd.f32 %v1000, %v1001
    %v1003 = vsel %vm480, %v949, 0.0
    %v1004 = vadd.f32 %v1002, %v1003
    %v1005 = vsel %vm480, %v950, 0.0
    %v1006 = vadd.f32 %v1004, %v1005
    %v1007 = vsel %vm480, %v951, 0.0
    %v1008 = vadd.f32 %v1006, %v1007
    %vm1009 = vcmask 253952
    %v1010 = vsel %vm1009, %v952, 0.0
    %v1011 = vadd.f32 %v1008, %v1010
    %1012 = vadd.xlane.f32.xlu0 %v1011
    %v1013 = vpop.xlane.xlu0 %1012
    %v1014 = vrot.slane %v1013, 4
    %v1015 = vadd.f32 %v1013, %v1014
    %v1016 = vrot.slane %v1015, 2
    %v1017 = vadd.f32 %v1015, %v1016
    %v1018 = vrot.slane %v1017, 1
    %v1019 = vadd.f32 %v1017, %v1018
    %s1020 = vtos %v1019
    %vm1021 = vcmask 269312
    %v1022 = vsel %vm1021, %v908, 0.0
    %v1023 = vsel %vm1021, %v917, 0.0
    %v1024 = vadd.f32 %v1022, %v1023
    %v1025 = vsel %vm1021, %v926, 0.0
    %v1026 = vadd.f32 %v1024, %v1025
    %v1027 = vsel %vm1021, %v935, 0.0
    %v1028 = vadd.f32 %v1026, %v1027
    %vm1029 = vcmask 262144
    %v1030 = vsel %vm1029, %v944, 0.0
    %v1031 = vadd.f32 %v1028, %v1030
    %1032 = vadd.xlane.f32.xlu0 %v1031
    %v1033 = vpop.xlane.xlu0 %1032
    %v1034 = vrot.slane %v1033, 4
    %v1035 = vadd.f32 %v1033, %v1034
    %v1036 = vrot.slane %v1035, 2
    %v1037 = vadd.f32 %v1035, %v1036
    %v1038 = vrot.slane %v1037, 1
    %v1039 = vadd.f32 %v1037, %v1038
    %s1040 = vtos %v1039
    %s1041 = sadd.f32 %s1020, %s1040
    %1052 = vrot.lane.b32.xlu0 %v915, 1
    %v1053 = vpop.permute.xlu0 %1052
    %1054 = vrot.lane.b32.xlu0 %v916, 1
    %v1055 = vpop.permute.xlu0 %1054
    %1056 = vrot.lane.b32.xlu0 %v924, 1
    %v1057 = vpop.permute.xlu0 %1056
    %1058 = vrot.lane.b32.xlu0 %v925, 1
    %v1059 = vpop.permute.xlu0 %1058
    %1060 = vrot.lane.b32.xlu0 %v933, 1
    %v1061 = vpop.permute.xlu0 %1060
    %1062 = vrot.lane.b32.xlu0 %v934, 1
    %v1063 = vpop.permute.xlu0 %1062
    %1064 = vrot.lane.b32.xlu0 %v942, 1
    %v1065 = vpop.permute.xlu0 %1064
    %1066 = vrot.lane.b32.xlu0 %v943, 1
    %v1067 = vpop.permute.xlu0 %1066
    %1068 = vrot.lane.b32.xlu0 %v951, 1
    %v1069 = vpop.permute.xlu0 %1068
    %1070 = vrot.lane.b32.xlu0 %v952, 1
    %v1071 = vpop.permute.xlu0 %1070
    %vm1072 = vcmask 7168
    %v1073 = vsel %vm1072, %v1053, %v1055
    %v1074 = vsel %vm1072, %v1057, %v1059
    %v1075 = vsel %vm1072, %v1061, %v1063
    %v1076 = vsel %vm1072, %v1065, %v1067
    %v1077 = vsel %vm1072, %v1069, %v1071
    %v1083 = vsel %vm1021, %v1073, 0.0
    %v1084 = vsel %vm1021, %v1074, 0.0
    %v1085 = vadd.f32 %v1083, %v1084
    %v1086 = vsel %vm1021, %v1075, 0.0
    %v1087 = vadd.f32 %v1085, %v1086
    %v1088 = vsel %vm1021, %v1076, 0.0
    %v1089 = vadd.f32 %v1087, %v1088
    %v1090 = vsel %vm1029, %v1077, 0.0
    %v1091 = vadd.f32 %v1089, %v1090
    %1092 = vadd.xlane.f32.xlu0 %v1091
    %v1093 = vpop.xlane.xlu0 %1092
    %v1094 = vrot.slane %v1093, 4
    %v1095 = vadd.f32 %v1093, %v1094
    %v1096 = vrot.slane %v1095, 2
    %v1097 = vadd.f32 %v1095, %v1096
    %v1098 = vrot.slane %v1097, 1
    %v1099 = vadd.f32 %v1097, %v1098
    %s1100 = vtos %v1099
    %s1101 = sadd.f32 %s1041, %s1100
    %s1102 = sadd.f32 %s509, %s1101
    %v1103 = vmax.f32 %v863, 0.0
    %v1104 = vmax.f32 %v864, 0.0
    %v1105 = vmax.f32 %v865, 0.0
    %v1106 = vmax.f32 %v866, 0.0
    %v1107 = vmax.f32 %v867, 0.0
    %v1108 = vmax.f32 %v868, 0.0
    %v1109 = vmax.f32 %v869, 0.0
    %v1110 = vmax.f32 %v870, 0.0
    %v1111 = vmax.f32 %v871, 0.0
    %v1112 = vmax.f32 %v872, 0.0
    %v1113 = vmax.f32 %v873, 0.0
    %v1114 = vmax.f32 %v874, 0.0
    %v1115 = vmax.f32 %v875, 0.0
    %v1116 = vmax.f32 %v876, 0.0
    %v1117 = vmax.f32 %v877, 0.0
    %v1118 = vmax.f32 %v878, 0.0
    %v1119 = vmax.f32 %v879, 0.0
    %v1120 = vmax.f32 %v880, 0.0
    %v1121 = vmax.f32 %v881, 0.0
    %v1122 = vmax.f32 %v882, 0.0
    %v1123 = vmax.f32 %v883, 0.0
    %v1124 = vmax.f32 %v884, 0.0
    %v1125 = vmax.f32 %v885, 0.0
    %v1126 = vmax.f32 %v886, 0.0
    %v1127 = vmax.f32 %v887, 0.0
    %v1128 = vmax.f32 %v888, 0.0
    %v1129 = vmax.f32 %v889, 0.0
    %v1130 = vmax.f32 %v890, 0.0
    %v1131 = vmax.f32 %v891, 0.0
    %v1132 = vmax.f32 %v892, 0.0
    %v1133 = vmax.f32 %v893, 0.0
    %v1134 = vmax.f32 %v894, 0.0
    %v1135 = vmax.f32 %v895, 0.0
    %v1136 = vmax.f32 %v896, 0.0
    %v1137 = vmax.f32 %v897, 0.0
    %v1138 = vmax.f32 %v898, 0.0
    %v1139 = vmax.f32 %v899, 0.0
    %v1140 = vmax.f32 %v900, 0.0
    %v1141 = vmax.f32 %v901, 0.0
    %v1142 = vmax.f32 %v902, 0.0
    %v1143 = vmax.f32 %v903, 0.0
    %v1144 = vmax.f32 %v904, 0.0
    %v1145 = vmax.f32 %v905, 0.0
    %v1146 = vmax.f32 %v906, 0.0
    %v1147 = vmax.f32 %v907, 0.0
    %v1148 = vadd.f32 %v1103, %v1104
    %v1149 = vadd.f32 %v1148, %v1105
    %v1150 = vadd.f32 %v1149, %v1106
    %v1151 = vadd.f32 %v1150, %v1107
    %v1152 = vadd.f32 %v1151, %v1108
    %v1153 = vadd.f32 %v1152, %v1109
    %v1154 = vadd.f32 %v1153, %v1110
    %v1155 = vsel %vm960, %v1111, 0.0
    %v1156 = vadd.f32 %v1154, %v1155
    %v1157 = vadd.f32 %v1156, %v1112
    %v1158 = vadd.f32 %v1157, %v1113
    %v1159 = vadd.f32 %v1158, %v1114
    %v1160 = vadd.f32 %v1159, %v1115
    %v1161 = vadd.f32 %v1160, %v1116
    %v1162 = vadd.f32 %v1161, %v1117
    %v1163 = vadd.f32 %v1162, %v1118
    %v1164 = vadd.f32 %v1163, %v1119
    %v1165 = vsel %vm960, %v1120, 0.0
    %v1166 = vadd.f32 %v1164, %v1165
    %v1167 = vadd.f32 %v1166, %v1121
    %v1168 = vadd.f32 %v1167, %v1122
    %v1169 = vadd.f32 %v1168, %v1123
    %v1170 = vadd.f32 %v1169, %v1124
    %v1171 = vadd.f32 %v1170, %v1125
    %v1172 = vadd.f32 %v1171, %v1126
    %v1173 = vadd.f32 %v1172, %v1127
    %v1174 = vadd.f32 %v1173, %v1128
    %v1175 = vsel %vm960, %v1129, 0.0
    %v1176 = vadd.f32 %v1174, %v1175
    %v1177 = vadd.f32 %v1176, %v1130
    %v1178 = vadd.f32 %v1177, %v1131
    %v1179 = vadd.f32 %v1178, %v1132
    %v1180 = vadd.f32 %v1179, %v1133
    %v1181 = vadd.f32 %v1180, %v1134
    %v1182 = vadd.f32 %v1181, %v1135
    %v1183 = vadd.f32 %v1182, %v1136
    %v1184 = vadd.f32 %v1183, %v1137
    %v1185 = vsel %vm960, %v1138, 0.0
    %v1186 = vadd.f32 %v1184, %v1185
    %v1187 = vsel %vm480, %v1139, 0.0
    %v1188 = vadd.f32 %v1186, %v1187
    %v1189 = vsel %vm480, %v1140, 0.0
    %v1190 = vadd.f32 %v1188, %v1189
    %v1191 = vsel %vm480, %v1141, 0.0
    %v1192 = vadd.f32 %v1190, %v1191
    %v1193 = vsel %vm480, %v1142, 0.0
    %v1194 = vadd.f32 %v1192, %v1193
    %v1195 = vsel %vm480, %v1143, 0.0
    %v1196 = vadd.f32 %v1194, %v1195
    %v1197 = vsel %vm480, %v1144, 0.0
    %v1198 = vadd.f32 %v1196, %v1197
    %v1199 = vsel %vm480, %v1145, 0.0
    %v1200 = vadd.f32 %v1198, %v1199
    %v1201 = vsel %vm480, %v1146, 0.0
    %v1202 = vadd.f32 %v1200, %v1201
    %v1203 = vsel %vm1009, %v1147, 0.0
    %v1204 = vadd.f32 %v1202, %v1203
    %1205 = vadd.xlane.f32.xlu0 %v1204
    %v1206 = vpop.xlane.xlu0 %1205
    %v1207 = vrot.slane %v1206, 4
    %v1208 = vadd.f32 %v1206, %v1207
    %v1209 = vrot.slane %v1208, 2
    %v1210 = vadd.f32 %v1208, %v1209
    %v1211 = vrot.slane %v1210, 1
    %v1212 = vadd.f32 %v1210, %v1211
    %s1213 = vtos %v1212
    %s1214 = sadd.f32 %s686, %s1213
    %vm1215 = vcmask 1046528
    %v1216 = vrot.slane %v19, 1
    %v1217 = vrot.slane %v28, 1
    %v1218 = vsel %vm1215, %v1216, %v1217
    %v1219 = vrot.slane %v20, 1
    %v1220 = vrot.slane %v29, 1
    %v1221 = vsel %vm1215, %v1219, %v1220
    %v1222 = vrot.slane %v21, 1
    %v1223 = vrot.slane %v30, 1
    %v1224 = vsel %vm1215, %v1222, %v1223
    %v1225 = vrot.slane %v22, 1
    %v1226 = vrot.slane %v31, 1
    %v1227 = vsel %vm1215, %v1225, %v1226
    %v1228 = vrot.slane %v23, 1
    %v1229 = vrot.slane %v32, 1
    %v1230 = vsel %vm1215, %v1228, %v1229
    %v1231 = vrot.slane %v24, 1
    %v1232 = vrot.slane %v33, 1
    %v1233 = vsel %vm1215, %v1231, %v1232
    %v1234 = vrot.slane %v25, 1
    %v1235 = vrot.slane %v34, 1
    %v1236 = vsel %vm1215, %v1234, %v1235
    %v1237 = vrot.slane %v26, 1
    %v1238 = vrot.slane %v35, 1
    %v1239 = vsel %vm1215, %v1237, %v1238
    %v1240 = vrot.slane %v27, 1
    %v1241 = vrot.slane %v36, 1
    %v1242 = vsel %vm1215, %v1240, %v1241
    %v1243 = vrot.slane %v37, 1
    %v1244 = vsel %vm1215, %v1217, %v1243
    %v1245 = vrot.slane %v38, 1
    %v1246 = vsel %vm1215, %v1220, %v1245
    %v1247 = vrot.slane %v39, 1
    %v1248 = vsel %vm1215, %v1223, %v1247
    %v1249 = vrot.slane %v40, 1
    %v1250 = vsel %vm1215, %v1226, %v1249
    %v1251 = vrot.slane %v41, 1
    %v1252 = vsel %vm1215, %v1229, %v1251
    %v1253 = vrot.slane %v42, 1
    %v1254 = vsel %vm1215, %v1232, %v1253
    %v1255 = vrot.slane %v43, 1
    %v1256 = vsel %vm1215, %v1235, %v1255
    %v1257 = vrot.slane %v44, 1
    %v1258 = vsel %vm1215, %v1238, %v1257
    %v1259 = vrot.slane %v45, 1
    %v1260 = vsel %vm1215, %v1241, %v1259
    %v1261 = vrot.slane %v46, 1
    %v1262 = vsel %vm1215, %v1243, %v1261
    %v1263 = vrot.slane %v47, 1
    %v1264 = vsel %vm1215, %v1245, %v1263
    %v1265 = vrot.slane %v48, 1
    %v1266 = vsel %vm1215, %v1247, %v1265
    %v1267 = vrot.slane %v49, 1
    %v1268 = vsel %vm1215, %v1249, %v1267
    %v1269 = vrot.slane %v50, 1
    %v1270 = vsel %vm1215, %v1251, %v1269
    %v1271 = vrot.slane %v51, 1
    %v1272 = vsel %vm1215, %v1253, %v1271
    %v1273 = vrot.slane %v52, 1
    %v1274 = vsel %vm1215, %v1255, %v1273
    %v1275 = vrot.slane %v53, 1
    %v1276 = vsel %vm1215, %v1257, %v1275
    %v1277 = vrot.slane %v54, 1
    %v1278 = vsel %vm1215, %v1259, %v1277
    %v1279 = vrot.slane %v55, 1
    %v1280 = vsel %vm1215, %v1261, %v1279
    %v1281 = vrot.slane %v56, 1
    %v1282 = vsel %vm1215, %v1263, %v1281
    %v1283 = vrot.slane %v57, 1
    %v1284 = vsel %vm1215, %v1265, %v1283
    %v1285 = vrot.slane %v58, 1
    %v1286 = vsel %vm1215, %v1267, %v1285
    %v1287 = vrot.slane %v59, 1
    %v1288 = vsel %vm1215, %v1269, %v1287
    %v1289 = vrot.slane %v60, 1
    %v1290 = vsel %vm1215, %v1271, %v1289
    %v1291 = vrot.slane %v61, 1
    %v1292 = vsel %vm1215, %v1273, %v1291
    %v1293 = vrot.slane %v62, 1
    %v1294 = vsel %vm1215, %v1275, %v1293
    %v1295 = vrot.slane %v63, 1
    %v1296 = vsel %vm1215, %v1277, %v1295
    %v1333 = vsub.f32 %v19, %v1218
    %v1334 = vsub.f32 %v20, %v1221
    %v1335 = vsub.f32 %v21, %v1224
    %v1336 = vsub.f32 %v22, %v1227
    %v1337 = vsub.f32 %v23, %v1230
    %v1338 = vsub.f32 %v24, %v1233
    %v1339 = vsub.f32 %v25, %v1236
    %v1340 = vsub.f32 %v26, %v1239
    %v1341 = vsub.f32 %v27, %v1242
    %v1342 = vsub.f32 %v28, %v1244
    %v1343 = vsub.f32 %v29, %v1246
    %v1344 = vsub.f32 %v30, %v1248
    %v1345 = vsub.f32 %v31, %v1250
    %v1346 = vsub.f32 %v32, %v1252
    %v1347 = vsub.f32 %v33, %v1254
    %v1348 = vsub.f32 %v34, %v1256
    %v1349 = vsub.f32 %v35, %v1258
    %v1350 = vsub.f32 %v36, %v1260
    %v1351 = vsub.f32 %v37, %v1262
    %v1352 = vsub.f32 %v38, %v1264
    %v1353 = vsub.f32 %v39, %v1266
    %v1354 = vsub.f32 %v40, %v1268
    %v1355 = vsub.f32 %v41, %v1270
    %v1356 = vsub.f32 %v42, %v1272
    %v1357 = vsub.f32 %v43, %v1274
    %v1358 = vsub.f32 %v44, %v1276
    %v1359 = vsub.f32 %v45, %v1278
    %v1360 = vsub.f32 %v46, %v1280
    %v1361 = vsub.f32 %v47, %v1282
    %v1362 = vsub.f32 %v48, %v1284
    %v1363 = vsub.f32 %v49, %v1286
    %v1364 = vsub.f32 %v50, %v1288
    %v1365 = vsub.f32 %v51, %v1290
    %v1366 = vsub.f32 %v52, %v1292
    %v1367 = vsub.f32 %v53, %v1294
    %v1368 = vsub.f32 %v54, %v1296
    %v1369 = vmul.f32 %v1333, %v1333
    %v1370 = vmul.f32 %v1334, %v1334
    %v1371 = vmul.f32 %v1335, %v1335
    %v1372 = vmul.f32 %v1336, %v1336
    %v1373 = vmul.f32 %v1337, %v1337
    %v1374 = vmul.f32 %v1338, %v1338
    %v1375 = vmul.f32 %v1339, %v1339
    %v1376 = vmul.f32 %v1340, %v1340
    %v1377 = vmul.f32 %v1341, %v1341
    %v1378 = vmul.f32 %v1342, %v1342
    %v1379 = vmul.f32 %v1343, %v1343
    %v1380 = vmul.f32 %v1344, %v1344
    %v1381 = vmul.f32 %v1345, %v1345
    %v1382 = vmul.f32 %v1346, %v1346
    %v1383 = vmul.f32 %v1347, %v1347
    %v1384 = vmul.f32 %v1348, %v1348
    %v1385 = vmul.f32 %v1349, %v1349
    %v1386 = vmul.f32 %v1350, %v1350
    %v1387 = vmul.f32 %v1351, %v1351
    %v1388 = vmul.f32 %v1352, %v1352
    %v1389 = vmul.f32 %v1353, %v1353
    %v1390 = vmul.f32 %v1354, %v1354
    %v1391 = vmul.f32 %v1355, %v1355
    %v1392 = vmul.f32 %v1356, %v1356
    %v1393 = vmul.f32 %v1357, %v1357
    %v1394 = vmul.f32 %v1358, %v1358
    %v1395 = vmul.f32 %v1359, %v1359
    %v1396 = vmul.f32 %v1360, %v1360
    %v1397 = vmul.f32 %v1361, %v1361
    %v1398 = vmul.f32 %v1362, %v1362
    %v1399 = vmul.f32 %v1363, %v1363
    %v1400 = vmul.f32 %v1364, %v1364
    %v1401 = vmul.f32 %v1365, %v1365
    %v1402 = vmul.f32 %v1366, %v1366
    %v1403 = vmul.f32 %v1367, %v1367
    %v1404 = vmul.f32 %v1368, %v1368
    %v1405 = vadd.f32 %v1369, %v1370
    %v1406 = vadd.f32 %v1405, %v1371
    %v1407 = vadd.f32 %v1406, %v1372
    %v1408 = vadd.f32 %v1407, %v1373
    %v1409 = vadd.f32 %v1408, %v1374
    %v1410 = vadd.f32 %v1409, %v1375
    %v1411 = vadd.f32 %v1410, %v1376
    %vm1412 = vcmask 531456
    %v1413 = vsel %vm1412, %v1377, 0.0
    %v1414 = vadd.f32 %v1411, %v1413
    %v1415 = vadd.f32 %v1414, %v1378
    %v1416 = vadd.f32 %v1415, %v1379
    %v1417 = vadd.f32 %v1416, %v1380
    %v1418 = vadd.f32 %v1417, %v1381
    %v1419 = vadd.f32 %v1418, %v1382
    %v1420 = vadd.f32 %v1419, %v1383
    %v1421 = vadd.f32 %v1420, %v1384
    %v1422 = vadd.f32 %v1421, %v1385
    %v1423 = vsel %vm1412, %v1386, 0.0
    %v1424 = vadd.f32 %v1422, %v1423
    %v1425 = vadd.f32 %v1424, %v1387
    %v1426 = vadd.f32 %v1425, %v1388
    %v1427 = vadd.f32 %v1426, %v1389
    %v1428 = vadd.f32 %v1427, %v1390
    %v1429 = vadd.f32 %v1428, %v1391
    %v1430 = vadd.f32 %v1429, %v1392
    %v1431 = vadd.f32 %v1430, %v1393
    %v1432 = vadd.f32 %v1431, %v1394
    %v1433 = vsel %vm1412, %v1395, 0.0
    %v1434 = vadd.f32 %v1432, %v1433
    %v1435 = vadd.f32 %v1434, %v1396
    %v1436 = vadd.f32 %v1435, %v1397
    %v1437 = vadd.f32 %v1436, %v1398
    %v1438 = vadd.f32 %v1437, %v1399
    %v1439 = vadd.f32 %v1438, %v1400
    %v1440 = vadd.f32 %v1439, %v1401
    %v1441 = vadd.f32 %v1440, %v1402
    %v1442 = vadd.f32 %v1441, %v1403
    %v1443 = vsel %vm1412, %v1404, 0.0
    %v1444 = vadd.f32 %v1442, %v1443
    %1445 = vadd.xlane.f32.xlu0 %v1444
    %v1446 = vpop.xlane.xlu0 %1445
    %v1447 = vrot.slane %v1446, 4
    %v1448 = vadd.f32 %v1446, %v1447
    %v1449 = vrot.slane %v1448, 2
    %v1450 = vadd.f32 %v1448, %v1449
    %v1451 = vrot.slane %v1450, 1
    %v1452 = vadd.f32 %v1450, %v1451
    %s1453 = vtos %v1452
    %v1454 = vsel %vm480, %v1369, 0.0
    %v1455 = vsel %vm480, %v1370, 0.0
    %v1456 = vadd.f32 %v1454, %v1455
    %v1457 = vsel %vm480, %v1371, 0.0
    %v1458 = vadd.f32 %v1456, %v1457
    %v1459 = vsel %vm480, %v1372, 0.0
    %v1460 = vadd.f32 %v1458, %v1459
    %v1461 = vsel %vm480, %v1373, 0.0
    %v1462 = vadd.f32 %v1460, %v1461
    %v1463 = vsel %vm480, %v1374, 0.0
    %v1464 = vadd.f32 %v1462, %v1463
    %v1465 = vsel %vm480, %v1375, 0.0
    %v1466 = vadd.f32 %v1464, %v1465
    %v1467 = vsel %vm480, %v1376, 0.0
    %v1468 = vadd.f32 %v1466, %v1467
    %vm1469 = vcmask 524288
    %v1470 = vsel %vm1469, %v1377, 0.0
    %v1471 = vadd.f32 %v1468, %v1470
    %1472 = vadd.xlane.f32.xlu0 %v1471
    %v1473 = vpop.xlane.xlu0 %1472
    %v1474 = vrot.slane %v1473, 4
    %v1475 = vadd.f32 %v1473, %v1474
    %v1476 = vrot.slane %v1475, 2
    %v1477 = vadd.f32 %v1475, %v1476
    %v1478 = vrot.slane %v1477, 1
    %v1479 = vadd.f32 %v1477, %v1478
    %s1480 = vtos %v1479
    %s1481 = sadd.f32 %s1453, %s1480
    %v1491 = vrot.slane %v1396, 7
    %v1492 = vrot.slane %v1397, 7
    %v1493 = vrot.slane %v1398, 7
    %v1494 = vrot.slane %v1399, 7
    %v1495 = vrot.slane %v1400, 7
    %v1496 = vrot.slane %v1401, 7
    %v1497 = vrot.slane %v1402, 7
    %v1498 = vrot.slane %v1403, 7
    %v1499 = vrot.slane %v1404, 7
    %v1509 = vsel %vm480, %v1491, 0.0
    %v1510 = vsel %vm480, %v1492, 0.0
    %v1511 = vadd.f32 %v1509, %v1510
    %v1512 = vsel %vm480, %v1493, 0.0
    %v1513 = vadd.f32 %v1511, %v1512
    %v1514 = vsel %vm480, %v1494, 0.0
    %v1515 = vadd.f32 %v1513, %v1514
    %v1516 = vsel %vm480, %v1495, 0.0
    %v1517 = vadd.f32 %v1515, %v1516
    %v1518 = vsel %vm480, %v1496, 0.0
    %v1519 = vadd.f32 %v1517, %v1518
    %v1520 = vsel %vm480, %v1497, 0.0
    %v1521 = vadd.f32 %v1519, %v1520
    %v1522 = vsel %vm480, %v1498, 0.0
    %v1523 = vadd.f32 %v1521, %v1522
    %v1524 = vsel %vm1469, %v1499, 0.0
    %v1525 = vadd.f32 %v1523, %v1524
    %1526 = vadd.xlane.f32.xlu0 %v1525
    %v1527 = vpop.xlane.xlu0 %1526
    %v1528 = vrot.slane %v1527, 4
    %v1529 = vadd.f32 %v1527, %v1528
    %v1530 = vrot.slane %v1529, 2
    %v1531 = vadd.f32 %v1529, %v1530
    %v1532 = vrot.slane %v1531, 1
    %v1533 = vadd.f32 %v1531, %v1532
    %s1534 = vtos %v1533
    %s1535 = sadd.f32 %s1481, %s1534
    %s1536 = sadd.f32 %s1102, %s1535
    %v1537 = vmax.f32 %v1333, 0.0
    %v1538 = vmax.f32 %v1334, 0.0
    %v1539 = vmax.f32 %v1335, 0.0
    %v1540 = vmax.f32 %v1336, 0.0
    %v1541 = vmax.f32 %v1337, 0.0
    %v1542 = vmax.f32 %v1338, 0.0
    %v1543 = vmax.f32 %v1339, 0.0
    %v1544 = vmax.f32 %v1340, 0.0
    %v1545 = vmax.f32 %v1341, 0.0
    %v1546 = vmax.f32 %v1342, 0.0
    %v1547 = vmax.f32 %v1343, 0.0
    %v1548 = vmax.f32 %v1344, 0.0
    %v1549 = vmax.f32 %v1345, 0.0
    %v1550 = vmax.f32 %v1346, 0.0
    %v1551 = vmax.f32 %v1347, 0.0
    %v1552 = vmax.f32 %v1348, 0.0
    %v1553 = vmax.f32 %v1349, 0.0
    %v1554 = vmax.f32 %v1350, 0.0
    %v1555 = vmax.f32 %v1351, 0.0
    %v1556 = vmax.f32 %v1352, 0.0
    %v1557 = vmax.f32 %v1353, 0.0
    %v1558 = vmax.f32 %v1354, 0.0
    %v1559 = vmax.f32 %v1355, 0.0
    %v1560 = vmax.f32 %v1356, 0.0
    %v1561 = vmax.f32 %v1357, 0.0
    %v1562 = vmax.f32 %v1358, 0.0
    %v1563 = vmax.f32 %v1359, 0.0
    %v1564 = vmax.f32 %v1360, 0.0
    %v1565 = vmax.f32 %v1361, 0.0
    %v1566 = vmax.f32 %v1362, 0.0
    %v1567 = vmax.f32 %v1363, 0.0
    %v1568 = vmax.f32 %v1364, 0.0
    %v1569 = vmax.f32 %v1365, 0.0
    %v1570 = vmax.f32 %v1366, 0.0
    %v1571 = vmax.f32 %v1367, 0.0
    %v1572 = vmax.f32 %v1368, 0.0
    %v1573 = vadd.f32 %v1537, %v1538
    %v1574 = vadd.f32 %v1573, %v1539
    %v1575 = vadd.f32 %v1574, %v1540
    %v1576 = vadd.f32 %v1575, %v1541
    %v1577 = vadd.f32 %v1576, %v1542
    %v1578 = vadd.f32 %v1577, %v1543
    %v1579 = vadd.f32 %v1578, %v1544
    %v1580 = vsel %vm1412, %v1545, 0.0
    %v1581 = vadd.f32 %v1579, %v1580
    %v1582 = vadd.f32 %v1581, %v1546
    %v1583 = vadd.f32 %v1582, %v1547
    %v1584 = vadd.f32 %v1583, %v1548
    %v1585 = vadd.f32 %v1584, %v1549
    %v1586 = vadd.f32 %v1585, %v1550
    %v1587 = vadd.f32 %v1586, %v1551
    %v1588 = vadd.f32 %v1587, %v1552
    %v1589 = vadd.f32 %v1588, %v1553
    %v1590 = vsel %vm1412, %v1554, 0.0
    %v1591 = vadd.f32 %v1589, %v1590
    %v1592 = vadd.f32 %v1591, %v1555
    %v1593 = vadd.f32 %v1592, %v1556
    %v1594 = vadd.f32 %v1593, %v1557
    %v1595 = vadd.f32 %v1594, %v1558
    %v1596 = vadd.f32 %v1595, %v1559
    %v1597 = vadd.f32 %v1596, %v1560
    %v1598 = vadd.f32 %v1597, %v1561
    %v1599 = vadd.f32 %v1598, %v1562
    %v1600 = vsel %vm1412, %v1563, 0.0
    %v1601 = vadd.f32 %v1599, %v1600
    %v1602 = vadd.f32 %v1601, %v1564
    %v1603 = vadd.f32 %v1602, %v1565
    %v1604 = vadd.f32 %v1603, %v1566
    %v1605 = vadd.f32 %v1604, %v1567
    %v1606 = vadd.f32 %v1605, %v1568
    %v1607 = vadd.f32 %v1606, %v1569
    %v1608 = vadd.f32 %v1607, %v1570
    %v1609 = vadd.f32 %v1608, %v1571
    %v1610 = vsel %vm1412, %v1572, 0.0
    %v1611 = vadd.f32 %v1609, %v1610
    %1612 = vadd.xlane.f32.xlu0 %v1611
    %v1613 = vpop.xlane.xlu0 %1612
    %v1614 = vrot.slane %v1613, 4
    %v1615 = vadd.f32 %v1613, %v1614
    %v1616 = vrot.slane %v1615, 2
    %v1617 = vadd.f32 %v1615, %v1616
    %v1618 = vrot.slane %v1617, 1
    %v1619 = vadd.f32 %v1617, %v1618
    %s1620 = vtos %v1619
    %s1621 = sadd.f32 %s1214, %s1620
    %s1622 = scalar_lea.vmem %s0, 360
    %v1623 = vld [vmem:[%s1622] sm:$0xff]
    %v1624 = vld [vmem:[%s1622 + $0x8] sm:$0xff]
    %v1625 = vld [vmem:[%s1622 + $0x10] sm:$0xff]
    %v1626 = vld [vmem:[%s1622 + $0x18] sm:$0xff]
    %v1627 = vld [vmem:[%s1622 + $0x20] sm:$0xff]
    %v1628 = vld [vmem:[%s1622 + $0x28] sm:$0xff]
    %v1629 = vld [vmem:[%s1622 + $0x30] sm:$0xff]
    %v1630 = vld [vmem:[%s1622 + $0x38] sm:$0xff]
    %v1631 = vld [vmem:[%s1622 + $0x40] sm:$0xff]
    %v1632 = vld [vmem:[%s1622 + $0x48] sm:$0xff]
    %v1633 = vld [vmem:[%s1622 + $0x50] sm:$0xff]
    %v1634 = vld [vmem:[%s1622 + $0x58] sm:$0xff]
    %v1635 = vld [vmem:[%s1622 + $0x60] sm:$0xff]
    %v1636 = vld [vmem:[%s1622 + $0x68] sm:$0xff]
    %v1637 = vld [vmem:[%s1622 + $0x70] sm:$0xff]
    %v1638 = vld [vmem:[%s1622 + $0x78] sm:$0xff]
    %v1639 = vld [vmem:[%s1622 + $0x80] sm:$0xff]
    %v1640 = vld [vmem:[%s1622 + $0x88] sm:$0xff]
    %v1641 = vld [vmem:[%s1622 + $0x90] sm:$0xff]
    %v1642 = vld [vmem:[%s1622 + $0x98] sm:$0xff]
    %v1643 = vld [vmem:[%s1622 + $0xa0] sm:$0xff]
    %v1644 = vld [vmem:[%s1622 + $0xa8] sm:$0xff]
    %v1645 = vld [vmem:[%s1622 + $0xb0] sm:$0xff]
    %v1646 = vld [vmem:[%s1622 + $0xb8] sm:$0xff]
    %v1647 = vld [vmem:[%s1622 + $0xc0] sm:$0xff]
    %v1648 = vld [vmem:[%s1622 + $0xc8] sm:$0xff]
    %v1649 = vld [vmem:[%s1622 + $0xd0] sm:$0xff]
    %v1650 = vld [vmem:[%s1622 + $0xd8] sm:$0xff]
    %v1651 = vld [vmem:[%s1622 + $0xe0] sm:$0xff]
    %v1652 = vld [vmem:[%s1622 + $0xe8] sm:$0xff]
    %v1653 = vld [vmem:[%s1622 + $0xf0] sm:$0xff]
    %v1654 = vld [vmem:[%s1622 + $0xf8] sm:$0xff]
    %v1655 = vld [vmem:[%s1622 + $0x100] sm:$0xff]
    %v1656 = vld [vmem:[%s1622 + $0x108] sm:$0xff]
    %v1657 = vld [vmem:[%s1622 + $0x110] sm:$0xff]
    %v1658 = vld [vmem:[%s1622 + $0x118] sm:$0xff]
    %v1659 = vld [vmem:[%s1622 + $0x120] sm:$0x1]
    %v1660 = vld [vmem:[%s1622 + $0x128] sm:$0x1]
    %v1661 = vld [vmem:[%s1622 + $0x130] sm:$0x1]
    %v1662 = vld [vmem:[%s1622 + $0x138] sm:$0x1]
    %v1663 = vld [vmem:[%s1622 + $0x140] sm:$0x1]
    %v1664 = vld [vmem:[%s1622 + $0x148] sm:$0x1]
    %v1665 = vld [vmem:[%s1622 + $0x150] sm:$0x1]
    %v1666 = vld [vmem:[%s1622 + $0x158] sm:$0x1]
    %v1667 = vld [vmem:[%s1622 + $0x160] sm:$0x1]
    %1713 = vrot.lane.b32.xlu0 %v1623, 127
    %v1714 = vpop.permute.xlu0 %1713
    %1715 = vrot.lane.b32.xlu0 %v1624, 127
    %v1716 = vpop.permute.xlu0 %1715
    %1717 = vrot.lane.b32.xlu0 %v1625, 127
    %v1718 = vpop.permute.xlu0 %1717
    %1719 = vrot.lane.b32.xlu0 %v1626, 127
    %v1720 = vpop.permute.xlu0 %1719
    %1721 = vrot.lane.b32.xlu0 %v1627, 127
    %v1722 = vpop.permute.xlu0 %1721
    %1723 = vrot.lane.b32.xlu0 %v1628, 127
    %v1724 = vpop.permute.xlu0 %1723
    %1725 = vrot.lane.b32.xlu0 %v1629, 127
    %v1726 = vpop.permute.xlu0 %1725
    %1727 = vrot.lane.b32.xlu0 %v1630, 127
    %v1728 = vpop.permute.xlu0 %1727
    %1729 = vrot.lane.b32.xlu0 %v1631, 127
    %v1730 = vpop.permute.xlu0 %1729
    %1731 = vrot.lane.b32.xlu0 %v1632, 127
    %v1732 = vpop.permute.xlu0 %1731
    %1733 = vrot.lane.b32.xlu0 %v1633, 127
    %v1734 = vpop.permute.xlu0 %1733
    %1735 = vrot.lane.b32.xlu0 %v1634, 127
    %v1736 = vpop.permute.xlu0 %1735
    %1737 = vrot.lane.b32.xlu0 %v1635, 127
    %v1738 = vpop.permute.xlu0 %1737
    %1739 = vrot.lane.b32.xlu0 %v1636, 127
    %v1740 = vpop.permute.xlu0 %1739
    %1741 = vrot.lane.b32.xlu0 %v1637, 127
    %v1742 = vpop.permute.xlu0 %1741
    %1743 = vrot.lane.b32.xlu0 %v1638, 127
    %v1744 = vpop.permute.xlu0 %1743
    %1745 = vrot.lane.b32.xlu0 %v1639, 127
    %v1746 = vpop.permute.xlu0 %1745
    %1747 = vrot.lane.b32.xlu0 %v1640, 127
    %v1748 = vpop.permute.xlu0 %1747
    %1749 = vrot.lane.b32.xlu0 %v1641, 127
    %v1750 = vpop.permute.xlu0 %1749
    %1751 = vrot.lane.b32.xlu0 %v1642, 127
    %v1752 = vpop.permute.xlu0 %1751
    %1753 = vrot.lane.b32.xlu0 %v1643, 127
    %v1754 = vpop.permute.xlu0 %1753
    %1755 = vrot.lane.b32.xlu0 %v1644, 127
    %v1756 = vpop.permute.xlu0 %1755
    %1757 = vrot.lane.b32.xlu0 %v1645, 127
    %v1758 = vpop.permute.xlu0 %1757
    %1759 = vrot.lane.b32.xlu0 %v1646, 127
    %v1760 = vpop.permute.xlu0 %1759
    %1761 = vrot.lane.b32.xlu0 %v1647, 127
    %v1762 = vpop.permute.xlu0 %1761
    %1763 = vrot.lane.b32.xlu0 %v1648, 127
    %v1764 = vpop.permute.xlu0 %1763
    %1765 = vrot.lane.b32.xlu0 %v1649, 127
    %v1766 = vpop.permute.xlu0 %1765
    %1767 = vrot.lane.b32.xlu0 %v1650, 127
    %v1768 = vpop.permute.xlu0 %1767
    %1769 = vrot.lane.b32.xlu0 %v1651, 127
    %v1770 = vpop.permute.xlu0 %1769
    %1771 = vrot.lane.b32.xlu0 %v1652, 127
    %v1772 = vpop.permute.xlu0 %1771
    %1773 = vrot.lane.b32.xlu0 %v1653, 127
    %v1774 = vpop.permute.xlu0 %1773
    %1775 = vrot.lane.b32.xlu0 %v1654, 127
    %v1776 = vpop.permute.xlu0 %1775
    %1777 = vrot.lane.b32.xlu0 %v1655, 127
    %v1778 = vpop.permute.xlu0 %1777
    %1779 = vrot.lane.b32.xlu0 %v1656, 127
    %v1780 = vpop.permute.xlu0 %1779
    %1781 = vrot.lane.b32.xlu0 %v1657, 127
    %v1782 = vpop.permute.xlu0 %1781
    %1783 = vrot.lane.b32.xlu0 %v1658, 127
    %v1784 = vpop.permute.xlu0 %1783
    %1785 = vrot.lane.b32.xlu0 %v1659, 127
    %v1786 = vpop.permute.xlu0 %1785
    %1787 = vrot.lane.b32.xlu0 %v1660, 127
    %v1788 = vpop.permute.xlu0 %1787
    %1789 = vrot.lane.b32.xlu0 %v1661, 127
    %v1790 = vpop.permute.xlu0 %1789
    %1791 = vrot.lane.b32.xlu0 %v1662, 127
    %v1792 = vpop.permute.xlu0 %1791
    %1793 = vrot.lane.b32.xlu0 %v1663, 127
    %v1794 = vpop.permute.xlu0 %1793
    %1795 = vrot.lane.b32.xlu0 %v1664, 127
    %v1796 = vpop.permute.xlu0 %1795
    %1797 = vrot.lane.b32.xlu0 %v1665, 127
    %v1798 = vpop.permute.xlu0 %1797
    %1799 = vrot.lane.b32.xlu0 %v1666, 127
    %v1800 = vpop.permute.xlu0 %1799
    %1801 = vrot.lane.b32.xlu0 %v1667, 127
    %v1802 = vpop.permute.xlu0 %1801
    %v1803 = vsel %vm199, %v1714, %v1716
    %v1804 = vsel %vm199, %v1716, %v1718
    %v1805 = vsel %vm199, %v1718, %v1720
    %v1806 = vsel %vm199, %v1720, %v1722
    %v1807 = vsel %vm199, %v1722, %v1724
    %v1808 = vsel %vm199, %v1724, %v1726
    %v1809 = vsel %vm199, %v1726, %v1728
    %v1810 = vsel %vm199, %v1728, %v1730
    %v1811 = vsel %vm199, %v1732, %v1734
    %v1812 = vsel %vm199, %v1734, %v1736
    %v1813 = vsel %vm199, %v1736, %v1738
    %v1814 = vsel %vm199, %v1738, %v1740
    %v1815 = vsel %vm199, %v1740, %v1742
    %v1816 = vsel %vm199, %v1742, %v1744
    %v1817 = vsel %vm199, %v1744, %v1746
    %v1818 = vsel %vm199, %v1746, %v1748
    %v1819 = vsel %vm199, %v1750, %v1752
    %v1820 = vsel %vm199, %v1752, %v1754
    %v1821 = vsel %vm199, %v1754, %v1756
    %v1822 = vsel %vm199, %v1756, %v1758
    %v1823 = vsel %vm199, %v1758, %v1760
    %v1824 = vsel %vm199, %v1760, %v1762
    %v1825 = vsel %vm199, %v1762, %v1764
    %v1826 = vsel %vm199, %v1764, %v1766
    %v1827 = vsel %vm199, %v1768, %v1770
    %v1828 = vsel %vm199, %v1770, %v1772
    %v1829 = vsel %vm199, %v1772, %v1774
    %v1830 = vsel %vm199, %v1774, %v1776
    %v1831 = vsel %vm199, %v1776, %v1778
    %v1832 = vsel %vm199, %v1778, %v1780
    %v1833 = vsel %vm199, %v1780, %v1782
    %v1834 = vsel %vm199, %v1782, %v1784
    %v1835 = vsel %vm199, %v1786, %v1788
    %v1836 = vsel %vm199, %v1788, %v1790
    %v1837 = vsel %vm199, %v1790, %v1792
    %v1838 = vsel %vm199, %v1792, %v1794
    %v1839 = vsel %vm199, %v1794, %v1796
    %v1840 = vsel %vm199, %v1796, %v1798
    %v1841 = vsel %vm199, %v1798, %v1800
    %v1842 = vsel %vm199, %v1800, %v1802
    %v1888 = vsub.f32 %v1623, %v1803
    %v1889 = vsub.f32 %v1624, %v1804
    %v1890 = vsub.f32 %v1625, %v1805
    %v1891 = vsub.f32 %v1626, %v1806
    %v1892 = vsub.f32 %v1627, %v1807
    %v1893 = vsub.f32 %v1628, %v1808
    %v1894 = vsub.f32 %v1629, %v1809
    %v1895 = vsub.f32 %v1630, %v1810
    %v1896 = vsub.f32 %v1631, %v1730
    %v1897 = vsub.f32 %v1632, %v1811
    %v1898 = vsub.f32 %v1633, %v1812
    %v1899 = vsub.f32 %v1634, %v1813
    %v1900 = vsub.f32 %v1635, %v1814
    %v1901 = vsub.f32 %v1636, %v1815
    %v1902 = vsub.f32 %v1637, %v1816
    %v1903 = vsub.f32 %v1638, %v1817
    %v1904 = vsub.f32 %v1639, %v1818
    %v1905 = vsub.f32 %v1640, %v1748
    %v1906 = vsub.f32 %v1641, %v1819
    %v1907 = vsub.f32 %v1642, %v1820
    %v1908 = vsub.f32 %v1643, %v1821
    %v1909 = vsub.f32 %v1644, %v1822
    %v1910 = vsub.f32 %v1645, %v1823
    %v1911 = vsub.f32 %v1646, %v1824
    %v1912 = vsub.f32 %v1647, %v1825
    %v1913 = vsub.f32 %v1648, %v1826
    %v1914 = vsub.f32 %v1649, %v1766
    %v1915 = vsub.f32 %v1650, %v1827
    %v1916 = vsub.f32 %v1651, %v1828
    %v1917 = vsub.f32 %v1652, %v1829
    %v1918 = vsub.f32 %v1653, %v1830
    %v1919 = vsub.f32 %v1654, %v1831
    %v1920 = vsub.f32 %v1655, %v1832
    %v1921 = vsub.f32 %v1656, %v1833
    %v1922 = vsub.f32 %v1657, %v1834
    %v1923 = vsub.f32 %v1658, %v1784
    %v1924 = vsub.f32 %v1659, %v1835
    %v1925 = vsub.f32 %v1660, %v1836
    %v1926 = vsub.f32 %v1661, %v1837
    %v1927 = vsub.f32 %v1662, %v1838
    %v1928 = vsub.f32 %v1663, %v1839
    %v1929 = vsub.f32 %v1664, %v1840
    %v1930 = vsub.f32 %v1665, %v1841
    %v1931 = vsub.f32 %v1666, %v1842
    %v1932 = vsub.f32 %v1667, %v1802
    %v1933 = vmul.f32 %v1888, %v1888
    %v1934 = vmul.f32 %v1889, %v1889
    %v1935 = vmul.f32 %v1890, %v1890
    %v1936 = vmul.f32 %v1891, %v1891
    %v1937 = vmul.f32 %v1892, %v1892
    %v1938 = vmul.f32 %v1893, %v1893
    %v1939 = vmul.f32 %v1894, %v1894
    %v1940 = vmul.f32 %v1895, %v1895
    %v1941 = vmul.f32 %v1896, %v1896
    %v1942 = vmul.f32 %v1897, %v1897
    %v1943 = vmul.f32 %v1898, %v1898
    %v1944 = vmul.f32 %v1899, %v1899
    %v1945 = vmul.f32 %v1900, %v1900
    %v1946 = vmul.f32 %v1901, %v1901
    %v1947 = vmul.f32 %v1902, %v1902
    %v1948 = vmul.f32 %v1903, %v1903
    %v1949 = vmul.f32 %v1904, %v1904
    %v1950 = vmul.f32 %v1905, %v1905
    %v1951 = vmul.f32 %v1906, %v1906
    %v1952 = vmul.f32 %v1907, %v1907
    %v1953 = vmul.f32 %v1908, %v1908
    %v1954 = vmul.f32 %v1909, %v1909
    %v1955 = vmul.f32 %v1910, %v1910
    %v1956 = vmul.f32 %v1911, %v1911
    %v1957 = vmul.f32 %v1912, %v1912
    %v1958 = vmul.f32 %v1913, %v1913
    %v1959 = vmul.f32 %v1914, %v1914
    %v1960 = vmul.f32 %v1915, %v1915
    %v1961 = vmul.f32 %v1916, %v1916
    %v1962 = vmul.f32 %v1917, %v1917
    %v1963 = vmul.f32 %v1918, %v1918
    %v1964 = vmul.f32 %v1919, %v1919
    %v1965 = vmul.f32 %v1920, %v1920
    %v1966 = vmul.f32 %v1921, %v1921
    %v1967 = vmul.f32 %v1922, %v1922
    %v1968 = vmul.f32 %v1923, %v1923
    %v1969 = vmul.f32 %v1924, %v1924
    %v1970 = vmul.f32 %v1925, %v1925
    %v1971 = vmul.f32 %v1926, %v1926
    %v1972 = vmul.f32 %v1927, %v1927
    %v1973 = vmul.f32 %v1928, %v1928
    %v1974 = vmul.f32 %v1929, %v1929
    %v1975 = vmul.f32 %v1930, %v1930
    %v1976 = vmul.f32 %v1931, %v1931
    %v1977 = vmul.f32 %v1932, %v1932
    %v1978 = vmul.f32 %v1933, %v377
    %v1979 = vmul.f32 %v1934, %v378
    %v1980 = vmul.f32 %v1935, %v379
    %v1981 = vmul.f32 %v1936, %v380
    %v1982 = vmul.f32 %v1937, %v381
    %v1983 = vmul.f32 %v1938, %v382
    %v1984 = vmul.f32 %v1939, %v383
    %v1985 = vmul.f32 %v1940, %v384
    %v1986 = vmul.f32 %v1941, %v385
    %v1987 = vmul.f32 %v1942, %v377
    %v1988 = vmul.f32 %v1943, %v378
    %v1989 = vmul.f32 %v1944, %v379
    %v1990 = vmul.f32 %v1945, %v380
    %v1991 = vmul.f32 %v1946, %v381
    %v1992 = vmul.f32 %v1947, %v382
    %v1993 = vmul.f32 %v1948, %v383
    %v1994 = vmul.f32 %v1949, %v384
    %v1995 = vmul.f32 %v1950, %v385
    %v1996 = vmul.f32 %v1951, %v377
    %v1997 = vmul.f32 %v1952, %v378
    %v1998 = vmul.f32 %v1953, %v379
    %v1999 = vmul.f32 %v1954, %v380
    %v2000 = vmul.f32 %v1955, %v381
    %v2001 = vmul.f32 %v1956, %v382
    %v2002 = vmul.f32 %v1957, %v383
    %v2003 = vmul.f32 %v1958, %v384
    %v2004 = vmul.f32 %v1959, %v385
    %v2005 = vmul.f32 %v1960, %v377
    %v2006 = vmul.f32 %v1961, %v378
    %v2007 = vmul.f32 %v1962, %v379
    %v2008 = vmul.f32 %v1963, %v380
    %v2009 = vmul.f32 %v1964, %v381
    %v2010 = vmul.f32 %v1965, %v382
    %v2011 = vmul.f32 %v1966, %v383
    %v2012 = vmul.f32 %v1967, %v384
    %v2013 = vmul.f32 %v1968, %v385
    %v2014 = vmul.f32 %v1969, %v377
    %v2015 = vmul.f32 %v1970, %v378
    %v2016 = vmul.f32 %v1971, %v379
    %v2017 = vmul.f32 %v1972, %v380
    %v2018 = vmul.f32 %v1973, %v381
    %v2019 = vmul.f32 %v1974, %v382
    %v2020 = vmul.f32 %v1975, %v383
    %v2021 = vmul.f32 %v1976, %v384
    %v2022 = vmul.f32 %v1977, %v385
    %v2023 = vadd.f32 %v1978, %v1979
    %v2024 = vadd.f32 %v2023, %v1980
    %v2025 = vadd.f32 %v2024, %v1981
    %v2026 = vadd.f32 %v2025, %v1982
    %v2027 = vadd.f32 %v2026, %v1983
    %v2028 = vadd.f32 %v2027, %v1984
    %v2029 = vadd.f32 %v2028, %v1985
    %v2030 = vsel %vm447, %v1986, 0.0
    %v2031 = vadd.f32 %v2029, %v2030
    %v2032 = vadd.f32 %v2031, %v1987
    %v2033 = vadd.f32 %v2032, %v1988
    %v2034 = vadd.f32 %v2033, %v1989
    %v2035 = vadd.f32 %v2034, %v1990
    %v2036 = vadd.f32 %v2035, %v1991
    %v2037 = vadd.f32 %v2036, %v1992
    %v2038 = vadd.f32 %v2037, %v1993
    %v2039 = vadd.f32 %v2038, %v1994
    %v2040 = vsel %vm447, %v1995, 0.0
    %v2041 = vadd.f32 %v2039, %v2040
    %v2042 = vadd.f32 %v2041, %v1996
    %v2043 = vadd.f32 %v2042, %v1997
    %v2044 = vadd.f32 %v2043, %v1998
    %v2045 = vadd.f32 %v2044, %v1999
    %v2046 = vadd.f32 %v2045, %v2000
    %v2047 = vadd.f32 %v2046, %v2001
    %v2048 = vadd.f32 %v2047, %v2002
    %v2049 = vadd.f32 %v2048, %v2003
    %v2050 = vsel %vm447, %v2004, 0.0
    %v2051 = vadd.f32 %v2049, %v2050
    %v2052 = vadd.f32 %v2051, %v2005
    %v2053 = vadd.f32 %v2052, %v2006
    %v2054 = vadd.f32 %v2053, %v2007
    %v2055 = vadd.f32 %v2054, %v2008
    %v2056 = vadd.f32 %v2055, %v2009
    %v2057 = vadd.f32 %v2056, %v2010
    %v2058 = vadd.f32 %v2057, %v2011
    %v2059 = vadd.f32 %v2058, %v2012
    %v2060 = vsel %vm447, %v2013, 0.0
    %v2061 = vadd.f32 %v2059, %v2060
    %v2062 = vsel %vm480, %v2014, 0.0
    %v2063 = vadd.f32 %v2061, %v2062
    %v2064 = vsel %vm480, %v2015, 0.0
    %v2065 = vadd.f32 %v2063, %v2064
    %v2066 = vsel %vm480, %v2016, 0.0
    %v2067 = vadd.f32 %v2065, %v2066
    %v2068 = vsel %vm480, %v2017, 0.0
    %v2069 = vadd.f32 %v2067, %v2068
    %v2070 = vsel %vm480, %v2018, 0.0
    %v2071 = vadd.f32 %v2069, %v2070
    %v2072 = vsel %vm480, %v2019, 0.0
    %v2073 = vadd.f32 %v2071, %v2072
    %v2074 = vsel %vm480, %v2020, 0.0
    %v2075 = vadd.f32 %v2073, %v2074
    %v2076 = vsel %vm480, %v2021, 0.0
    %v2077 = vadd.f32 %v2075, %v2076
    %v2078 = vsel %vm497, %v2022, 0.0
    %v2079 = vadd.f32 %v2077, %v2078
    %2080 = vadd.xlane.f32.xlu0 %v2079
    %v2081 = vpop.xlane.xlu0 %2080
    %v2082 = vrot.slane %v2081, 4
    %v2083 = vadd.f32 %v2081, %v2082
    %v2084 = vrot.slane %v2083, 2
    %v2085 = vadd.f32 %v2083, %v2084
    %v2086 = vrot.slane %v2085, 1
    %v2087 = vadd.f32 %v2085, %v2086
    %s2088 = vtos %v2087
    %s2089 = sadd.f32 %s1536, %s2088
    %v2090 = vmax.f32 %v1888, 0.0
    %v2091 = vmax.f32 %v1889, 0.0
    %v2092 = vmax.f32 %v1890, 0.0
    %v2093 = vmax.f32 %v1891, 0.0
    %v2094 = vmax.f32 %v1892, 0.0
    %v2095 = vmax.f32 %v1893, 0.0
    %v2096 = vmax.f32 %v1894, 0.0
    %v2097 = vmax.f32 %v1895, 0.0
    %v2098 = vmax.f32 %v1896, 0.0
    %v2099 = vmax.f32 %v1897, 0.0
    %v2100 = vmax.f32 %v1898, 0.0
    %v2101 = vmax.f32 %v1899, 0.0
    %v2102 = vmax.f32 %v1900, 0.0
    %v2103 = vmax.f32 %v1901, 0.0
    %v2104 = vmax.f32 %v1902, 0.0
    %v2105 = vmax.f32 %v1903, 0.0
    %v2106 = vmax.f32 %v1904, 0.0
    %v2107 = vmax.f32 %v1905, 0.0
    %v2108 = vmax.f32 %v1906, 0.0
    %v2109 = vmax.f32 %v1907, 0.0
    %v2110 = vmax.f32 %v1908, 0.0
    %v2111 = vmax.f32 %v1909, 0.0
    %v2112 = vmax.f32 %v1910, 0.0
    %v2113 = vmax.f32 %v1911, 0.0
    %v2114 = vmax.f32 %v1912, 0.0
    %v2115 = vmax.f32 %v1913, 0.0
    %v2116 = vmax.f32 %v1914, 0.0
    %v2117 = vmax.f32 %v1915, 0.0
    %v2118 = vmax.f32 %v1916, 0.0
    %v2119 = vmax.f32 %v1917, 0.0
    %v2120 = vmax.f32 %v1918, 0.0
    %v2121 = vmax.f32 %v1919, 0.0
    %v2122 = vmax.f32 %v1920, 0.0
    %v2123 = vmax.f32 %v1921, 0.0
    %v2124 = vmax.f32 %v1922, 0.0
    %v2125 = vmax.f32 %v1923, 0.0
    %v2126 = vmax.f32 %v1924, 0.0
    %v2127 = vmax.f32 %v1925, 0.0
    %v2128 = vmax.f32 %v1926, 0.0
    %v2129 = vmax.f32 %v1927, 0.0
    %v2130 = vmax.f32 %v1928, 0.0
    %v2131 = vmax.f32 %v1929, 0.0
    %v2132 = vmax.f32 %v1930, 0.0
    %v2133 = vmax.f32 %v1931, 0.0
    %v2134 = vmax.f32 %v1932, 0.0
    %v2135 = vmul.f32 %v2090, %v557
    %v2136 = vmul.f32 %v2091, %v558
    %v2137 = vmul.f32 %v2092, %v559
    %v2138 = vmul.f32 %v2093, %v560
    %v2139 = vmul.f32 %v2094, %v561
    %v2140 = vmul.f32 %v2095, %v562
    %v2141 = vmul.f32 %v2096, %v563
    %v2142 = vmul.f32 %v2097, %v564
    %v2143 = vmul.f32 %v2098, %v565
    %v2144 = vmul.f32 %v2099, %v557
    %v2145 = vmul.f32 %v2100, %v558
    %v2146 = vmul.f32 %v2101, %v559
    %v2147 = vmul.f32 %v2102, %v560
    %v2148 = vmul.f32 %v2103, %v561
    %v2149 = vmul.f32 %v2104, %v562
    %v2150 = vmul.f32 %v2105, %v563
    %v2151 = vmul.f32 %v2106, %v564
    %v2152 = vmul.f32 %v2107, %v565
    %v2153 = vmul.f32 %v2108, %v557
    %v2154 = vmul.f32 %v2109, %v558
    %v2155 = vmul.f32 %v2110, %v559
    %v2156 = vmul.f32 %v2111, %v560
    %v2157 = vmul.f32 %v2112, %v561
    %v2158 = vmul.f32 %v2113, %v562
    %v2159 = vmul.f32 %v2114, %v563
    %v2160 = vmul.f32 %v2115, %v564
    %v2161 = vmul.f32 %v2116, %v565
    %v2162 = vmul.f32 %v2117, %v557
    %v2163 = vmul.f32 %v2118, %v558
    %v2164 = vmul.f32 %v2119, %v559
    %v2165 = vmul.f32 %v2120, %v560
    %v2166 = vmul.f32 %v2121, %v561
    %v2167 = vmul.f32 %v2122, %v562
    %v2168 = vmul.f32 %v2123, %v563
    %v2169 = vmul.f32 %v2124, %v564
    %v2170 = vmul.f32 %v2125, %v565
    %v2171 = vmul.f32 %v2126, %v557
    %v2172 = vmul.f32 %v2127, %v558
    %v2173 = vmul.f32 %v2128, %v559
    %v2174 = vmul.f32 %v2129, %v560
    %v2175 = vmul.f32 %v2130, %v561
    %v2176 = vmul.f32 %v2131, %v562
    %v2177 = vmul.f32 %v2132, %v563
    %v2178 = vmul.f32 %v2133, %v564
    %v2179 = vmul.f32 %v2134, %v565
    %v2180 = vadd.f32 %v2135, %v2136
    %v2181 = vadd.f32 %v2180, %v2137
    %v2182 = vadd.f32 %v2181, %v2138
    %v2183 = vadd.f32 %v2182, %v2139
    %v2184 = vadd.f32 %v2183, %v2140
    %v2185 = vadd.f32 %v2184, %v2141
    %v2186 = vadd.f32 %v2185, %v2142
    %v2187 = vsel %vm447, %v2143, 0.0
    %v2188 = vadd.f32 %v2186, %v2187
    %v2189 = vadd.f32 %v2188, %v2144
    %v2190 = vadd.f32 %v2189, %v2145
    %v2191 = vadd.f32 %v2190, %v2146
    %v2192 = vadd.f32 %v2191, %v2147
    %v2193 = vadd.f32 %v2192, %v2148
    %v2194 = vadd.f32 %v2193, %v2149
    %v2195 = vadd.f32 %v2194, %v2150
    %v2196 = vadd.f32 %v2195, %v2151
    %v2197 = vsel %vm447, %v2152, 0.0
    %v2198 = vadd.f32 %v2196, %v2197
    %v2199 = vadd.f32 %v2198, %v2153
    %v2200 = vadd.f32 %v2199, %v2154
    %v2201 = vadd.f32 %v2200, %v2155
    %v2202 = vadd.f32 %v2201, %v2156
    %v2203 = vadd.f32 %v2202, %v2157
    %v2204 = vadd.f32 %v2203, %v2158
    %v2205 = vadd.f32 %v2204, %v2159
    %v2206 = vadd.f32 %v2205, %v2160
    %v2207 = vsel %vm447, %v2161, 0.0
    %v2208 = vadd.f32 %v2206, %v2207
    %v2209 = vadd.f32 %v2208, %v2162
    %v2210 = vadd.f32 %v2209, %v2163
    %v2211 = vadd.f32 %v2210, %v2164
    %v2212 = vadd.f32 %v2211, %v2165
    %v2213 = vadd.f32 %v2212, %v2166
    %v2214 = vadd.f32 %v2213, %v2167
    %v2215 = vadd.f32 %v2214, %v2168
    %v2216 = vadd.f32 %v2215, %v2169
    %v2217 = vsel %vm447, %v2170, 0.0
    %v2218 = vadd.f32 %v2216, %v2217
    %v2219 = vsel %vm480, %v2171, 0.0
    %v2220 = vadd.f32 %v2218, %v2219
    %v2221 = vsel %vm480, %v2172, 0.0
    %v2222 = vadd.f32 %v2220, %v2221
    %v2223 = vsel %vm480, %v2173, 0.0
    %v2224 = vadd.f32 %v2222, %v2223
    %v2225 = vsel %vm480, %v2174, 0.0
    %v2226 = vadd.f32 %v2224, %v2225
    %v2227 = vsel %vm480, %v2175, 0.0
    %v2228 = vadd.f32 %v2226, %v2227
    %v2229 = vsel %vm480, %v2176, 0.0
    %v2230 = vadd.f32 %v2228, %v2229
    %v2231 = vsel %vm480, %v2177, 0.0
    %v2232 = vadd.f32 %v2230, %v2231
    %v2233 = vsel %vm480, %v2178, 0.0
    %v2234 = vadd.f32 %v2232, %v2233
    %v2235 = vsel %vm497, %v2179, 0.0
    %v2236 = vadd.f32 %v2234, %v2235
    %2237 = vadd.xlane.f32.xlu0 %v2236
    %v2238 = vpop.xlane.xlu0 %2237
    %v2239 = vrot.slane %v2238, 4
    %v2240 = vadd.f32 %v2238, %v2239
    %v2241 = vrot.slane %v2240, 2
    %v2242 = vadd.f32 %v2240, %v2241
    %v2243 = vrot.slane %v2242, 1
    %v2244 = vadd.f32 %v2242, %v2243
    %s2245 = vtos %v2244
    %s2246 = sadd.f32 %s1621, %s2245
    %2247 = vrot.lane.b32.xlu0 %v1623, 95
    %v2248 = vpop.permute.xlu0 %2247
    %2249 = vrot.lane.b32.xlu0 %v1624, 95
    %v2250 = vpop.permute.xlu0 %2249
    %2251 = vrot.lane.b32.xlu0 %v1625, 95
    %v2252 = vpop.permute.xlu0 %2251
    %2253 = vrot.lane.b32.xlu0 %v1626, 95
    %v2254 = vpop.permute.xlu0 %2253
    %2255 = vrot.lane.b32.xlu0 %v1627, 95
    %v2256 = vpop.permute.xlu0 %2255
    %2257 = vrot.lane.b32.xlu0 %v1628, 95
    %v2258 = vpop.permute.xlu0 %2257
    %2259 = vrot.lane.b32.xlu0 %v1629, 95
    %v2260 = vpop.permute.xlu0 %2259
    %2261 = vrot.lane.b32.xlu0 %v1630, 95
    %v2262 = vpop.permute.xlu0 %2261
    %2263 = vrot.lane.b32.xlu0 %v1631, 95
    %v2264 = vpop.permute.xlu0 %2263
    %2265 = vrot.lane.b32.xlu0 %v1632, 95
    %v2266 = vpop.permute.xlu0 %2265
    %2267 = vrot.lane.b32.xlu0 %v1633, 95
    %v2268 = vpop.permute.xlu0 %2267
    %2269 = vrot.lane.b32.xlu0 %v1634, 95
    %v2270 = vpop.permute.xlu0 %2269
    %2271 = vrot.lane.b32.xlu0 %v1635, 95
    %v2272 = vpop.permute.xlu0 %2271
    %2273 = vrot.lane.b32.xlu0 %v1636, 95
    %v2274 = vpop.permute.xlu0 %2273
    %2275 = vrot.lane.b32.xlu0 %v1637, 95
    %v2276 = vpop.permute.xlu0 %2275
    %2277 = vrot.lane.b32.xlu0 %v1638, 95
    %v2278 = vpop.permute.xlu0 %2277
    %2279 = vrot.lane.b32.xlu0 %v1639, 95
    %v2280 = vpop.permute.xlu0 %2279
    %2281 = vrot.lane.b32.xlu0 %v1640, 95
    %v2282 = vpop.permute.xlu0 %2281
    %2283 = vrot.lane.b32.xlu0 %v1641, 95
    %v2284 = vpop.permute.xlu0 %2283
    %2285 = vrot.lane.b32.xlu0 %v1642, 95
    %v2286 = vpop.permute.xlu0 %2285
    %2287 = vrot.lane.b32.xlu0 %v1643, 95
    %v2288 = vpop.permute.xlu0 %2287
    %2289 = vrot.lane.b32.xlu0 %v1644, 95
    %v2290 = vpop.permute.xlu0 %2289
    %2291 = vrot.lane.b32.xlu0 %v1645, 95
    %v2292 = vpop.permute.xlu0 %2291
    %2293 = vrot.lane.b32.xlu0 %v1646, 95
    %v2294 = vpop.permute.xlu0 %2293
    %2295 = vrot.lane.b32.xlu0 %v1647, 95
    %v2296 = vpop.permute.xlu0 %2295
    %2297 = vrot.lane.b32.xlu0 %v1648, 95
    %v2298 = vpop.permute.xlu0 %2297
    %2299 = vrot.lane.b32.xlu0 %v1649, 95
    %v2300 = vpop.permute.xlu0 %2299
    %2301 = vrot.lane.b32.xlu0 %v1650, 95
    %v2302 = vpop.permute.xlu0 %2301
    %2303 = vrot.lane.b32.xlu0 %v1651, 95
    %v2304 = vpop.permute.xlu0 %2303
    %2305 = vrot.lane.b32.xlu0 %v1652, 95
    %v2306 = vpop.permute.xlu0 %2305
    %2307 = vrot.lane.b32.xlu0 %v1653, 95
    %v2308 = vpop.permute.xlu0 %2307
    %2309 = vrot.lane.b32.xlu0 %v1654, 95
    %v2310 = vpop.permute.xlu0 %2309
    %2311 = vrot.lane.b32.xlu0 %v1655, 95
    %v2312 = vpop.permute.xlu0 %2311
    %2313 = vrot.lane.b32.xlu0 %v1656, 95
    %v2314 = vpop.permute.xlu0 %2313
    %2315 = vrot.lane.b32.xlu0 %v1657, 95
    %v2316 = vpop.permute.xlu0 %2315
    %2317 = vrot.lane.b32.xlu0 %v1658, 95
    %v2318 = vpop.permute.xlu0 %2317
    %2319 = vrot.lane.b32.xlu0 %v1659, 95
    %v2320 = vpop.permute.xlu0 %2319
    %2321 = vrot.lane.b32.xlu0 %v1660, 95
    %v2322 = vpop.permute.xlu0 %2321
    %2323 = vrot.lane.b32.xlu0 %v1661, 95
    %v2324 = vpop.permute.xlu0 %2323
    %2325 = vrot.lane.b32.xlu0 %v1662, 95
    %v2326 = vpop.permute.xlu0 %2325
    %2327 = vrot.lane.b32.xlu0 %v1663, 95
    %v2328 = vpop.permute.xlu0 %2327
    %2329 = vrot.lane.b32.xlu0 %v1664, 95
    %v2330 = vpop.permute.xlu0 %2329
    %2331 = vrot.lane.b32.xlu0 %v1665, 95
    %v2332 = vpop.permute.xlu0 %2331
    %2333 = vrot.lane.b32.xlu0 %v1666, 95
    %v2334 = vpop.permute.xlu0 %2333
    %2335 = vrot.lane.b32.xlu0 %v1667, 95
    %v2336 = vpop.permute.xlu0 %2335
    %v2337 = vsel %vm777, %v2248, %v2250
    %v2338 = vsel %vm777, %v2250, %v2252
    %v2339 = vsel %vm777, %v2252, %v2254
    %v2340 = vsel %vm777, %v2254, %v2256
    %v2341 = vsel %vm777, %v2256, %v2258
    %v2342 = vsel %vm777, %v2258, %v2260
    %v2343 = vsel %vm777, %v2260, %v2262
    %v2344 = vsel %vm777, %v2262, %v2264
    %v2345 = vsel %vm777, %v2266, %v2268
    %v2346 = vsel %vm777, %v2268, %v2270
    %v2347 = vsel %vm777, %v2270, %v2272
    %v2348 = vsel %vm777, %v2272, %v2274
    %v2349 = vsel %vm777, %v2274, %v2276
    %v2350 = vsel %vm777, %v2276, %v2278
    %v2351 = vsel %vm777, %v2278, %v2280
    %v2352 = vsel %vm777, %v2280, %v2282
    %v2353 = vsel %vm777, %v2284, %v2286
    %v2354 = vsel %vm777, %v2286, %v2288
    %v2355 = vsel %vm777, %v2288, %v2290
    %v2356 = vsel %vm777, %v2290, %v2292
    %v2357 = vsel %vm777, %v2292, %v2294
    %v2358 = vsel %vm777, %v2294, %v2296
    %v2359 = vsel %vm777, %v2296, %v2298
    %v2360 = vsel %vm777, %v2298, %v2300
    %v2361 = vsel %vm777, %v2302, %v2304
    %v2362 = vsel %vm777, %v2304, %v2306
    %v2363 = vsel %vm777, %v2306, %v2308
    %v2364 = vsel %vm777, %v2308, %v2310
    %v2365 = vsel %vm777, %v2310, %v2312
    %v2366 = vsel %vm777, %v2312, %v2314
    %v2367 = vsel %vm777, %v2314, %v2316
    %v2368 = vsel %vm777, %v2316, %v2318
    %v2369 = vsel %vm777, %v2320, %v2322
    %v2370 = vsel %vm777, %v2322, %v2324
    %v2371 = vsel %vm777, %v2324, %v2326
    %v2372 = vsel %vm777, %v2326, %v2328
    %v2373 = vsel %vm777, %v2328, %v2330
    %v2374 = vsel %vm777, %v2330, %v2332
    %v2375 = vsel %vm777, %v2332, %v2334
    %v2376 = vsel %vm777, %v2334, %v2336
    %v2422 = vsub.f32 %v1623, %v2337
    %v2423 = vsub.f32 %v1624, %v2338
    %v2424 = vsub.f32 %v1625, %v2339
    %v2425 = vsub.f32 %v1626, %v2340
    %v2426 = vsub.f32 %v1627, %v2341
    %v2427 = vsub.f32 %v1628, %v2342
    %v2428 = vsub.f32 %v1629, %v2343
    %v2429 = vsub.f32 %v1630, %v2344
    %v2430 = vsub.f32 %v1631, %v2264
    %v2431 = vsub.f32 %v1632, %v2345
    %v2432 = vsub.f32 %v1633, %v2346
    %v2433 = vsub.f32 %v1634, %v2347
    %v2434 = vsub.f32 %v1635, %v2348
    %v2435 = vsub.f32 %v1636, %v2349
    %v2436 = vsub.f32 %v1637, %v2350
    %v2437 = vsub.f32 %v1638, %v2351
    %v2438 = vsub.f32 %v1639, %v2352
    %v2439 = vsub.f32 %v1640, %v2282
    %v2440 = vsub.f32 %v1641, %v2353
    %v2441 = vsub.f32 %v1642, %v2354
    %v2442 = vsub.f32 %v1643, %v2355
    %v2443 = vsub.f32 %v1644, %v2356
    %v2444 = vsub.f32 %v1645, %v2357
    %v2445 = vsub.f32 %v1646, %v2358
    %v2446 = vsub.f32 %v1647, %v2359
    %v2447 = vsub.f32 %v1648, %v2360
    %v2448 = vsub.f32 %v1649, %v2300
    %v2449 = vsub.f32 %v1650, %v2361
    %v2450 = vsub.f32 %v1651, %v2362
    %v2451 = vsub.f32 %v1652, %v2363
    %v2452 = vsub.f32 %v1653, %v2364
    %v2453 = vsub.f32 %v1654, %v2365
    %v2454 = vsub.f32 %v1655, %v2366
    %v2455 = vsub.f32 %v1656, %v2367
    %v2456 = vsub.f32 %v1657, %v2368
    %v2457 = vsub.f32 %v1658, %v2318
    %v2458 = vsub.f32 %v1659, %v2369
    %v2459 = vsub.f32 %v1660, %v2370
    %v2460 = vsub.f32 %v1661, %v2371
    %v2461 = vsub.f32 %v1662, %v2372
    %v2462 = vsub.f32 %v1663, %v2373
    %v2463 = vsub.f32 %v1664, %v2374
    %v2464 = vsub.f32 %v1665, %v2375
    %v2465 = vsub.f32 %v1666, %v2376
    %v2466 = vsub.f32 %v1667, %v2336
    %v2467 = vmul.f32 %v2422, %v2422
    %v2468 = vmul.f32 %v2423, %v2423
    %v2469 = vmul.f32 %v2424, %v2424
    %v2470 = vmul.f32 %v2425, %v2425
    %v2471 = vmul.f32 %v2426, %v2426
    %v2472 = vmul.f32 %v2427, %v2427
    %v2473 = vmul.f32 %v2428, %v2428
    %v2474 = vmul.f32 %v2429, %v2429
    %v2475 = vmul.f32 %v2430, %v2430
    %v2476 = vmul.f32 %v2431, %v2431
    %v2477 = vmul.f32 %v2432, %v2432
    %v2478 = vmul.f32 %v2433, %v2433
    %v2479 = vmul.f32 %v2434, %v2434
    %v2480 = vmul.f32 %v2435, %v2435
    %v2481 = vmul.f32 %v2436, %v2436
    %v2482 = vmul.f32 %v2437, %v2437
    %v2483 = vmul.f32 %v2438, %v2438
    %v2484 = vmul.f32 %v2439, %v2439
    %v2485 = vmul.f32 %v2440, %v2440
    %v2486 = vmul.f32 %v2441, %v2441
    %v2487 = vmul.f32 %v2442, %v2442
    %v2488 = vmul.f32 %v2443, %v2443
    %v2489 = vmul.f32 %v2444, %v2444
    %v2490 = vmul.f32 %v2445, %v2445
    %v2491 = vmul.f32 %v2446, %v2446
    %v2492 = vmul.f32 %v2447, %v2447
    %v2493 = vmul.f32 %v2448, %v2448
    %v2494 = vmul.f32 %v2449, %v2449
    %v2495 = vmul.f32 %v2450, %v2450
    %v2496 = vmul.f32 %v2451, %v2451
    %v2497 = vmul.f32 %v2452, %v2452
    %v2498 = vmul.f32 %v2453, %v2453
    %v2499 = vmul.f32 %v2454, %v2454
    %v2500 = vmul.f32 %v2455, %v2455
    %v2501 = vmul.f32 %v2456, %v2456
    %v2502 = vmul.f32 %v2457, %v2457
    %v2503 = vmul.f32 %v2458, %v2458
    %v2504 = vmul.f32 %v2459, %v2459
    %v2505 = vmul.f32 %v2460, %v2460
    %v2506 = vmul.f32 %v2461, %v2461
    %v2507 = vmul.f32 %v2462, %v2462
    %v2508 = vmul.f32 %v2463, %v2463
    %v2509 = vmul.f32 %v2464, %v2464
    %v2510 = vmul.f32 %v2465, %v2465
    %v2511 = vmul.f32 %v2466, %v2466
    %v2512 = vadd.f32 %v2467, %v2468
    %v2513 = vadd.f32 %v2512, %v2469
    %v2514 = vadd.f32 %v2513, %v2470
    %v2515 = vadd.f32 %v2514, %v2471
    %v2516 = vadd.f32 %v2515, %v2472
    %v2517 = vadd.f32 %v2516, %v2473
    %v2518 = vadd.f32 %v2517, %v2474
    %v2519 = vsel %vm960, %v2475, 0.0
    %v2520 = vadd.f32 %v2518, %v2519
    %v2521 = vadd.f32 %v2520, %v2476
    %v2522 = vadd.f32 %v2521, %v2477
    %v2523 = vadd.f32 %v2522, %v2478
    %v2524 = vadd.f32 %v2523, %v2479
    %v2525 = vadd.f32 %v2524, %v2480
    %v2526 = vadd.f32 %v2525, %v2481
    %v2527 = vadd.f32 %v2526, %v2482
    %v2528 = vadd.f32 %v2527, %v2483
    %v2529 = vsel %vm960, %v2484, 0.0
    %v2530 = vadd.f32 %v2528, %v2529
    %v2531 = vadd.f32 %v2530, %v2485
    %v2532 = vadd.f32 %v2531, %v2486
    %v2533 = vadd.f32 %v2532, %v2487
    %v2534 = vadd.f32 %v2533, %v2488
    %v2535 = vadd.f32 %v2534, %v2489
    %v2536 = vadd.f32 %v2535, %v2490
    %v2537 = vadd.f32 %v2536, %v2491
    %v2538 = vadd.f32 %v2537, %v2492
    %v2539 = vsel %vm960, %v2493, 0.0
    %v2540 = vadd.f32 %v2538, %v2539
    %v2541 = vadd.f32 %v2540, %v2494
    %v2542 = vadd.f32 %v2541, %v2495
    %v2543 = vadd.f32 %v2542, %v2496
    %v2544 = vadd.f32 %v2543, %v2497
    %v2545 = vadd.f32 %v2544, %v2498
    %v2546 = vadd.f32 %v2545, %v2499
    %v2547 = vadd.f32 %v2546, %v2500
    %v2548 = vadd.f32 %v2547, %v2501
    %v2549 = vsel %vm960, %v2502, 0.0
    %v2550 = vadd.f32 %v2548, %v2549
    %v2551 = vsel %vm480, %v2503, 0.0
    %v2552 = vadd.f32 %v2550, %v2551
    %v2553 = vsel %vm480, %v2504, 0.0
    %v2554 = vadd.f32 %v2552, %v2553
    %v2555 = vsel %vm480, %v2505, 0.0
    %v2556 = vadd.f32 %v2554, %v2555
    %v2557 = vsel %vm480, %v2506, 0.0
    %v2558 = vadd.f32 %v2556, %v2557
    %v2559 = vsel %vm480, %v2507, 0.0
    %v2560 = vadd.f32 %v2558, %v2559
    %v2561 = vsel %vm480, %v2508, 0.0
    %v2562 = vadd.f32 %v2560, %v2561
    %v2563 = vsel %vm480, %v2509, 0.0
    %v2564 = vadd.f32 %v2562, %v2563
    %v2565 = vsel %vm480, %v2510, 0.0
    %v2566 = vadd.f32 %v2564, %v2565
    %v2567 = vsel %vm1009, %v2511, 0.0
    %v2568 = vadd.f32 %v2566, %v2567
    %2569 = vadd.xlane.f32.xlu0 %v2568
    %v2570 = vpop.xlane.xlu0 %2569
    %v2571 = vrot.slane %v2570, 4
    %v2572 = vadd.f32 %v2570, %v2571
    %v2573 = vrot.slane %v2572, 2
    %v2574 = vadd.f32 %v2572, %v2573
    %v2575 = vrot.slane %v2574, 1
    %v2576 = vadd.f32 %v2574, %v2575
    %s2577 = vtos %v2576
    %v2578 = vsel %vm1021, %v2467, 0.0
    %v2579 = vsel %vm1021, %v2476, 0.0
    %v2580 = vadd.f32 %v2578, %v2579
    %v2581 = vsel %vm1021, %v2485, 0.0
    %v2582 = vadd.f32 %v2580, %v2581
    %v2583 = vsel %vm1021, %v2494, 0.0
    %v2584 = vadd.f32 %v2582, %v2583
    %v2585 = vsel %vm1029, %v2503, 0.0
    %v2586 = vadd.f32 %v2584, %v2585
    %2587 = vadd.xlane.f32.xlu0 %v2586
    %v2588 = vpop.xlane.xlu0 %2587
    %v2589 = vrot.slane %v2588, 4
    %v2590 = vadd.f32 %v2588, %v2589
    %v2591 = vrot.slane %v2590, 2
    %v2592 = vadd.f32 %v2590, %v2591
    %v2593 = vrot.slane %v2592, 1
    %v2594 = vadd.f32 %v2592, %v2593
    %s2595 = vtos %v2594
    %s2596 = sadd.f32 %s2577, %s2595
    %2607 = vrot.lane.b32.xlu0 %v2474, 1
    %v2608 = vpop.permute.xlu0 %2607
    %2609 = vrot.lane.b32.xlu0 %v2475, 1
    %v2610 = vpop.permute.xlu0 %2609
    %2611 = vrot.lane.b32.xlu0 %v2483, 1
    %v2612 = vpop.permute.xlu0 %2611
    %2613 = vrot.lane.b32.xlu0 %v2484, 1
    %v2614 = vpop.permute.xlu0 %2613
    %2615 = vrot.lane.b32.xlu0 %v2492, 1
    %v2616 = vpop.permute.xlu0 %2615
    %2617 = vrot.lane.b32.xlu0 %v2493, 1
    %v2618 = vpop.permute.xlu0 %2617
    %2619 = vrot.lane.b32.xlu0 %v2501, 1
    %v2620 = vpop.permute.xlu0 %2619
    %2621 = vrot.lane.b32.xlu0 %v2502, 1
    %v2622 = vpop.permute.xlu0 %2621
    %2623 = vrot.lane.b32.xlu0 %v2510, 1
    %v2624 = vpop.permute.xlu0 %2623
    %2625 = vrot.lane.b32.xlu0 %v2511, 1
    %v2626 = vpop.permute.xlu0 %2625
    %v2627 = vsel %vm1072, %v2608, %v2610
    %v2628 = vsel %vm1072, %v2612, %v2614
    %v2629 = vsel %vm1072, %v2616, %v2618
    %v2630 = vsel %vm1072, %v2620, %v2622
    %v2631 = vsel %vm1072, %v2624, %v2626
    %v2637 = vsel %vm1021, %v2627, 0.0
    %v2638 = vsel %vm1021, %v2628, 0.0
    %v2639 = vadd.f32 %v2637, %v2638
    %v2640 = vsel %vm1021, %v2629, 0.0
    %v2641 = vadd.f32 %v2639, %v2640
    %v2642 = vsel %vm1021, %v2630, 0.0
    %v2643 = vadd.f32 %v2641, %v2642
    %v2644 = vsel %vm1029, %v2631, 0.0
    %v2645 = vadd.f32 %v2643, %v2644
    %2646 = vadd.xlane.f32.xlu0 %v2645
    %v2647 = vpop.xlane.xlu0 %2646
    %v2648 = vrot.slane %v2647, 4
    %v2649 = vadd.f32 %v2647, %v2648
    %v2650 = vrot.slane %v2649, 2
    %v2651 = vadd.f32 %v2649, %v2650
    %v2652 = vrot.slane %v2651, 1
    %v2653 = vadd.f32 %v2651, %v2652
    %s2654 = vtos %v2653
    %s2655 = sadd.f32 %s2596, %s2654
    %s2656 = sadd.f32 %s2089, %s2655
    %v2657 = vmax.f32 %v2422, 0.0
    %v2658 = vmax.f32 %v2423, 0.0
    %v2659 = vmax.f32 %v2424, 0.0
    %v2660 = vmax.f32 %v2425, 0.0
    %v2661 = vmax.f32 %v2426, 0.0
    %v2662 = vmax.f32 %v2427, 0.0
    %v2663 = vmax.f32 %v2428, 0.0
    %v2664 = vmax.f32 %v2429, 0.0
    %v2665 = vmax.f32 %v2430, 0.0
    %v2666 = vmax.f32 %v2431, 0.0
    %v2667 = vmax.f32 %v2432, 0.0
    %v2668 = vmax.f32 %v2433, 0.0
    %v2669 = vmax.f32 %v2434, 0.0
    %v2670 = vmax.f32 %v2435, 0.0
    %v2671 = vmax.f32 %v2436, 0.0
    %v2672 = vmax.f32 %v2437, 0.0
    %v2673 = vmax.f32 %v2438, 0.0
    %v2674 = vmax.f32 %v2439, 0.0
    %v2675 = vmax.f32 %v2440, 0.0
    %v2676 = vmax.f32 %v2441, 0.0
    %v2677 = vmax.f32 %v2442, 0.0
    %v2678 = vmax.f32 %v2443, 0.0
    %v2679 = vmax.f32 %v2444, 0.0
    %v2680 = vmax.f32 %v2445, 0.0
    %v2681 = vmax.f32 %v2446, 0.0
    %v2682 = vmax.f32 %v2447, 0.0
    %v2683 = vmax.f32 %v2448, 0.0
    %v2684 = vmax.f32 %v2449, 0.0
    %v2685 = vmax.f32 %v2450, 0.0
    %v2686 = vmax.f32 %v2451, 0.0
    %v2687 = vmax.f32 %v2452, 0.0
    %v2688 = vmax.f32 %v2453, 0.0
    %v2689 = vmax.f32 %v2454, 0.0
    %v2690 = vmax.f32 %v2455, 0.0
    %v2691 = vmax.f32 %v2456, 0.0
    %v2692 = vmax.f32 %v2457, 0.0
    %v2693 = vmax.f32 %v2458, 0.0
    %v2694 = vmax.f32 %v2459, 0.0
    %v2695 = vmax.f32 %v2460, 0.0
    %v2696 = vmax.f32 %v2461, 0.0
    %v2697 = vmax.f32 %v2462, 0.0
    %v2698 = vmax.f32 %v2463, 0.0
    %v2699 = vmax.f32 %v2464, 0.0
    %v2700 = vmax.f32 %v2465, 0.0
    %v2701 = vmax.f32 %v2466, 0.0
    %v2702 = vadd.f32 %v2657, %v2658
    %v2703 = vadd.f32 %v2702, %v2659
    %v2704 = vadd.f32 %v2703, %v2660
    %v2705 = vadd.f32 %v2704, %v2661
    %v2706 = vadd.f32 %v2705, %v2662
    %v2707 = vadd.f32 %v2706, %v2663
    %v2708 = vadd.f32 %v2707, %v2664
    %v2709 = vsel %vm960, %v2665, 0.0
    %v2710 = vadd.f32 %v2708, %v2709
    %v2711 = vadd.f32 %v2710, %v2666
    %v2712 = vadd.f32 %v2711, %v2667
    %v2713 = vadd.f32 %v2712, %v2668
    %v2714 = vadd.f32 %v2713, %v2669
    %v2715 = vadd.f32 %v2714, %v2670
    %v2716 = vadd.f32 %v2715, %v2671
    %v2717 = vadd.f32 %v2716, %v2672
    %v2718 = vadd.f32 %v2717, %v2673
    %v2719 = vsel %vm960, %v2674, 0.0
    %v2720 = vadd.f32 %v2718, %v2719
    %v2721 = vadd.f32 %v2720, %v2675
    %v2722 = vadd.f32 %v2721, %v2676
    %v2723 = vadd.f32 %v2722, %v2677
    %v2724 = vadd.f32 %v2723, %v2678
    %v2725 = vadd.f32 %v2724, %v2679
    %v2726 = vadd.f32 %v2725, %v2680
    %v2727 = vadd.f32 %v2726, %v2681
    %v2728 = vadd.f32 %v2727, %v2682
    %v2729 = vsel %vm960, %v2683, 0.0
    %v2730 = vadd.f32 %v2728, %v2729
    %v2731 = vadd.f32 %v2730, %v2684
    %v2732 = vadd.f32 %v2731, %v2685
    %v2733 = vadd.f32 %v2732, %v2686
    %v2734 = vadd.f32 %v2733, %v2687
    %v2735 = vadd.f32 %v2734, %v2688
    %v2736 = vadd.f32 %v2735, %v2689
    %v2737 = vadd.f32 %v2736, %v2690
    %v2738 = vadd.f32 %v2737, %v2691
    %v2739 = vsel %vm960, %v2692, 0.0
    %v2740 = vadd.f32 %v2738, %v2739
    %v2741 = vsel %vm480, %v2693, 0.0
    %v2742 = vadd.f32 %v2740, %v2741
    %v2743 = vsel %vm480, %v2694, 0.0
    %v2744 = vadd.f32 %v2742, %v2743
    %v2745 = vsel %vm480, %v2695, 0.0
    %v2746 = vadd.f32 %v2744, %v2745
    %v2747 = vsel %vm480, %v2696, 0.0
    %v2748 = vadd.f32 %v2746, %v2747
    %v2749 = vsel %vm480, %v2697, 0.0
    %v2750 = vadd.f32 %v2748, %v2749
    %v2751 = vsel %vm480, %v2698, 0.0
    %v2752 = vadd.f32 %v2750, %v2751
    %v2753 = vsel %vm480, %v2699, 0.0
    %v2754 = vadd.f32 %v2752, %v2753
    %v2755 = vsel %vm480, %v2700, 0.0
    %v2756 = vadd.f32 %v2754, %v2755
    %v2757 = vsel %vm1009, %v2701, 0.0
    %v2758 = vadd.f32 %v2756, %v2757
    %2759 = vadd.xlane.f32.xlu0 %v2758
    %v2760 = vpop.xlane.xlu0 %2759
    %v2761 = vrot.slane %v2760, 4
    %v2762 = vadd.f32 %v2760, %v2761
    %v2763 = vrot.slane %v2762, 2
    %v2764 = vadd.f32 %v2762, %v2763
    %v2765 = vrot.slane %v2764, 1
    %v2766 = vadd.f32 %v2764, %v2765
    %s2767 = vtos %v2766
    %s2768 = sadd.f32 %s2246, %s2767
    %v2769 = vrot.slane %v1623, 1
    %v2770 = vrot.slane %v1632, 1
    %v2771 = vsel %vm1215, %v2769, %v2770
    %v2772 = vrot.slane %v1624, 1
    %v2773 = vrot.slane %v1633, 1
    %v2774 = vsel %vm1215, %v2772, %v2773
    %v2775 = vrot.slane %v1625, 1
    %v2776 = vrot.slane %v1634, 1
    %v2777 = vsel %vm1215, %v2775, %v2776
    %v2778 = vrot.slane %v1626, 1
    %v2779 = vrot.slane %v1635, 1
    %v2780 = vsel %vm1215, %v2778, %v2779
    %v2781 = vrot.slane %v1627, 1
    %v2782 = vrot.slane %v1636, 1
    %v2783 = vsel %vm1215, %v2781, %v2782
    %v2784 = vrot.slane %v1628, 1
    %v2785 = vrot.slane %v1637, 1
    %v2786 = vsel %vm1215, %v2784, %v2785
    %v2787 = vrot.slane %v1629, 1
    %v2788 = vrot.slane %v1638, 1
    %v2789 = vsel %vm1215, %v2787, %v2788
    %v2790 = vrot.slane %v1630, 1
    %v2791 = vrot.slane %v1639, 1
    %v2792 = vsel %vm1215, %v2790, %v2791
    %v2793 = vrot.slane %v1631, 1
    %v2794 = vrot.slane %v1640, 1
    %v2795 = vsel %vm1215, %v2793, %v2794
    %v2796 = vrot.slane %v1641, 1
    %v2797 = vsel %vm1215, %v2770, %v2796
    %v2798 = vrot.slane %v1642, 1
    %v2799 = vsel %vm1215, %v2773, %v2798
    %v2800 = vrot.slane %v1643, 1
    %v2801 = vsel %vm1215, %v2776, %v2800
    %v2802 = vrot.slane %v1644, 1
    %v2803 = vsel %vm1215, %v2779, %v2802
    %v2804 = vrot.slane %v1645, 1
    %v2805 = vsel %vm1215, %v2782, %v2804
    %v2806 = vrot.slane %v1646, 1
    %v2807 = vsel %vm1215, %v2785, %v2806
    %v2808 = vrot.slane %v1647, 1
    %v2809 = vsel %vm1215, %v2788, %v2808
    %v2810 = vrot.slane %v1648, 1
    %v2811 = vsel %vm1215, %v2791, %v2810
    %v2812 = vrot.slane %v1649, 1
    %v2813 = vsel %vm1215, %v2794, %v2812
    %v2814 = vrot.slane %v1650, 1
    %v2815 = vsel %vm1215, %v2796, %v2814
    %v2816 = vrot.slane %v1651, 1
    %v2817 = vsel %vm1215, %v2798, %v2816
    %v2818 = vrot.slane %v1652, 1
    %v2819 = vsel %vm1215, %v2800, %v2818
    %v2820 = vrot.slane %v1653, 1
    %v2821 = vsel %vm1215, %v2802, %v2820
    %v2822 = vrot.slane %v1654, 1
    %v2823 = vsel %vm1215, %v2804, %v2822
    %v2824 = vrot.slane %v1655, 1
    %v2825 = vsel %vm1215, %v2806, %v2824
    %v2826 = vrot.slane %v1656, 1
    %v2827 = vsel %vm1215, %v2808, %v2826
    %v2828 = vrot.slane %v1657, 1
    %v2829 = vsel %vm1215, %v2810, %v2828
    %v2830 = vrot.slane %v1658, 1
    %v2831 = vsel %vm1215, %v2812, %v2830
    %v2832 = vrot.slane %v1659, 1
    %v2833 = vsel %vm1215, %v2814, %v2832
    %v2834 = vrot.slane %v1660, 1
    %v2835 = vsel %vm1215, %v2816, %v2834
    %v2836 = vrot.slane %v1661, 1
    %v2837 = vsel %vm1215, %v2818, %v2836
    %v2838 = vrot.slane %v1662, 1
    %v2839 = vsel %vm1215, %v2820, %v2838
    %v2840 = vrot.slane %v1663, 1
    %v2841 = vsel %vm1215, %v2822, %v2840
    %v2842 = vrot.slane %v1664, 1
    %v2843 = vsel %vm1215, %v2824, %v2842
    %v2844 = vrot.slane %v1665, 1
    %v2845 = vsel %vm1215, %v2826, %v2844
    %v2846 = vrot.slane %v1666, 1
    %v2847 = vsel %vm1215, %v2828, %v2846
    %v2848 = vrot.slane %v1667, 1
    %v2849 = vsel %vm1215, %v2830, %v2848
    %v2886 = vsub.f32 %v1623, %v2771
    %v2887 = vsub.f32 %v1624, %v2774
    %v2888 = vsub.f32 %v1625, %v2777
    %v2889 = vsub.f32 %v1626, %v2780
    %v2890 = vsub.f32 %v1627, %v2783
    %v2891 = vsub.f32 %v1628, %v2786
    %v2892 = vsub.f32 %v1629, %v2789
    %v2893 = vsub.f32 %v1630, %v2792
    %v2894 = vsub.f32 %v1631, %v2795
    %v2895 = vsub.f32 %v1632, %v2797
    %v2896 = vsub.f32 %v1633, %v2799
    %v2897 = vsub.f32 %v1634, %v2801
    %v2898 = vsub.f32 %v1635, %v2803
    %v2899 = vsub.f32 %v1636, %v2805
    %v2900 = vsub.f32 %v1637, %v2807
    %v2901 = vsub.f32 %v1638, %v2809
    %v2902 = vsub.f32 %v1639, %v2811
    %v2903 = vsub.f32 %v1640, %v2813
    %v2904 = vsub.f32 %v1641, %v2815
    %v2905 = vsub.f32 %v1642, %v2817
    %v2906 = vsub.f32 %v1643, %v2819
    %v2907 = vsub.f32 %v1644, %v2821
    %v2908 = vsub.f32 %v1645, %v2823
    %v2909 = vsub.f32 %v1646, %v2825
    %v2910 = vsub.f32 %v1647, %v2827
    %v2911 = vsub.f32 %v1648, %v2829
    %v2912 = vsub.f32 %v1649, %v2831
    %v2913 = vsub.f32 %v1650, %v2833
    %v2914 = vsub.f32 %v1651, %v2835
    %v2915 = vsub.f32 %v1652, %v2837
    %v2916 = vsub.f32 %v1653, %v2839
    %v2917 = vsub.f32 %v1654, %v2841
    %v2918 = vsub.f32 %v1655, %v2843
    %v2919 = vsub.f32 %v1656, %v2845
    %v2920 = vsub.f32 %v1657, %v2847
    %v2921 = vsub.f32 %v1658, %v2849
    %v2922 = vmul.f32 %v2886, %v2886
    %v2923 = vmul.f32 %v2887, %v2887
    %v2924 = vmul.f32 %v2888, %v2888
    %v2925 = vmul.f32 %v2889, %v2889
    %v2926 = vmul.f32 %v2890, %v2890
    %v2927 = vmul.f32 %v2891, %v2891
    %v2928 = vmul.f32 %v2892, %v2892
    %v2929 = vmul.f32 %v2893, %v2893
    %v2930 = vmul.f32 %v2894, %v2894
    %v2931 = vmul.f32 %v2895, %v2895
    %v2932 = vmul.f32 %v2896, %v2896
    %v2933 = vmul.f32 %v2897, %v2897
    %v2934 = vmul.f32 %v2898, %v2898
    %v2935 = vmul.f32 %v2899, %v2899
    %v2936 = vmul.f32 %v2900, %v2900
    %v2937 = vmul.f32 %v2901, %v2901
    %v2938 = vmul.f32 %v2902, %v2902
    %v2939 = vmul.f32 %v2903, %v2903
    %v2940 = vmul.f32 %v2904, %v2904
    %v2941 = vmul.f32 %v2905, %v2905
    %v2942 = vmul.f32 %v2906, %v2906
    %v2943 = vmul.f32 %v2907, %v2907
    %v2944 = vmul.f32 %v2908, %v2908
    %v2945 = vmul.f32 %v2909, %v2909
    %v2946 = vmul.f32 %v2910, %v2910
    %v2947 = vmul.f32 %v2911, %v2911
    %v2948 = vmul.f32 %v2912, %v2912
    %v2949 = vmul.f32 %v2913, %v2913
    %v2950 = vmul.f32 %v2914, %v2914
    %v2951 = vmul.f32 %v2915, %v2915
    %v2952 = vmul.f32 %v2916, %v2916
    %v2953 = vmul.f32 %v2917, %v2917
    %v2954 = vmul.f32 %v2918, %v2918
    %v2955 = vmul.f32 %v2919, %v2919
    %v2956 = vmul.f32 %v2920, %v2920
    %v2957 = vmul.f32 %v2921, %v2921
    %v2958 = vadd.f32 %v2922, %v2923
    %v2959 = vadd.f32 %v2958, %v2924
    %v2960 = vadd.f32 %v2959, %v2925
    %v2961 = vadd.f32 %v2960, %v2926
    %v2962 = vadd.f32 %v2961, %v2927
    %v2963 = vadd.f32 %v2962, %v2928
    %v2964 = vadd.f32 %v2963, %v2929
    %v2965 = vsel %vm1412, %v2930, 0.0
    %v2966 = vadd.f32 %v2964, %v2965
    %v2967 = vadd.f32 %v2966, %v2931
    %v2968 = vadd.f32 %v2967, %v2932
    %v2969 = vadd.f32 %v2968, %v2933
    %v2970 = vadd.f32 %v2969, %v2934
    %v2971 = vadd.f32 %v2970, %v2935
    %v2972 = vadd.f32 %v2971, %v2936
    %v2973 = vadd.f32 %v2972, %v2937
    %v2974 = vadd.f32 %v2973, %v2938
    %v2975 = vsel %vm1412, %v2939, 0.0
    %v2976 = vadd.f32 %v2974, %v2975
    %v2977 = vadd.f32 %v2976, %v2940
    %v2978 = vadd.f32 %v2977, %v2941
    %v2979 = vadd.f32 %v2978, %v2942
    %v2980 = vadd.f32 %v2979, %v2943
    %v2981 = vadd.f32 %v2980, %v2944
    %v2982 = vadd.f32 %v2981, %v2945
    %v2983 = vadd.f32 %v2982, %v2946
    %v2984 = vadd.f32 %v2983, %v2947
    %v2985 = vsel %vm1412, %v2948, 0.0
    %v2986 = vadd.f32 %v2984, %v2985
    %v2987 = vadd.f32 %v2986, %v2949
    %v2988 = vadd.f32 %v2987, %v2950
    %v2989 = vadd.f32 %v2988, %v2951
    %v2990 = vadd.f32 %v2989, %v2952
    %v2991 = vadd.f32 %v2990, %v2953
    %v2992 = vadd.f32 %v2991, %v2954
    %v2993 = vadd.f32 %v2992, %v2955
    %v2994 = vadd.f32 %v2993, %v2956
    %v2995 = vsel %vm1412, %v2957, 0.0
    %v2996 = vadd.f32 %v2994, %v2995
    %2997 = vadd.xlane.f32.xlu0 %v2996
    %v2998 = vpop.xlane.xlu0 %2997
    %v2999 = vrot.slane %v2998, 4
    %v3000 = vadd.f32 %v2998, %v2999
    %v3001 = vrot.slane %v3000, 2
    %v3002 = vadd.f32 %v3000, %v3001
    %v3003 = vrot.slane %v3002, 1
    %v3004 = vadd.f32 %v3002, %v3003
    %s3005 = vtos %v3004
    %v3006 = vsel %vm480, %v2922, 0.0
    %v3007 = vsel %vm480, %v2923, 0.0
    %v3008 = vadd.f32 %v3006, %v3007
    %v3009 = vsel %vm480, %v2924, 0.0
    %v3010 = vadd.f32 %v3008, %v3009
    %v3011 = vsel %vm480, %v2925, 0.0
    %v3012 = vadd.f32 %v3010, %v3011
    %v3013 = vsel %vm480, %v2926, 0.0
    %v3014 = vadd.f32 %v3012, %v3013
    %v3015 = vsel %vm480, %v2927, 0.0
    %v3016 = vadd.f32 %v3014, %v3015
    %v3017 = vsel %vm480, %v2928, 0.0
    %v3018 = vadd.f32 %v3016, %v3017
    %v3019 = vsel %vm480, %v2929, 0.0
    %v3020 = vadd.f32 %v3018, %v3019
    %v3021 = vsel %vm1469, %v2930, 0.0
    %v3022 = vadd.f32 %v3020, %v3021
    %3023 = vadd.xlane.f32.xlu0 %v3022
    %v3024 = vpop.xlane.xlu0 %3023
    %v3025 = vrot.slane %v3024, 4
    %v3026 = vadd.f32 %v3024, %v3025
    %v3027 = vrot.slane %v3026, 2
    %v3028 = vadd.f32 %v3026, %v3027
    %v3029 = vrot.slane %v3028, 1
    %v3030 = vadd.f32 %v3028, %v3029
    %s3031 = vtos %v3030
    %s3032 = sadd.f32 %s3005, %s3031
    %v3042 = vrot.slane %v2949, 7
    %v3043 = vrot.slane %v2950, 7
    %v3044 = vrot.slane %v2951, 7
    %v3045 = vrot.slane %v2952, 7
    %v3046 = vrot.slane %v2953, 7
    %v3047 = vrot.slane %v2954, 7
    %v3048 = vrot.slane %v2955, 7
    %v3049 = vrot.slane %v2956, 7
    %v3050 = vrot.slane %v2957, 7
    %v3060 = vsel %vm480, %v3042, 0.0
    %v3061 = vsel %vm480, %v3043, 0.0
    %v3062 = vadd.f32 %v3060, %v3061
    %v3063 = vsel %vm480, %v3044, 0.0
    %v3064 = vadd.f32 %v3062, %v3063
    %v3065 = vsel %vm480, %v3045, 0.0
    %v3066 = vadd.f32 %v3064, %v3065
    %v3067 = vsel %vm480, %v3046, 0.0
    %v3068 = vadd.f32 %v3066, %v3067
    %v3069 = vsel %vm480, %v3047, 0.0
    %v3070 = vadd.f32 %v3068, %v3069
    %v3071 = vsel %vm480, %v3048, 0.0
    %v3072 = vadd.f32 %v3070, %v3071
    %v3073 = vsel %vm480, %v3049, 0.0
    %v3074 = vadd.f32 %v3072, %v3073
    %v3075 = vsel %vm1469, %v3050, 0.0
    %v3076 = vadd.f32 %v3074, %v3075
    %3077 = vadd.xlane.f32.xlu0 %v3076
    %v3078 = vpop.xlane.xlu0 %3077
    %v3079 = vrot.slane %v3078, 4
    %v3080 = vadd.f32 %v3078, %v3079
    %v3081 = vrot.slane %v3080, 2
    %v3082 = vadd.f32 %v3080, %v3081
    %v3083 = vrot.slane %v3082, 1
    %v3084 = vadd.f32 %v3082, %v3083
    %s3085 = vtos %v3084
    %s3086 = sadd.f32 %s3032, %s3085
    %s3087 = sadd.f32 %s2656, %s3086
    %v3088 = vmax.f32 %v2886, 0.0
    %v3089 = vmax.f32 %v2887, 0.0
    %v3090 = vmax.f32 %v2888, 0.0
    %v3091 = vmax.f32 %v2889, 0.0
    %v3092 = vmax.f32 %v2890, 0.0
    %v3093 = vmax.f32 %v2891, 0.0
    %v3094 = vmax.f32 %v2892, 0.0
    %v3095 = vmax.f32 %v2893, 0.0
    %v3096 = vmax.f32 %v2894, 0.0
    %v3097 = vmax.f32 %v2895, 0.0
    %v3098 = vmax.f32 %v2896, 0.0
    %v3099 = vmax.f32 %v2897, 0.0
    %v3100 = vmax.f32 %v2898, 0.0
    %v3101 = vmax.f32 %v2899, 0.0
    %v3102 = vmax.f32 %v2900, 0.0
    %v3103 = vmax.f32 %v2901, 0.0
    %v3104 = vmax.f32 %v2902, 0.0
    %v3105 = vmax.f32 %v2903, 0.0
    %v3106 = vmax.f32 %v2904, 0.0
    %v3107 = vmax.f32 %v2905, 0.0
    %v3108 = vmax.f32 %v2906, 0.0
    %v3109 = vmax.f32 %v2907, 0.0
    %v3110 = vmax.f32 %v2908, 0.0
    %v3111 = vmax.f32 %v2909, 0.0
    %v3112 = vmax.f32 %v2910, 0.0
    %v3113 = vmax.f32 %v2911, 0.0
    %v3114 = vmax.f32 %v2912, 0.0
    %v3115 = vmax.f32 %v2913, 0.0
    %v3116 = vmax.f32 %v2914, 0.0
    %v3117 = vmax.f32 %v2915, 0.0
    %v3118 = vmax.f32 %v2916, 0.0
    %v3119 = vmax.f32 %v2917, 0.0
    %v3120 = vmax.f32 %v2918, 0.0
    %v3121 = vmax.f32 %v2919, 0.0
    %v3122 = vmax.f32 %v2920, 0.0
    %v3123 = vmax.f32 %v2921, 0.0
    %v3124 = vadd.f32 %v3088, %v3089
    %v3125 = vadd.f32 %v3124, %v3090
    %v3126 = vadd.f32 %v3125, %v3091
    %v3127 = vadd.f32 %v3126, %v3092
    %v3128 = vadd.f32 %v3127, %v3093
    %v3129 = vadd.f32 %v3128, %v3094
    %v3130 = vadd.f32 %v3129, %v3095
    %v3131 = vsel %vm1412, %v3096, 0.0
    %v3132 = vadd.f32 %v3130, %v3131
    %v3133 = vadd.f32 %v3132, %v3097
    %v3134 = vadd.f32 %v3133, %v3098
    %v3135 = vadd.f32 %v3134, %v3099
    %v3136 = vadd.f32 %v3135, %v3100
    %v3137 = vadd.f32 %v3136, %v3101
    %v3138 = vadd.f32 %v3137, %v3102
    %v3139 = vadd.f32 %v3138, %v3103
    %v3140 = vadd.f32 %v3139, %v3104
    %v3141 = vsel %vm1412, %v3105, 0.0
    %v3142 = vadd.f32 %v3140, %v3141
    %v3143 = vadd.f32 %v3142, %v3106
    %v3144 = vadd.f32 %v3143, %v3107
    %v3145 = vadd.f32 %v3144, %v3108
    %v3146 = vadd.f32 %v3145, %v3109
    %v3147 = vadd.f32 %v3146, %v3110
    %v3148 = vadd.f32 %v3147, %v3111
    %v3149 = vadd.f32 %v3148, %v3112
    %v3150 = vadd.f32 %v3149, %v3113
    %v3151 = vsel %vm1412, %v3114, 0.0
    %v3152 = vadd.f32 %v3150, %v3151
    %v3153 = vadd.f32 %v3152, %v3115
    %v3154 = vadd.f32 %v3153, %v3116
    %v3155 = vadd.f32 %v3154, %v3117
    %v3156 = vadd.f32 %v3155, %v3118
    %v3157 = vadd.f32 %v3156, %v3119
    %v3158 = vadd.f32 %v3157, %v3120
    %v3159 = vadd.f32 %v3158, %v3121
    %v3160 = vadd.f32 %v3159, %v3122
    %v3161 = vsel %vm1412, %v3123, 0.0
    %v3162 = vadd.f32 %v3160, %v3161
    %3163 = vadd.xlane.f32.xlu0 %v3162
    %v3164 = vpop.xlane.xlu0 %3163
    %v3165 = vrot.slane %v3164, 4
    %v3166 = vadd.f32 %v3164, %v3165
    %v3167 = vrot.slane %v3166, 2
    %v3168 = vadd.f32 %v3166, %v3167
    %v3169 = vrot.slane %v3168, 1
    %v3170 = vadd.f32 %v3168, %v3169
    %s3171 = vtos %v3170
    %s3172 = sadd.f32 %s2768, %s3171
    %s3173 = scalar_lea.vmem %s0, 720
    %v3174 = vld [vmem:[%s3173] sm:$0xff]
    %v3175 = vld [vmem:[%s3173 + $0x8] sm:$0xff]
    %v3176 = vld [vmem:[%s3173 + $0x10] sm:$0xff]
    %v3177 = vld [vmem:[%s3173 + $0x18] sm:$0xff]
    %v3178 = vld [vmem:[%s3173 + $0x20] sm:$0xff]
    %v3179 = vld [vmem:[%s3173 + $0x28] sm:$0xff]
    %v3180 = vld [vmem:[%s3173 + $0x30] sm:$0xff]
    %v3181 = vld [vmem:[%s3173 + $0x38] sm:$0xff]
    %v3182 = vld [vmem:[%s3173 + $0x40] sm:$0xff]
    %v3183 = vld [vmem:[%s3173 + $0x48] sm:$0xff]
    %v3184 = vld [vmem:[%s3173 + $0x50] sm:$0xff]
    %v3185 = vld [vmem:[%s3173 + $0x58] sm:$0xff]
    %v3186 = vld [vmem:[%s3173 + $0x60] sm:$0xff]
    %v3187 = vld [vmem:[%s3173 + $0x68] sm:$0xff]
    %v3188 = vld [vmem:[%s3173 + $0x70] sm:$0xff]
    %v3189 = vld [vmem:[%s3173 + $0x78] sm:$0xff]
    %v3190 = vld [vmem:[%s3173 + $0x80] sm:$0xff]
    %v3191 = vld [vmem:[%s3173 + $0x88] sm:$0xff]
    %v3192 = vld [vmem:[%s3173 + $0x90] sm:$0xff]
    %v3193 = vld [vmem:[%s3173 + $0x98] sm:$0xff]
    %v3194 = vld [vmem:[%s3173 + $0xa0] sm:$0xff]
    %v3195 = vld [vmem:[%s3173 + $0xa8] sm:$0xff]
    %v3196 = vld [vmem:[%s3173 + $0xb0] sm:$0xff]
    %v3197 = vld [vmem:[%s3173 + $0xb8] sm:$0xff]
    %v3198 = vld [vmem:[%s3173 + $0xc0] sm:$0xff]
    %v3199 = vld [vmem:[%s3173 + $0xc8] sm:$0xff]
    %v3200 = vld [vmem:[%s3173 + $0xd0] sm:$0xff]
    %v3201 = vld [vmem:[%s3173 + $0xd8] sm:$0xff]
    %v3202 = vld [vmem:[%s3173 + $0xe0] sm:$0xff]
    %v3203 = vld [vmem:[%s3173 + $0xe8] sm:$0xff]
    %v3204 = vld [vmem:[%s3173 + $0xf0] sm:$0xff]
    %v3205 = vld [vmem:[%s3173 + $0xf8] sm:$0xff]
    %v3206 = vld [vmem:[%s3173 + $0x100] sm:$0xff]
    %v3207 = vld [vmem:[%s3173 + $0x108] sm:$0xff]
    %v3208 = vld [vmem:[%s3173 + $0x110] sm:$0xff]
    %v3209 = vld [vmem:[%s3173 + $0x118] sm:$0xff]
    %v3210 = vld [vmem:[%s3173 + $0x120] sm:$0x1]
    %v3211 = vld [vmem:[%s3173 + $0x128] sm:$0x1]
    %v3212 = vld [vmem:[%s3173 + $0x130] sm:$0x1]
    %v3213 = vld [vmem:[%s3173 + $0x138] sm:$0x1]
    %v3214 = vld [vmem:[%s3173 + $0x140] sm:$0x1]
    %v3215 = vld [vmem:[%s3173 + $0x148] sm:$0x1]
    %v3216 = vld [vmem:[%s3173 + $0x150] sm:$0x1]
    %v3217 = vld [vmem:[%s3173 + $0x158] sm:$0x1]
    %v3218 = vld [vmem:[%s3173 + $0x160] sm:$0x1]
    %3264 = vrot.lane.b32.xlu0 %v3174, 127
    %v3265 = vpop.permute.xlu0 %3264
    %3266 = vrot.lane.b32.xlu0 %v3175, 127
    %v3267 = vpop.permute.xlu0 %3266
    %3268 = vrot.lane.b32.xlu0 %v3176, 127
    %v3269 = vpop.permute.xlu0 %3268
    %3270 = vrot.lane.b32.xlu0 %v3177, 127
    %v3271 = vpop.permute.xlu0 %3270
    %3272 = vrot.lane.b32.xlu0 %v3178, 127
    %v3273 = vpop.permute.xlu0 %3272
    %3274 = vrot.lane.b32.xlu0 %v3179, 127
    %v3275 = vpop.permute.xlu0 %3274
    %3276 = vrot.lane.b32.xlu0 %v3180, 127
    %v3277 = vpop.permute.xlu0 %3276
    %3278 = vrot.lane.b32.xlu0 %v3181, 127
    %v3279 = vpop.permute.xlu0 %3278
    %3280 = vrot.lane.b32.xlu0 %v3182, 127
    %v3281 = vpop.permute.xlu0 %3280
    %3282 = vrot.lane.b32.xlu0 %v3183, 127
    %v3283 = vpop.permute.xlu0 %3282
    %3284 = vrot.lane.b32.xlu0 %v3184, 127
    %v3285 = vpop.permute.xlu0 %3284
    %3286 = vrot.lane.b32.xlu0 %v3185, 127
    %v3287 = vpop.permute.xlu0 %3286
    %3288 = vrot.lane.b32.xlu0 %v3186, 127
    %v3289 = vpop.permute.xlu0 %3288
    %3290 = vrot.lane.b32.xlu0 %v3187, 127
    %v3291 = vpop.permute.xlu0 %3290
    %3292 = vrot.lane.b32.xlu0 %v3188, 127
    %v3293 = vpop.permute.xlu0 %3292
    %3294 = vrot.lane.b32.xlu0 %v3189, 127
    %v3295 = vpop.permute.xlu0 %3294
    %3296 = vrot.lane.b32.xlu0 %v3190, 127
    %v3297 = vpop.permute.xlu0 %3296
    %3298 = vrot.lane.b32.xlu0 %v3191, 127
    %v3299 = vpop.permute.xlu0 %3298
    %3300 = vrot.lane.b32.xlu0 %v3192, 127
    %v3301 = vpop.permute.xlu0 %3300
    %3302 = vrot.lane.b32.xlu0 %v3193, 127
    %v3303 = vpop.permute.xlu0 %3302
    %3304 = vrot.lane.b32.xlu0 %v3194, 127
    %v3305 = vpop.permute.xlu0 %3304
    %3306 = vrot.lane.b32.xlu0 %v3195, 127
    %v3307 = vpop.permute.xlu0 %3306
    %3308 = vrot.lane.b32.xlu0 %v3196, 127
    %v3309 = vpop.permute.xlu0 %3308
    %3310 = vrot.lane.b32.xlu0 %v3197, 127
    %v3311 = vpop.permute.xlu0 %3310
    %3312 = vrot.lane.b32.xlu0 %v3198, 127
    %v3313 = vpop.permute.xlu0 %3312
    %3314 = vrot.lane.b32.xlu0 %v3199, 127
    %v3315 = vpop.permute.xlu0 %3314
    %3316 = vrot.lane.b32.xlu0 %v3200, 127
    %v3317 = vpop.permute.xlu0 %3316
    %3318 = vrot.lane.b32.xlu0 %v3201, 127
    %v3319 = vpop.permute.xlu0 %3318
    %3320 = vrot.lane.b32.xlu0 %v3202, 127
    %v3321 = vpop.permute.xlu0 %3320
    %3322 = vrot.lane.b32.xlu0 %v3203, 127
    %v3323 = vpop.permute.xlu0 %3322
    %3324 = vrot.lane.b32.xlu0 %v3204, 127
    %v3325 = vpop.permute.xlu0 %3324
    %3326 = vrot.lane.b32.xlu0 %v3205, 127
    %v3327 = vpop.permute.xlu0 %3326
    %3328 = vrot.lane.b32.xlu0 %v3206, 127
    %v3329 = vpop.permute.xlu0 %3328
    %3330 = vrot.lane.b32.xlu0 %v3207, 127
    %v3331 = vpop.permute.xlu0 %3330
    %3332 = vrot.lane.b32.xlu0 %v3208, 127
    %v3333 = vpop.permute.xlu0 %3332
    %3334 = vrot.lane.b32.xlu0 %v3209, 127
    %v3335 = vpop.permute.xlu0 %3334
    %3336 = vrot.lane.b32.xlu0 %v3210, 127
    %v3337 = vpop.permute.xlu0 %3336
    %3338 = vrot.lane.b32.xlu0 %v3211, 127
    %v3339 = vpop.permute.xlu0 %3338
    %3340 = vrot.lane.b32.xlu0 %v3212, 127
    %v3341 = vpop.permute.xlu0 %3340
    %3342 = vrot.lane.b32.xlu0 %v3213, 127
    %v3343 = vpop.permute.xlu0 %3342
    %3344 = vrot.lane.b32.xlu0 %v3214, 127
    %v3345 = vpop.permute.xlu0 %3344
    %3346 = vrot.lane.b32.xlu0 %v3215, 127
    %v3347 = vpop.permute.xlu0 %3346
    %3348 = vrot.lane.b32.xlu0 %v3216, 127
    %v3349 = vpop.permute.xlu0 %3348
    %3350 = vrot.lane.b32.xlu0 %v3217, 127
    %v3351 = vpop.permute.xlu0 %3350
    %3352 = vrot.lane.b32.xlu0 %v3218, 127
    %v3353 = vpop.permute.xlu0 %3352
    %v3354 = vsel %vm199, %v3265, %v3267
    %v3355 = vsel %vm199, %v3267, %v3269
    %v3356 = vsel %vm199, %v3269, %v3271
    %v3357 = vsel %vm199, %v3271, %v3273
    %v3358 = vsel %vm199, %v3273, %v3275
    %v3359 = vsel %vm199, %v3275, %v3277
    %v3360 = vsel %vm199, %v3277, %v3279
    %v3361 = vsel %vm199, %v3279, %v3281
    %v3362 = vsel %vm199, %v3283, %v3285
    %v3363 = vsel %vm199, %v3285, %v3287
    %v3364 = vsel %vm199, %v3287, %v3289
    %v3365 = vsel %vm199, %v3289, %v3291
    %v3366 = vsel %vm199, %v3291, %v3293
    %v3367 = vsel %vm199, %v3293, %v3295
    %v3368 = vsel %vm199, %v3295, %v3297
    %v3369 = vsel %vm199, %v3297, %v3299
    %v3370 = vsel %vm199, %v3301, %v3303
    %v3371 = vsel %vm199, %v3303, %v3305
    %v3372 = vsel %vm199, %v3305, %v3307
    %v3373 = vsel %vm199, %v3307, %v3309
    %v3374 = vsel %vm199, %v3309, %v3311
    %v3375 = vsel %vm199, %v3311, %v3313
    %v3376 = vsel %vm199, %v3313, %v3315
    %v3377 = vsel %vm199, %v3315, %v3317
    %v3378 = vsel %vm199, %v3319, %v3321
    %v3379 = vsel %vm199, %v3321, %v3323
    %v3380 = vsel %vm199, %v3323, %v3325
    %v3381 = vsel %vm199, %v3325, %v3327
    %v3382 = vsel %vm199, %v3327, %v3329
    %v3383 = vsel %vm199, %v3329, %v3331
    %v3384 = vsel %vm199, %v3331, %v3333
    %v3385 = vsel %vm199, %v3333, %v3335
    %v3386 = vsel %vm199, %v3337, %v3339
    %v3387 = vsel %vm199, %v3339, %v3341
    %v3388 = vsel %vm199, %v3341, %v3343
    %v3389 = vsel %vm199, %v3343, %v3345
    %v3390 = vsel %vm199, %v3345, %v3347
    %v3391 = vsel %vm199, %v3347, %v3349
    %v3392 = vsel %vm199, %v3349, %v3351
    %v3393 = vsel %vm199, %v3351, %v3353
    %v3439 = vsub.f32 %v3174, %v3354
    %v3440 = vsub.f32 %v3175, %v3355
    %v3441 = vsub.f32 %v3176, %v3356
    %v3442 = vsub.f32 %v3177, %v3357
    %v3443 = vsub.f32 %v3178, %v3358
    %v3444 = vsub.f32 %v3179, %v3359
    %v3445 = vsub.f32 %v3180, %v3360
    %v3446 = vsub.f32 %v3181, %v3361
    %v3447 = vsub.f32 %v3182, %v3281
    %v3448 = vsub.f32 %v3183, %v3362
    %v3449 = vsub.f32 %v3184, %v3363
    %v3450 = vsub.f32 %v3185, %v3364
    %v3451 = vsub.f32 %v3186, %v3365
    %v3452 = vsub.f32 %v3187, %v3366
    %v3453 = vsub.f32 %v3188, %v3367
    %v3454 = vsub.f32 %v3189, %v3368
    %v3455 = vsub.f32 %v3190, %v3369
    %v3456 = vsub.f32 %v3191, %v3299
    %v3457 = vsub.f32 %v3192, %v3370
    %v3458 = vsub.f32 %v3193, %v3371
    %v3459 = vsub.f32 %v3194, %v3372
    %v3460 = vsub.f32 %v3195, %v3373
    %v3461 = vsub.f32 %v3196, %v3374
    %v3462 = vsub.f32 %v3197, %v3375
    %v3463 = vsub.f32 %v3198, %v3376
    %v3464 = vsub.f32 %v3199, %v3377
    %v3465 = vsub.f32 %v3200, %v3317
    %v3466 = vsub.f32 %v3201, %v3378
    %v3467 = vsub.f32 %v3202, %v3379
    %v3468 = vsub.f32 %v3203, %v3380
    %v3469 = vsub.f32 %v3204, %v3381
    %v3470 = vsub.f32 %v3205, %v3382
    %v3471 = vsub.f32 %v3206, %v3383
    %v3472 = vsub.f32 %v3207, %v3384
    %v3473 = vsub.f32 %v3208, %v3385
    %v3474 = vsub.f32 %v3209, %v3335
    %v3475 = vsub.f32 %v3210, %v3386
    %v3476 = vsub.f32 %v3211, %v3387
    %v3477 = vsub.f32 %v3212, %v3388
    %v3478 = vsub.f32 %v3213, %v3389
    %v3479 = vsub.f32 %v3214, %v3390
    %v3480 = vsub.f32 %v3215, %v3391
    %v3481 = vsub.f32 %v3216, %v3392
    %v3482 = vsub.f32 %v3217, %v3393
    %v3483 = vsub.f32 %v3218, %v3353
    %v3484 = vmul.f32 %v3439, %v3439
    %v3485 = vmul.f32 %v3440, %v3440
    %v3486 = vmul.f32 %v3441, %v3441
    %v3487 = vmul.f32 %v3442, %v3442
    %v3488 = vmul.f32 %v3443, %v3443
    %v3489 = vmul.f32 %v3444, %v3444
    %v3490 = vmul.f32 %v3445, %v3445
    %v3491 = vmul.f32 %v3446, %v3446
    %v3492 = vmul.f32 %v3447, %v3447
    %v3493 = vmul.f32 %v3448, %v3448
    %v3494 = vmul.f32 %v3449, %v3449
    %v3495 = vmul.f32 %v3450, %v3450
    %v3496 = vmul.f32 %v3451, %v3451
    %v3497 = vmul.f32 %v3452, %v3452
    %v3498 = vmul.f32 %v3453, %v3453
    %v3499 = vmul.f32 %v3454, %v3454
    %v3500 = vmul.f32 %v3455, %v3455
    %v3501 = vmul.f32 %v3456, %v3456
    %v3502 = vmul.f32 %v3457, %v3457
    %v3503 = vmul.f32 %v3458, %v3458
    %v3504 = vmul.f32 %v3459, %v3459
    %v3505 = vmul.f32 %v3460, %v3460
    %v3506 = vmul.f32 %v3461, %v3461
    %v3507 = vmul.f32 %v3462, %v3462
    %v3508 = vmul.f32 %v3463, %v3463
    %v3509 = vmul.f32 %v3464, %v3464
    %v3510 = vmul.f32 %v3465, %v3465
    %v3511 = vmul.f32 %v3466, %v3466
    %v3512 = vmul.f32 %v3467, %v3467
    %v3513 = vmul.f32 %v3468, %v3468
    %v3514 = vmul.f32 %v3469, %v3469
    %v3515 = vmul.f32 %v3470, %v3470
    %v3516 = vmul.f32 %v3471, %v3471
    %v3517 = vmul.f32 %v3472, %v3472
    %v3518 = vmul.f32 %v3473, %v3473
    %v3519 = vmul.f32 %v3474, %v3474
    %v3520 = vmul.f32 %v3475, %v3475
    %v3521 = vmul.f32 %v3476, %v3476
    %v3522 = vmul.f32 %v3477, %v3477
    %v3523 = vmul.f32 %v3478, %v3478
    %v3524 = vmul.f32 %v3479, %v3479
    %v3525 = vmul.f32 %v3480, %v3480
    %v3526 = vmul.f32 %v3481, %v3481
    %v3527 = vmul.f32 %v3482, %v3482
    %v3528 = vmul.f32 %v3483, %v3483
    %v3529 = vmul.f32 %v3484, %v377
    %v3530 = vmul.f32 %v3485, %v378
    %v3531 = vmul.f32 %v3486, %v379
    %v3532 = vmul.f32 %v3487, %v380
    %v3533 = vmul.f32 %v3488, %v381
    %v3534 = vmul.f32 %v3489, %v382
    %v3535 = vmul.f32 %v3490, %v383
    %v3536 = vmul.f32 %v3491, %v384
    %v3537 = vmul.f32 %v3492, %v385
    %v3538 = vmul.f32 %v3493, %v377
    %v3539 = vmul.f32 %v3494, %v378
    %v3540 = vmul.f32 %v3495, %v379
    %v3541 = vmul.f32 %v3496, %v380
    %v3542 = vmul.f32 %v3497, %v381
    %v3543 = vmul.f32 %v3498, %v382
    %v3544 = vmul.f32 %v3499, %v383
    %v3545 = vmul.f32 %v3500, %v384
    %v3546 = vmul.f32 %v3501, %v385
    %v3547 = vmul.f32 %v3502, %v377
    %v3548 = vmul.f32 %v3503, %v378
    %v3549 = vmul.f32 %v3504, %v379
    %v3550 = vmul.f32 %v3505, %v380
    %v3551 = vmul.f32 %v3506, %v381
    %v3552 = vmul.f32 %v3507, %v382
    %v3553 = vmul.f32 %v3508, %v383
    %v3554 = vmul.f32 %v3509, %v384
    %v3555 = vmul.f32 %v3510, %v385
    %v3556 = vmul.f32 %v3511, %v377
    %v3557 = vmul.f32 %v3512, %v378
    %v3558 = vmul.f32 %v3513, %v379
    %v3559 = vmul.f32 %v3514, %v380
    %v3560 = vmul.f32 %v3515, %v381
    %v3561 = vmul.f32 %v3516, %v382
    %v3562 = vmul.f32 %v3517, %v383
    %v3563 = vmul.f32 %v3518, %v384
    %v3564 = vmul.f32 %v3519, %v385
    %v3565 = vmul.f32 %v3520, %v377
    %v3566 = vmul.f32 %v3521, %v378
    %v3567 = vmul.f32 %v3522, %v379
    %v3568 = vmul.f32 %v3523, %v380
    %v3569 = vmul.f32 %v3524, %v381
    %v3570 = vmul.f32 %v3525, %v382
    %v3571 = vmul.f32 %v3526, %v383
    %v3572 = vmul.f32 %v3527, %v384
    %v3573 = vmul.f32 %v3528, %v385
    %v3574 = vadd.f32 %v3529, %v3530
    %v3575 = vadd.f32 %v3574, %v3531
    %v3576 = vadd.f32 %v3575, %v3532
    %v3577 = vadd.f32 %v3576, %v3533
    %v3578 = vadd.f32 %v3577, %v3534
    %v3579 = vadd.f32 %v3578, %v3535
    %v3580 = vadd.f32 %v3579, %v3536
    %v3581 = vsel %vm447, %v3537, 0.0
    %v3582 = vadd.f32 %v3580, %v3581
    %v3583 = vadd.f32 %v3582, %v3538
    %v3584 = vadd.f32 %v3583, %v3539
    %v3585 = vadd.f32 %v3584, %v3540
    %v3586 = vadd.f32 %v3585, %v3541
    %v3587 = vadd.f32 %v3586, %v3542
    %v3588 = vadd.f32 %v3587, %v3543
    %v3589 = vadd.f32 %v3588, %v3544
    %v3590 = vadd.f32 %v3589, %v3545
    %v3591 = vsel %vm447, %v3546, 0.0
    %v3592 = vadd.f32 %v3590, %v3591
    %v3593 = vadd.f32 %v3592, %v3547
    %v3594 = vadd.f32 %v3593, %v3548
    %v3595 = vadd.f32 %v3594, %v3549
    %v3596 = vadd.f32 %v3595, %v3550
    %v3597 = vadd.f32 %v3596, %v3551
    %v3598 = vadd.f32 %v3597, %v3552
    %v3599 = vadd.f32 %v3598, %v3553
    %v3600 = vadd.f32 %v3599, %v3554
    %v3601 = vsel %vm447, %v3555, 0.0
    %v3602 = vadd.f32 %v3600, %v3601
    %v3603 = vadd.f32 %v3602, %v3556
    %v3604 = vadd.f32 %v3603, %v3557
    %v3605 = vadd.f32 %v3604, %v3558
    %v3606 = vadd.f32 %v3605, %v3559
    %v3607 = vadd.f32 %v3606, %v3560
    %v3608 = vadd.f32 %v3607, %v3561
    %v3609 = vadd.f32 %v3608, %v3562
    %v3610 = vadd.f32 %v3609, %v3563
    %v3611 = vsel %vm447, %v3564, 0.0
    %v3612 = vadd.f32 %v3610, %v3611
    %v3613 = vsel %vm480, %v3565, 0.0
    %v3614 = vadd.f32 %v3612, %v3613
    %v3615 = vsel %vm480, %v3566, 0.0
    %v3616 = vadd.f32 %v3614, %v3615
    %v3617 = vsel %vm480, %v3567, 0.0
    %v3618 = vadd.f32 %v3616, %v3617
    %v3619 = vsel %vm480, %v3568, 0.0
    %v3620 = vadd.f32 %v3618, %v3619
    %v3621 = vsel %vm480, %v3569, 0.0
    %v3622 = vadd.f32 %v3620, %v3621
    %v3623 = vsel %vm480, %v3570, 0.0
    %v3624 = vadd.f32 %v3622, %v3623
    %v3625 = vsel %vm480, %v3571, 0.0
    %v3626 = vadd.f32 %v3624, %v3625
    %v3627 = vsel %vm480, %v3572, 0.0
    %v3628 = vadd.f32 %v3626, %v3627
    %v3629 = vsel %vm497, %v3573, 0.0
    %v3630 = vadd.f32 %v3628, %v3629
    %3631 = vadd.xlane.f32.xlu0 %v3630
    %v3632 = vpop.xlane.xlu0 %3631
    %v3633 = vrot.slane %v3632, 4
    %v3634 = vadd.f32 %v3632, %v3633
    %v3635 = vrot.slane %v3634, 2
    %v3636 = vadd.f32 %v3634, %v3635
    %v3637 = vrot.slane %v3636, 1
    %v3638 = vadd.f32 %v3636, %v3637
    %s3639 = vtos %v3638
    %s3640 = sadd.f32 %s3087, %s3639
    %v3641 = vmax.f32 %v3439, 0.0
    %v3642 = vmax.f32 %v3440, 0.0
    %v3643 = vmax.f32 %v3441, 0.0
    %v3644 = vmax.f32 %v3442, 0.0
    %v3645 = vmax.f32 %v3443, 0.0
    %v3646 = vmax.f32 %v3444, 0.0
    %v3647 = vmax.f32 %v3445, 0.0
    %v3648 = vmax.f32 %v3446, 0.0
    %v3649 = vmax.f32 %v3447, 0.0
    %v3650 = vmax.f32 %v3448, 0.0
    %v3651 = vmax.f32 %v3449, 0.0
    %v3652 = vmax.f32 %v3450, 0.0
    %v3653 = vmax.f32 %v3451, 0.0
    %v3654 = vmax.f32 %v3452, 0.0
    %v3655 = vmax.f32 %v3453, 0.0
    %v3656 = vmax.f32 %v3454, 0.0
    %v3657 = vmax.f32 %v3455, 0.0
    %v3658 = vmax.f32 %v3456, 0.0
    %v3659 = vmax.f32 %v3457, 0.0
    %v3660 = vmax.f32 %v3458, 0.0
    %v3661 = vmax.f32 %v3459, 0.0
    %v3662 = vmax.f32 %v3460, 0.0
    %v3663 = vmax.f32 %v3461, 0.0
    %v3664 = vmax.f32 %v3462, 0.0
    %v3665 = vmax.f32 %v3463, 0.0
    %v3666 = vmax.f32 %v3464, 0.0
    %v3667 = vmax.f32 %v3465, 0.0
    %v3668 = vmax.f32 %v3466, 0.0
    %v3669 = vmax.f32 %v3467, 0.0
    %v3670 = vmax.f32 %v3468, 0.0
    %v3671 = vmax.f32 %v3469, 0.0
    %v3672 = vmax.f32 %v3470, 0.0
    %v3673 = vmax.f32 %v3471, 0.0
    %v3674 = vmax.f32 %v3472, 0.0
    %v3675 = vmax.f32 %v3473, 0.0
    %v3676 = vmax.f32 %v3474, 0.0
    %v3677 = vmax.f32 %v3475, 0.0
    %v3678 = vmax.f32 %v3476, 0.0
    %v3679 = vmax.f32 %v3477, 0.0
    %v3680 = vmax.f32 %v3478, 0.0
    %v3681 = vmax.f32 %v3479, 0.0
    %v3682 = vmax.f32 %v3480, 0.0
    %v3683 = vmax.f32 %v3481, 0.0
    %v3684 = vmax.f32 %v3482, 0.0
    %v3685 = vmax.f32 %v3483, 0.0
    %v3686 = vmul.f32 %v3641, %v557
    %v3687 = vmul.f32 %v3642, %v558
    %v3688 = vmul.f32 %v3643, %v559
    %v3689 = vmul.f32 %v3644, %v560
    %v3690 = vmul.f32 %v3645, %v561
    %v3691 = vmul.f32 %v3646, %v562
    %v3692 = vmul.f32 %v3647, %v563
    %v3693 = vmul.f32 %v3648, %v564
    %v3694 = vmul.f32 %v3649, %v565
    %v3695 = vmul.f32 %v3650, %v557
    %v3696 = vmul.f32 %v3651, %v558
    %v3697 = vmul.f32 %v3652, %v559
    %v3698 = vmul.f32 %v3653, %v560
    %v3699 = vmul.f32 %v3654, %v561
    %v3700 = vmul.f32 %v3655, %v562
    %v3701 = vmul.f32 %v3656, %v563
    %v3702 = vmul.f32 %v3657, %v564
    %v3703 = vmul.f32 %v3658, %v565
    %v3704 = vmul.f32 %v3659, %v557
    %v3705 = vmul.f32 %v3660, %v558
    %v3706 = vmul.f32 %v3661, %v559
    %v3707 = vmul.f32 %v3662, %v560
    %v3708 = vmul.f32 %v3663, %v561
    %v3709 = vmul.f32 %v3664, %v562
    %v3710 = vmul.f32 %v3665, %v563
    %v3711 = vmul.f32 %v3666, %v564
    %v3712 = vmul.f32 %v3667, %v565
    %v3713 = vmul.f32 %v3668, %v557
    %v3714 = vmul.f32 %v3669, %v558
    %v3715 = vmul.f32 %v3670, %v559
    %v3716 = vmul.f32 %v3671, %v560
    %v3717 = vmul.f32 %v3672, %v561
    %v3718 = vmul.f32 %v3673, %v562
    %v3719 = vmul.f32 %v3674, %v563
    %v3720 = vmul.f32 %v3675, %v564
    %v3721 = vmul.f32 %v3676, %v565
    %v3722 = vmul.f32 %v3677, %v557
    %v3723 = vmul.f32 %v3678, %v558
    %v3724 = vmul.f32 %v3679, %v559
    %v3725 = vmul.f32 %v3680, %v560
    %v3726 = vmul.f32 %v3681, %v561
    %v3727 = vmul.f32 %v3682, %v562
    %v3728 = vmul.f32 %v3683, %v563
    %v3729 = vmul.f32 %v3684, %v564
    %v3730 = vmul.f32 %v3685, %v565
    %v3731 = vadd.f32 %v3686, %v3687
    %v3732 = vadd.f32 %v3731, %v3688
    %v3733 = vadd.f32 %v3732, %v3689
    %v3734 = vadd.f32 %v3733, %v3690
    %v3735 = vadd.f32 %v3734, %v3691
    %v3736 = vadd.f32 %v3735, %v3692
    %v3737 = vadd.f32 %v3736, %v3693
    %v3738 = vsel %vm447, %v3694, 0.0
    %v3739 = vadd.f32 %v3737, %v3738
    %v3740 = vadd.f32 %v3739, %v3695
    %v3741 = vadd.f32 %v3740, %v3696
    %v3742 = vadd.f32 %v3741, %v3697
    %v3743 = vadd.f32 %v3742, %v3698
    %v3744 = vadd.f32 %v3743, %v3699
    %v3745 = vadd.f32 %v3744, %v3700
    %v3746 = vadd.f32 %v3745, %v3701
    %v3747 = vadd.f32 %v3746, %v3702
    %v3748 = vsel %vm447, %v3703, 0.0
    %v3749 = vadd.f32 %v3747, %v3748
    %v3750 = vadd.f32 %v3749, %v3704
    %v3751 = vadd.f32 %v3750, %v3705
    %v3752 = vadd.f32 %v3751, %v3706
    %v3753 = vadd.f32 %v3752, %v3707
    %v3754 = vadd.f32 %v3753, %v3708
    %v3755 = vadd.f32 %v3754, %v3709
    %v3756 = vadd.f32 %v3755, %v3710
    %v3757 = vadd.f32 %v3756, %v3711
    %v3758 = vsel %vm447, %v3712, 0.0
    %v3759 = vadd.f32 %v3757, %v3758
    %v3760 = vadd.f32 %v3759, %v3713
    %v3761 = vadd.f32 %v3760, %v3714
    %v3762 = vadd.f32 %v3761, %v3715
    %v3763 = vadd.f32 %v3762, %v3716
    %v3764 = vadd.f32 %v3763, %v3717
    %v3765 = vadd.f32 %v3764, %v3718
    %v3766 = vadd.f32 %v3765, %v3719
    %v3767 = vadd.f32 %v3766, %v3720
    %v3768 = vsel %vm447, %v3721, 0.0
    %v3769 = vadd.f32 %v3767, %v3768
    %v3770 = vsel %vm480, %v3722, 0.0
    %v3771 = vadd.f32 %v3769, %v3770
    %v3772 = vsel %vm480, %v3723, 0.0
    %v3773 = vadd.f32 %v3771, %v3772
    %v3774 = vsel %vm480, %v3724, 0.0
    %v3775 = vadd.f32 %v3773, %v3774
    %v3776 = vsel %vm480, %v3725, 0.0
    %v3777 = vadd.f32 %v3775, %v3776
    %v3778 = vsel %vm480, %v3726, 0.0
    %v3779 = vadd.f32 %v3777, %v3778
    %v3780 = vsel %vm480, %v3727, 0.0
    %v3781 = vadd.f32 %v3779, %v3780
    %v3782 = vsel %vm480, %v3728, 0.0
    %v3783 = vadd.f32 %v3781, %v3782
    %v3784 = vsel %vm480, %v3729, 0.0
    %v3785 = vadd.f32 %v3783, %v3784
    %v3786 = vsel %vm497, %v3730, 0.0
    %v3787 = vadd.f32 %v3785, %v3786
    %3788 = vadd.xlane.f32.xlu0 %v3787
    %v3789 = vpop.xlane.xlu0 %3788
    %v3790 = vrot.slane %v3789, 4
    %v3791 = vadd.f32 %v3789, %v3790
    %v3792 = vrot.slane %v3791, 2
    %v3793 = vadd.f32 %v3791, %v3792
    %v3794 = vrot.slane %v3793, 1
    %v3795 = vadd.f32 %v3793, %v3794
    %s3796 = vtos %v3795
    %s3797 = sadd.f32 %s3172, %s3796
    %3798 = vrot.lane.b32.xlu0 %v3174, 95
    %v3799 = vpop.permute.xlu0 %3798
    %3800 = vrot.lane.b32.xlu0 %v3175, 95
    %v3801 = vpop.permute.xlu0 %3800
    %3802 = vrot.lane.b32.xlu0 %v3176, 95
    %v3803 = vpop.permute.xlu0 %3802
    %3804 = vrot.lane.b32.xlu0 %v3177, 95
    %v3805 = vpop.permute.xlu0 %3804
    %3806 = vrot.lane.b32.xlu0 %v3178, 95
    %v3807 = vpop.permute.xlu0 %3806
    %3808 = vrot.lane.b32.xlu0 %v3179, 95
    %v3809 = vpop.permute.xlu0 %3808
    %3810 = vrot.lane.b32.xlu0 %v3180, 95
    %v3811 = vpop.permute.xlu0 %3810
    %3812 = vrot.lane.b32.xlu0 %v3181, 95
    %v3813 = vpop.permute.xlu0 %3812
    %3814 = vrot.lane.b32.xlu0 %v3182, 95
    %v3815 = vpop.permute.xlu0 %3814
    %3816 = vrot.lane.b32.xlu0 %v3183, 95
    %v3817 = vpop.permute.xlu0 %3816
    %3818 = vrot.lane.b32.xlu0 %v3184, 95
    %v3819 = vpop.permute.xlu0 %3818
    %3820 = vrot.lane.b32.xlu0 %v3185, 95
    %v3821 = vpop.permute.xlu0 %3820
    %3822 = vrot.lane.b32.xlu0 %v3186, 95
    %v3823 = vpop.permute.xlu0 %3822
    %3824 = vrot.lane.b32.xlu0 %v3187, 95
    %v3825 = vpop.permute.xlu0 %3824
    %3826 = vrot.lane.b32.xlu0 %v3188, 95
    %v3827 = vpop.permute.xlu0 %3826
    %3828 = vrot.lane.b32.xlu0 %v3189, 95
    %v3829 = vpop.permute.xlu0 %3828
    %3830 = vrot.lane.b32.xlu0 %v3190, 95
    %v3831 = vpop.permute.xlu0 %3830
    %3832 = vrot.lane.b32.xlu0 %v3191, 95
    %v3833 = vpop.permute.xlu0 %3832
    %3834 = vrot.lane.b32.xlu0 %v3192, 95
    %v3835 = vpop.permute.xlu0 %3834
    %3836 = vrot.lane.b32.xlu0 %v3193, 95
    %v3837 = vpop.permute.xlu0 %3836
    %3838 = vrot.lane.b32.xlu0 %v3194, 95
    %v3839 = vpop.permute.xlu0 %3838
    %3840 = vrot.lane.b32.xlu0 %v3195, 95
    %v3841 = vpop.permute.xlu0 %3840
    %3842 = vrot.lane.b32.xlu0 %v3196, 95
    %v3843 = vpop.permute.xlu0 %3842
    %3844 = vrot.lane.b32.xlu0 %v3197, 95
    %v3845 = vpop.permute.xlu0 %3844
    %3846 = vrot.lane.b32.xlu0 %v3198, 95
    %v3847 = vpop.permute.xlu0 %3846
    %3848 = vrot.lane.b32.xlu0 %v3199, 95
    %v3849 = vpop.permute.xlu0 %3848
    %3850 = vrot.lane.b32.xlu0 %v3200, 95
    %v3851 = vpop.permute.xlu0 %3850
    %3852 = vrot.lane.b32.xlu0 %v3201, 95
    %v3853 = vpop.permute.xlu0 %3852
    %3854 = vrot.lane.b32.xlu0 %v3202, 95
    %v3855 = vpop.permute.xlu0 %3854
    %3856 = vrot.lane.b32.xlu0 %v3203, 95
    %v3857 = vpop.permute.xlu0 %3856
    %3858 = vrot.lane.b32.xlu0 %v3204, 95
    %v3859 = vpop.permute.xlu0 %3858
    %3860 = vrot.lane.b32.xlu0 %v3205, 95
    %v3861 = vpop.permute.xlu0 %3860
    %3862 = vrot.lane.b32.xlu0 %v3206, 95
    %v3863 = vpop.permute.xlu0 %3862
    %3864 = vrot.lane.b32.xlu0 %v3207, 95
    %v3865 = vpop.permute.xlu0 %3864
    %3866 = vrot.lane.b32.xlu0 %v3208, 95
    %v3867 = vpop.permute.xlu0 %3866
    %3868 = vrot.lane.b32.xlu0 %v3209, 95
    %v3869 = vpop.permute.xlu0 %3868
    %3870 = vrot.lane.b32.xlu0 %v3210, 95
    %v3871 = vpop.permute.xlu0 %3870
    %3872 = vrot.lane.b32.xlu0 %v3211, 95
    %v3873 = vpop.permute.xlu0 %3872
    %3874 = vrot.lane.b32.xlu0 %v3212, 95
    %v3875 = vpop.permute.xlu0 %3874
    %3876 = vrot.lane.b32.xlu0 %v3213, 95
    %v3877 = vpop.permute.xlu0 %3876
    %3878 = vrot.lane.b32.xlu0 %v3214, 95
    %v3879 = vpop.permute.xlu0 %3878
    %3880 = vrot.lane.b32.xlu0 %v3215, 95
    %v3881 = vpop.permute.xlu0 %3880
    %3882 = vrot.lane.b32.xlu0 %v3216, 95
    %v3883 = vpop.permute.xlu0 %3882
    %3884 = vrot.lane.b32.xlu0 %v3217, 95
    %v3885 = vpop.permute.xlu0 %3884
    %3886 = vrot.lane.b32.xlu0 %v3218, 95
    %v3887 = vpop.permute.xlu0 %3886
    %v3888 = vsel %vm777, %v3799, %v3801
    %v3889 = vsel %vm777, %v3801, %v3803
    %v3890 = vsel %vm777, %v3803, %v3805
    %v3891 = vsel %vm777, %v3805, %v3807
    %v3892 = vsel %vm777, %v3807, %v3809
    %v3893 = vsel %vm777, %v3809, %v3811
    %v3894 = vsel %vm777, %v3811, %v3813
    %v3895 = vsel %vm777, %v3813, %v3815
    %v3896 = vsel %vm777, %v3817, %v3819
    %v3897 = vsel %vm777, %v3819, %v3821
    %v3898 = vsel %vm777, %v3821, %v3823
    %v3899 = vsel %vm777, %v3823, %v3825
    %v3900 = vsel %vm777, %v3825, %v3827
    %v3901 = vsel %vm777, %v3827, %v3829
    %v3902 = vsel %vm777, %v3829, %v3831
    %v3903 = vsel %vm777, %v3831, %v3833
    %v3904 = vsel %vm777, %v3835, %v3837
    %v3905 = vsel %vm777, %v3837, %v3839
    %v3906 = vsel %vm777, %v3839, %v3841
    %v3907 = vsel %vm777, %v3841, %v3843
    %v3908 = vsel %vm777, %v3843, %v3845
    %v3909 = vsel %vm777, %v3845, %v3847
    %v3910 = vsel %vm777, %v3847, %v3849
    %v3911 = vsel %vm777, %v3849, %v3851
    %v3912 = vsel %vm777, %v3853, %v3855
    %v3913 = vsel %vm777, %v3855, %v3857
    %v3914 = vsel %vm777, %v3857, %v3859
    %v3915 = vsel %vm777, %v3859, %v3861
    %v3916 = vsel %vm777, %v3861, %v3863
    %v3917 = vsel %vm777, %v3863, %v3865
    %v3918 = vsel %vm777, %v3865, %v3867
    %v3919 = vsel %vm777, %v3867, %v3869
    %v3920 = vsel %vm777, %v3871, %v3873
    %v3921 = vsel %vm777, %v3873, %v3875
    %v3922 = vsel %vm777, %v3875, %v3877
    %v3923 = vsel %vm777, %v3877, %v3879
    %v3924 = vsel %vm777, %v3879, %v3881
    %v3925 = vsel %vm777, %v3881, %v3883
    %v3926 = vsel %vm777, %v3883, %v3885
    %v3927 = vsel %vm777, %v3885, %v3887
    %v3973 = vsub.f32 %v3174, %v3888
    %v3974 = vsub.f32 %v3175, %v3889
    %v3975 = vsub.f32 %v3176, %v3890
    %v3976 = vsub.f32 %v3177, %v3891
    %v3977 = vsub.f32 %v3178, %v3892
    %v3978 = vsub.f32 %v3179, %v3893
    %v3979 = vsub.f32 %v3180, %v3894
    %v3980 = vsub.f32 %v3181, %v3895
    %v3981 = vsub.f32 %v3182, %v3815
    %v3982 = vsub.f32 %v3183, %v3896
    %v3983 = vsub.f32 %v3184, %v3897
    %v3984 = vsub.f32 %v3185, %v3898
    %v3985 = vsub.f32 %v3186, %v3899
    %v3986 = vsub.f32 %v3187, %v3900
    %v3987 = vsub.f32 %v3188, %v3901
    %v3988 = vsub.f32 %v3189, %v3902
    %v3989 = vsub.f32 %v3190, %v3903
    %v3990 = vsub.f32 %v3191, %v3833
    %v3991 = vsub.f32 %v3192, %v3904
    %v3992 = vsub.f32 %v3193, %v3905
    %v3993 = vsub.f32 %v3194, %v3906
    %v3994 = vsub.f32 %v3195, %v3907
    %v3995 = vsub.f32 %v3196, %v3908
    %v3996 = vsub.f32 %v3197, %v3909
    %v3997 = vsub.f32 %v3198, %v3910
    %v3998 = vsub.f32 %v3199, %v3911
    %v3999 = vsub.f32 %v3200, %v3851
    %v4000 = vsub.f32 %v3201, %v3912
    %v4001 = vsub.f32 %v3202, %v3913
    %v4002 = vsub.f32 %v3203, %v3914
    %v4003 = vsub.f32 %v3204, %v3915
    %v4004 = vsub.f32 %v3205, %v3916
    %v4005 = vsub.f32 %v3206, %v3917
    %v4006 = vsub.f32 %v3207, %v3918
    %v4007 = vsub.f32 %v3208, %v3919
    %v4008 = vsub.f32 %v3209, %v3869
    %v4009 = vsub.f32 %v3210, %v3920
    %v4010 = vsub.f32 %v3211, %v3921
    %v4011 = vsub.f32 %v3212, %v3922
    %v4012 = vsub.f32 %v3213, %v3923
    %v4013 = vsub.f32 %v3214, %v3924
    %v4014 = vsub.f32 %v3215, %v3925
    %v4015 = vsub.f32 %v3216, %v3926
    %v4016 = vsub.f32 %v3217, %v3927
    %v4017 = vsub.f32 %v3218, %v3887
    %v4018 = vmul.f32 %v3973, %v3973
    %v4019 = vmul.f32 %v3974, %v3974
    %v4020 = vmul.f32 %v3975, %v3975
    %v4021 = vmul.f32 %v3976, %v3976
    %v4022 = vmul.f32 %v3977, %v3977
    %v4023 = vmul.f32 %v3978, %v3978
    %v4024 = vmul.f32 %v3979, %v3979
    %v4025 = vmul.f32 %v3980, %v3980
    %v4026 = vmul.f32 %v3981, %v3981
    %v4027 = vmul.f32 %v3982, %v3982
    %v4028 = vmul.f32 %v3983, %v3983
    %v4029 = vmul.f32 %v3984, %v3984
    %v4030 = vmul.f32 %v3985, %v3985
    %v4031 = vmul.f32 %v3986, %v3986
    %v4032 = vmul.f32 %v3987, %v3987
    %v4033 = vmul.f32 %v3988, %v3988
    %v4034 = vmul.f32 %v3989, %v3989
    %v4035 = vmul.f32 %v3990, %v3990
    %v4036 = vmul.f32 %v3991, %v3991
    %v4037 = vmul.f32 %v3992, %v3992
    %v4038 = vmul.f32 %v3993, %v3993
    %v4039 = vmul.f32 %v3994, %v3994
    %v4040 = vmul.f32 %v3995, %v3995
    %v4041 = vmul.f32 %v3996, %v3996
    %v4042 = vmul.f32 %v3997, %v3997
    %v4043 = vmul.f32 %v3998, %v3998
    %v4044 = vmul.f32 %v3999, %v3999
    %v4045 = vmul.f32 %v4000, %v4000
    %v4046 = vmul.f32 %v4001, %v4001
    %v4047 = vmul.f32 %v4002, %v4002
    %v4048 = vmul.f32 %v4003, %v4003
    %v4049 = vmul.f32 %v4004, %v4004
    %v4050 = vmul.f32 %v4005, %v4005
    %v4051 = vmul.f32 %v4006, %v4006
    %v4052 = vmul.f32 %v4007, %v4007
    %v4053 = vmul.f32 %v4008, %v4008
    %v4054 = vmul.f32 %v4009, %v4009
    %v4055 = vmul.f32 %v4010, %v4010
    %v4056 = vmul.f32 %v4011, %v4011
    %v4057 = vmul.f32 %v4012, %v4012
    %v4058 = vmul.f32 %v4013, %v4013
    %v4059 = vmul.f32 %v4014, %v4014
    %v4060 = vmul.f32 %v4015, %v4015
    %v4061 = vmul.f32 %v4016, %v4016
    %v4062 = vmul.f32 %v4017, %v4017
    %v4063 = vadd.f32 %v4018, %v4019
    %v4064 = vadd.f32 %v4063, %v4020
    %v4065 = vadd.f32 %v4064, %v4021
    %v4066 = vadd.f32 %v4065, %v4022
    %v4067 = vadd.f32 %v4066, %v4023
    %v4068 = vadd.f32 %v4067, %v4024
    %v4069 = vadd.f32 %v4068, %v4025
    %v4070 = vsel %vm960, %v4026, 0.0
    %v4071 = vadd.f32 %v4069, %v4070
    %v4072 = vadd.f32 %v4071, %v4027
    %v4073 = vadd.f32 %v4072, %v4028
    %v4074 = vadd.f32 %v4073, %v4029
    %v4075 = vadd.f32 %v4074, %v4030
    %v4076 = vadd.f32 %v4075, %v4031
    %v4077 = vadd.f32 %v4076, %v4032
    %v4078 = vadd.f32 %v4077, %v4033
    %v4079 = vadd.f32 %v4078, %v4034
    %v4080 = vsel %vm960, %v4035, 0.0
    %v4081 = vadd.f32 %v4079, %v4080
    %v4082 = vadd.f32 %v4081, %v4036
    %v4083 = vadd.f32 %v4082, %v4037
    %v4084 = vadd.f32 %v4083, %v4038
    %v4085 = vadd.f32 %v4084, %v4039
    %v4086 = vadd.f32 %v4085, %v4040
    %v4087 = vadd.f32 %v4086, %v4041
    %v4088 = vadd.f32 %v4087, %v4042
    %v4089 = vadd.f32 %v4088, %v4043
    %v4090 = vsel %vm960, %v4044, 0.0
    %v4091 = vadd.f32 %v4089, %v4090
    %v4092 = vadd.f32 %v4091, %v4045
    %v4093 = vadd.f32 %v4092, %v4046
    %v4094 = vadd.f32 %v4093, %v4047
    %v4095 = vadd.f32 %v4094, %v4048
    %v4096 = vadd.f32 %v4095, %v4049
    %v4097 = vadd.f32 %v4096, %v4050
    %v4098 = vadd.f32 %v4097, %v4051
    %v4099 = vadd.f32 %v4098, %v4052
    %v4100 = vsel %vm960, %v4053, 0.0
    %v4101 = vadd.f32 %v4099, %v4100
    %v4102 = vsel %vm480, %v4054, 0.0
    %v4103 = vadd.f32 %v4101, %v4102
    %v4104 = vsel %vm480, %v4055, 0.0
    %v4105 = vadd.f32 %v4103, %v4104
    %v4106 = vsel %vm480, %v4056, 0.0
    %v4107 = vadd.f32 %v4105, %v4106
    %v4108 = vsel %vm480, %v4057, 0.0
    %v4109 = vadd.f32 %v4107, %v4108
    %v4110 = vsel %vm480, %v4058, 0.0
    %v4111 = vadd.f32 %v4109, %v4110
    %v4112 = vsel %vm480, %v4059, 0.0
    %v4113 = vadd.f32 %v4111, %v4112
    %v4114 = vsel %vm480, %v4060, 0.0
    %v4115 = vadd.f32 %v4113, %v4114
    %v4116 = vsel %vm480, %v4061, 0.0
    %v4117 = vadd.f32 %v4115, %v4116
    %v4118 = vsel %vm1009, %v4062, 0.0
    %v4119 = vadd.f32 %v4117, %v4118
    %4120 = vadd.xlane.f32.xlu0 %v4119
    %v4121 = vpop.xlane.xlu0 %4120
    %v4122 = vrot.slane %v4121, 4
    %v4123 = vadd.f32 %v4121, %v4122
    %v4124 = vrot.slane %v4123, 2
    %v4125 = vadd.f32 %v4123, %v4124
    %v4126 = vrot.slane %v4125, 1
    %v4127 = vadd.f32 %v4125, %v4126
    %s4128 = vtos %v4127
    %v4129 = vsel %vm1021, %v4018, 0.0
    %v4130 = vsel %vm1021, %v4027, 0.0
    %v4131 = vadd.f32 %v4129, %v4130
    %v4132 = vsel %vm1021, %v4036, 0.0
    %v4133 = vadd.f32 %v4131, %v4132
    %v4134 = vsel %vm1021, %v4045, 0.0
    %v4135 = vadd.f32 %v4133, %v4134
    %v4136 = vsel %vm1029, %v4054, 0.0
    %v4137 = vadd.f32 %v4135, %v4136
    %4138 = vadd.xlane.f32.xlu0 %v4137
    %v4139 = vpop.xlane.xlu0 %4138
    %v4140 = vrot.slane %v4139, 4
    %v4141 = vadd.f32 %v4139, %v4140
    %v4142 = vrot.slane %v4141, 2
    %v4143 = vadd.f32 %v4141, %v4142
    %v4144 = vrot.slane %v4143, 1
    %v4145 = vadd.f32 %v4143, %v4144
    %s4146 = vtos %v4145
    %s4147 = sadd.f32 %s4128, %s4146
    %4158 = vrot.lane.b32.xlu0 %v4025, 1
    %v4159 = vpop.permute.xlu0 %4158
    %4160 = vrot.lane.b32.xlu0 %v4026, 1
    %v4161 = vpop.permute.xlu0 %4160
    %4162 = vrot.lane.b32.xlu0 %v4034, 1
    %v4163 = vpop.permute.xlu0 %4162
    %4164 = vrot.lane.b32.xlu0 %v4035, 1
    %v4165 = vpop.permute.xlu0 %4164
    %4166 = vrot.lane.b32.xlu0 %v4043, 1
    %v4167 = vpop.permute.xlu0 %4166
    %4168 = vrot.lane.b32.xlu0 %v4044, 1
    %v4169 = vpop.permute.xlu0 %4168
    %4170 = vrot.lane.b32.xlu0 %v4052, 1
    %v4171 = vpop.permute.xlu0 %4170
    %4172 = vrot.lane.b32.xlu0 %v4053, 1
    %v4173 = vpop.permute.xlu0 %4172
    %4174 = vrot.lane.b32.xlu0 %v4061, 1
    %v4175 = vpop.permute.xlu0 %4174
    %4176 = vrot.lane.b32.xlu0 %v4062, 1
    %v4177 = vpop.permute.xlu0 %4176
    %v4178 = vsel %vm1072, %v4159, %v4161
    %v4179 = vsel %vm1072, %v4163, %v4165
    %v4180 = vsel %vm1072, %v4167, %v4169
    %v4181 = vsel %vm1072, %v4171, %v4173
    %v4182 = vsel %vm1072, %v4175, %v4177
    %v4188 = vsel %vm1021, %v4178, 0.0
    %v4189 = vsel %vm1021, %v4179, 0.0
    %v4190 = vadd.f32 %v4188, %v4189
    %v4191 = vsel %vm1021, %v4180, 0.0
    %v4192 = vadd.f32 %v4190, %v4191
    %v4193 = vsel %vm1021, %v4181, 0.0
    %v4194 = vadd.f32 %v4192, %v4193
    %v4195 = vsel %vm1029, %v4182, 0.0
    %v4196 = vadd.f32 %v4194, %v4195
    %4197 = vadd.xlane.f32.xlu0 %v4196
    %v4198 = vpop.xlane.xlu0 %4197
    %v4199 = vrot.slane %v4198, 4
    %v4200 = vadd.f32 %v4198, %v4199
    %v4201 = vrot.slane %v4200, 2
    %v4202 = vadd.f32 %v4200, %v4201
    %v4203 = vrot.slane %v4202, 1
    %v4204 = vadd.f32 %v4202, %v4203
    %s4205 = vtos %v4204
    %s4206 = sadd.f32 %s4147, %s4205
    %s4207 = sadd.f32 %s3640, %s4206
    %v4208 = vmax.f32 %v3973, 0.0
    %v4209 = vmax.f32 %v3974, 0.0
    %v4210 = vmax.f32 %v3975, 0.0
    %v4211 = vmax.f32 %v3976, 0.0
    %v4212 = vmax.f32 %v3977, 0.0
    %v4213 = vmax.f32 %v3978, 0.0
    %v4214 = vmax.f32 %v3979, 0.0
    %v4215 = vmax.f32 %v3980, 0.0
    %v4216 = vmax.f32 %v3981, 0.0
    %v4217 = vmax.f32 %v3982, 0.0
    %v4218 = vmax.f32 %v3983, 0.0
    %v4219 = vmax.f32 %v3984, 0.0
    %v4220 = vmax.f32 %v3985, 0.0
    %v4221 = vmax.f32 %v3986, 0.0
    %v4222 = vmax.f32 %v3987, 0.0
    %v4223 = vmax.f32 %v3988, 0.0
    %v4224 = vmax.f32 %v3989, 0.0
    %v4225 = vmax.f32 %v3990, 0.0
    %v4226 = vmax.f32 %v3991, 0.0
    %v4227 = vmax.f32 %v3992, 0.0
    %v4228 = vmax.f32 %v3993, 0.0
    %v4229 = vmax.f32 %v3994, 0.0
    %v4230 = vmax.f32 %v3995, 0.0
    %v4231 = vmax.f32 %v3996, 0.0
    %v4232 = vmax.f32 %v3997, 0.0
    %v4233 = vmax.f32 %v3998, 0.0
    %v4234 = vmax.f32 %v3999, 0.0
    %v4235 = vmax.f32 %v4000, 0.0
    %v4236 = vmax.f32 %v4001, 0.0
    %v4237 = vmax.f32 %v4002, 0.0
    %v4238 = vmax.f32 %v4003, 0.0
    %v4239 = vmax.f32 %v4004, 0.0
    %v4240 = vmax.f32 %v4005, 0.0
    %v4241 = vmax.f32 %v4006, 0.0
    %v4242 = vmax.f32 %v4007, 0.0
    %v4243 = vmax.f32 %v4008, 0.0
    %v4244 = vmax.f32 %v4009, 0.0
    %v4245 = vmax.f32 %v4010, 0.0
    %v4246 = vmax.f32 %v4011, 0.0
    %v4247 = vmax.f32 %v4012, 0.0
    %v4248 = vmax.f32 %v4013, 0.0
    %v4249 = vmax.f32 %v4014, 0.0
    %v4250 = vmax.f32 %v4015, 0.0
    %v4251 = vmax.f32 %v4016, 0.0
    %v4252 = vmax.f32 %v4017, 0.0
    %v4253 = vadd.f32 %v4208, %v4209
    %v4254 = vadd.f32 %v4253, %v4210
    %v4255 = vadd.f32 %v4254, %v4211
    %v4256 = vadd.f32 %v4255, %v4212
    %v4257 = vadd.f32 %v4256, %v4213
    %v4258 = vadd.f32 %v4257, %v4214
    %v4259 = vadd.f32 %v4258, %v4215
    %v4260 = vsel %vm960, %v4216, 0.0
    %v4261 = vadd.f32 %v4259, %v4260
    %v4262 = vadd.f32 %v4261, %v4217
    %v4263 = vadd.f32 %v4262, %v4218
    %v4264 = vadd.f32 %v4263, %v4219
    %v4265 = vadd.f32 %v4264, %v4220
    %v4266 = vadd.f32 %v4265, %v4221
    %v4267 = vadd.f32 %v4266, %v4222
    %v4268 = vadd.f32 %v4267, %v4223
    %v4269 = vadd.f32 %v4268, %v4224
    %v4270 = vsel %vm960, %v4225, 0.0
    %v4271 = vadd.f32 %v4269, %v4270
    %v4272 = vadd.f32 %v4271, %v4226
    %v4273 = vadd.f32 %v4272, %v4227
    %v4274 = vadd.f32 %v4273, %v4228
    %v4275 = vadd.f32 %v4274, %v4229
    %v4276 = vadd.f32 %v4275, %v4230
    %v4277 = vadd.f32 %v4276, %v4231
    %v4278 = vadd.f32 %v4277, %v4232
    %v4279 = vadd.f32 %v4278, %v4233
    %v4280 = vsel %vm960, %v4234, 0.0
    %v4281 = vadd.f32 %v4279, %v4280
    %v4282 = vadd.f32 %v4281, %v4235
    %v4283 = vadd.f32 %v4282, %v4236
    %v4284 = vadd.f32 %v4283, %v4237
    %v4285 = vadd.f32 %v4284, %v4238
    %v4286 = vadd.f32 %v4285, %v4239
    %v4287 = vadd.f32 %v4286, %v4240
    %v4288 = vadd.f32 %v4287, %v4241
    %v4289 = vadd.f32 %v4288, %v4242
    %v4290 = vsel %vm960, %v4243, 0.0
    %v4291 = vadd.f32 %v4289, %v4290
    %v4292 = vsel %vm480, %v4244, 0.0
    %v4293 = vadd.f32 %v4291, %v4292
    %v4294 = vsel %vm480, %v4245, 0.0
    %v4295 = vadd.f32 %v4293, %v4294
    %v4296 = vsel %vm480, %v4246, 0.0
    %v4297 = vadd.f32 %v4295, %v4296
    %v4298 = vsel %vm480, %v4247, 0.0
    %v4299 = vadd.f32 %v4297, %v4298
    %v4300 = vsel %vm480, %v4248, 0.0
    %v4301 = vadd.f32 %v4299, %v4300
    %v4302 = vsel %vm480, %v4249, 0.0
    %v4303 = vadd.f32 %v4301, %v4302
    %v4304 = vsel %vm480, %v4250, 0.0
    %v4305 = vadd.f32 %v4303, %v4304
    %v4306 = vsel %vm480, %v4251, 0.0
    %v4307 = vadd.f32 %v4305, %v4306
    %v4308 = vsel %vm1009, %v4252, 0.0
    %v4309 = vadd.f32 %v4307, %v4308
    %4310 = vadd.xlane.f32.xlu0 %v4309
    %v4311 = vpop.xlane.xlu0 %4310
    %v4312 = vrot.slane %v4311, 4
    %v4313 = vadd.f32 %v4311, %v4312
    %v4314 = vrot.slane %v4313, 2
    %v4315 = vadd.f32 %v4313, %v4314
    %v4316 = vrot.slane %v4315, 1
    %v4317 = vadd.f32 %v4315, %v4316
    %s4318 = vtos %v4317
    %s4319 = sadd.f32 %s3797, %s4318
    %v4320 = vrot.slane %v3174, 1
    %v4321 = vrot.slane %v3183, 1
    %v4322 = vsel %vm1215, %v4320, %v4321
    %v4323 = vrot.slane %v3175, 1
    %v4324 = vrot.slane %v3184, 1
    %v4325 = vsel %vm1215, %v4323, %v4324
    %v4326 = vrot.slane %v3176, 1
    %v4327 = vrot.slane %v3185, 1
    %v4328 = vsel %vm1215, %v4326, %v4327
    %v4329 = vrot.slane %v3177, 1
    %v4330 = vrot.slane %v3186, 1
    %v4331 = vsel %vm1215, %v4329, %v4330
    %v4332 = vrot.slane %v3178, 1
    %v4333 = vrot.slane %v3187, 1
    %v4334 = vsel %vm1215, %v4332, %v4333
    %v4335 = vrot.slane %v3179, 1
    %v4336 = vrot.slane %v3188, 1
    %v4337 = vsel %vm1215, %v4335, %v4336
    %v4338 = vrot.slane %v3180, 1
    %v4339 = vrot.slane %v3189, 1
    %v4340 = vsel %vm1215, %v4338, %v4339
    %v4341 = vrot.slane %v3181, 1
    %v4342 = vrot.slane %v3190, 1
    %v4343 = vsel %vm1215, %v4341, %v4342
    %v4344 = vrot.slane %v3182, 1
    %v4345 = vrot.slane %v3191, 1
    %v4346 = vsel %vm1215, %v4344, %v4345
    %v4347 = vrot.slane %v3192, 1
    %v4348 = vsel %vm1215, %v4321, %v4347
    %v4349 = vrot.slane %v3193, 1
    %v4350 = vsel %vm1215, %v4324, %v4349
    %v4351 = vrot.slane %v3194, 1
    %v4352 = vsel %vm1215, %v4327, %v4351
    %v4353 = vrot.slane %v3195, 1
    %v4354 = vsel %vm1215, %v4330, %v4353
    %v4355 = vrot.slane %v3196, 1
    %v4356 = vsel %vm1215, %v4333, %v4355
    %v4357 = vrot.slane %v3197, 1
    %v4358 = vsel %vm1215, %v4336, %v4357
    %v4359 = vrot.slane %v3198, 1
    %v4360 = vsel %vm1215, %v4339, %v4359
    %v4361 = vrot.slane %v3199, 1
    %v4362 = vsel %vm1215, %v4342, %v4361
    %v4363 = vrot.slane %v3200, 1
    %v4364 = vsel %vm1215, %v4345, %v4363
    %v4365 = vrot.slane %v3201, 1
    %v4366 = vsel %vm1215, %v4347, %v4365
    %v4367 = vrot.slane %v3202, 1
    %v4368 = vsel %vm1215, %v4349, %v4367
    %v4369 = vrot.slane %v3203, 1
    %v4370 = vsel %vm1215, %v4351, %v4369
    %v4371 = vrot.slane %v3204, 1
    %v4372 = vsel %vm1215, %v4353, %v4371
    %v4373 = vrot.slane %v3205, 1
    %v4374 = vsel %vm1215, %v4355, %v4373
    %v4375 = vrot.slane %v3206, 1
    %v4376 = vsel %vm1215, %v4357, %v4375
    %v4377 = vrot.slane %v3207, 1
    %v4378 = vsel %vm1215, %v4359, %v4377
    %v4379 = vrot.slane %v3208, 1
    %v4380 = vsel %vm1215, %v4361, %v4379
    %v4381 = vrot.slane %v3209, 1
    %v4382 = vsel %vm1215, %v4363, %v4381
    %v4383 = vrot.slane %v3210, 1
    %v4384 = vsel %vm1215, %v4365, %v4383
    %v4385 = vrot.slane %v3211, 1
    %v4386 = vsel %vm1215, %v4367, %v4385
    %v4387 = vrot.slane %v3212, 1
    %v4388 = vsel %vm1215, %v4369, %v4387
    %v4389 = vrot.slane %v3213, 1
    %v4390 = vsel %vm1215, %v4371, %v4389
    %v4391 = vrot.slane %v3214, 1
    %v4392 = vsel %vm1215, %v4373, %v4391
    %v4393 = vrot.slane %v3215, 1
    %v4394 = vsel %vm1215, %v4375, %v4393
    %v4395 = vrot.slane %v3216, 1
    %v4396 = vsel %vm1215, %v4377, %v4395
    %v4397 = vrot.slane %v3217, 1
    %v4398 = vsel %vm1215, %v4379, %v4397
    %v4399 = vrot.slane %v3218, 1
    %v4400 = vsel %vm1215, %v4381, %v4399
    %v4437 = vsub.f32 %v3174, %v4322
    %v4438 = vsub.f32 %v3175, %v4325
    %v4439 = vsub.f32 %v3176, %v4328
    %v4440 = vsub.f32 %v3177, %v4331
    %v4441 = vsub.f32 %v3178, %v4334
    %v4442 = vsub.f32 %v3179, %v4337
    %v4443 = vsub.f32 %v3180, %v4340
    %v4444 = vsub.f32 %v3181, %v4343
    %v4445 = vsub.f32 %v3182, %v4346
    %v4446 = vsub.f32 %v3183, %v4348
    %v4447 = vsub.f32 %v3184, %v4350
    %v4448 = vsub.f32 %v3185, %v4352
    %v4449 = vsub.f32 %v3186, %v4354
    %v4450 = vsub.f32 %v3187, %v4356
    %v4451 = vsub.f32 %v3188, %v4358
    %v4452 = vsub.f32 %v3189, %v4360
    %v4453 = vsub.f32 %v3190, %v4362
    %v4454 = vsub.f32 %v3191, %v4364
    %v4455 = vsub.f32 %v3192, %v4366
    %v4456 = vsub.f32 %v3193, %v4368
    %v4457 = vsub.f32 %v3194, %v4370
    %v4458 = vsub.f32 %v3195, %v4372
    %v4459 = vsub.f32 %v3196, %v4374
    %v4460 = vsub.f32 %v3197, %v4376
    %v4461 = vsub.f32 %v3198, %v4378
    %v4462 = vsub.f32 %v3199, %v4380
    %v4463 = vsub.f32 %v3200, %v4382
    %v4464 = vsub.f32 %v3201, %v4384
    %v4465 = vsub.f32 %v3202, %v4386
    %v4466 = vsub.f32 %v3203, %v4388
    %v4467 = vsub.f32 %v3204, %v4390
    %v4468 = vsub.f32 %v3205, %v4392
    %v4469 = vsub.f32 %v3206, %v4394
    %v4470 = vsub.f32 %v3207, %v4396
    %v4471 = vsub.f32 %v3208, %v4398
    %v4472 = vsub.f32 %v3209, %v4400
    %v4473 = vmul.f32 %v4437, %v4437
    %v4474 = vmul.f32 %v4438, %v4438
    %v4475 = vmul.f32 %v4439, %v4439
    %v4476 = vmul.f32 %v4440, %v4440
    %v4477 = vmul.f32 %v4441, %v4441
    %v4478 = vmul.f32 %v4442, %v4442
    %v4479 = vmul.f32 %v4443, %v4443
    %v4480 = vmul.f32 %v4444, %v4444
    %v4481 = vmul.f32 %v4445, %v4445
    %v4482 = vmul.f32 %v4446, %v4446
    %v4483 = vmul.f32 %v4447, %v4447
    %v4484 = vmul.f32 %v4448, %v4448
    %v4485 = vmul.f32 %v4449, %v4449
    %v4486 = vmul.f32 %v4450, %v4450
    %v4487 = vmul.f32 %v4451, %v4451
    %v4488 = vmul.f32 %v4452, %v4452
    %v4489 = vmul.f32 %v4453, %v4453
    %v4490 = vmul.f32 %v4454, %v4454
    %v4491 = vmul.f32 %v4455, %v4455
    %v4492 = vmul.f32 %v4456, %v4456
    %v4493 = vmul.f32 %v4457, %v4457
    %v4494 = vmul.f32 %v4458, %v4458
    %v4495 = vmul.f32 %v4459, %v4459
    %v4496 = vmul.f32 %v4460, %v4460
    %v4497 = vmul.f32 %v4461, %v4461
    %v4498 = vmul.f32 %v4462, %v4462
    %v4499 = vmul.f32 %v4463, %v4463
    %v4500 = vmul.f32 %v4464, %v4464
    %v4501 = vmul.f32 %v4465, %v4465
    %v4502 = vmul.f32 %v4466, %v4466
    %v4503 = vmul.f32 %v4467, %v4467
    %v4504 = vmul.f32 %v4468, %v4468
    %v4505 = vmul.f32 %v4469, %v4469
    %v4506 = vmul.f32 %v4470, %v4470
    %v4507 = vmul.f32 %v4471, %v4471
    %v4508 = vmul.f32 %v4472, %v4472
    %v4509 = vadd.f32 %v4473, %v4474
    %v4510 = vadd.f32 %v4509, %v4475
    %v4511 = vadd.f32 %v4510, %v4476
    %v4512 = vadd.f32 %v4511, %v4477
    %v4513 = vadd.f32 %v4512, %v4478
    %v4514 = vadd.f32 %v4513, %v4479
    %v4515 = vadd.f32 %v4514, %v4480
    %v4516 = vsel %vm1412, %v4481, 0.0
    %v4517 = vadd.f32 %v4515, %v4516
    %v4518 = vadd.f32 %v4517, %v4482
    %v4519 = vadd.f32 %v4518, %v4483
    %v4520 = vadd.f32 %v4519, %v4484
    %v4521 = vadd.f32 %v4520, %v4485
    %v4522 = vadd.f32 %v4521, %v4486
    %v4523 = vadd.f32 %v4522, %v4487
    %v4524 = vadd.f32 %v4523, %v4488
    %v4525 = vadd.f32 %v4524, %v4489
    %v4526 = vsel %vm1412, %v4490, 0.0
    %v4527 = vadd.f32 %v4525, %v4526
    %v4528 = vadd.f32 %v4527, %v4491
    %v4529 = vadd.f32 %v4528, %v4492
    %v4530 = vadd.f32 %v4529, %v4493
    %v4531 = vadd.f32 %v4530, %v4494
    %v4532 = vadd.f32 %v4531, %v4495
    %v4533 = vadd.f32 %v4532, %v4496
    %v4534 = vadd.f32 %v4533, %v4497
    %v4535 = vadd.f32 %v4534, %v4498
    %v4536 = vsel %vm1412, %v4499, 0.0
    %v4537 = vadd.f32 %v4535, %v4536
    %v4538 = vadd.f32 %v4537, %v4500
    %v4539 = vadd.f32 %v4538, %v4501
    %v4540 = vadd.f32 %v4539, %v4502
    %v4541 = vadd.f32 %v4540, %v4503
    %v4542 = vadd.f32 %v4541, %v4504
    %v4543 = vadd.f32 %v4542, %v4505
    %v4544 = vadd.f32 %v4543, %v4506
    %v4545 = vadd.f32 %v4544, %v4507
    %v4546 = vsel %vm1412, %v4508, 0.0
    %v4547 = vadd.f32 %v4545, %v4546
    %4548 = vadd.xlane.f32.xlu0 %v4547
    %v4549 = vpop.xlane.xlu0 %4548
    %v4550 = vrot.slane %v4549, 4
    %v4551 = vadd.f32 %v4549, %v4550
    %v4552 = vrot.slane %v4551, 2
    %v4553 = vadd.f32 %v4551, %v4552
    %v4554 = vrot.slane %v4553, 1
    %v4555 = vadd.f32 %v4553, %v4554
    %s4556 = vtos %v4555
    %v4557 = vsel %vm480, %v4473, 0.0
    %v4558 = vsel %vm480, %v4474, 0.0
    %v4559 = vadd.f32 %v4557, %v4558
    %v4560 = vsel %vm480, %v4475, 0.0
    %v4561 = vadd.f32 %v4559, %v4560
    %v4562 = vsel %vm480, %v4476, 0.0
    %v4563 = vadd.f32 %v4561, %v4562
    %v4564 = vsel %vm480, %v4477, 0.0
    %v4565 = vadd.f32 %v4563, %v4564
    %v4566 = vsel %vm480, %v4478, 0.0
    %v4567 = vadd.f32 %v4565, %v4566
    %v4568 = vsel %vm480, %v4479, 0.0
    %v4569 = vadd.f32 %v4567, %v4568
    %v4570 = vsel %vm480, %v4480, 0.0
    %v4571 = vadd.f32 %v4569, %v4570
    %v4572 = vsel %vm1469, %v4481, 0.0
    %v4573 = vadd.f32 %v4571, %v4572
    %4574 = vadd.xlane.f32.xlu0 %v4573
    %v4575 = vpop.xlane.xlu0 %4574
    %v4576 = vrot.slane %v4575, 4
    %v4577 = vadd.f32 %v4575, %v4576
    %v4578 = vrot.slane %v4577, 2
    %v4579 = vadd.f32 %v4577, %v4578
    %v4580 = vrot.slane %v4579, 1
    %v4581 = vadd.f32 %v4579, %v4580
    %s4582 = vtos %v4581
    %s4583 = sadd.f32 %s4556, %s4582
    %v4593 = vrot.slane %v4500, 7
    %v4594 = vrot.slane %v4501, 7
    %v4595 = vrot.slane %v4502, 7
    %v4596 = vrot.slane %v4503, 7
    %v4597 = vrot.slane %v4504, 7
    %v4598 = vrot.slane %v4505, 7
    %v4599 = vrot.slane %v4506, 7
    %v4600 = vrot.slane %v4507, 7
    %v4601 = vrot.slane %v4508, 7
    %v4611 = vsel %vm480, %v4593, 0.0
    %v4612 = vsel %vm480, %v4594, 0.0
    %v4613 = vadd.f32 %v4611, %v4612
    %v4614 = vsel %vm480, %v4595, 0.0
    %v4615 = vadd.f32 %v4613, %v4614
    %v4616 = vsel %vm480, %v4596, 0.0
    %v4617 = vadd.f32 %v4615, %v4616
    %v4618 = vsel %vm480, %v4597, 0.0
    %v4619 = vadd.f32 %v4617, %v4618
    %v4620 = vsel %vm480, %v4598, 0.0
    %v4621 = vadd.f32 %v4619, %v4620
    %v4622 = vsel %vm480, %v4599, 0.0
    %v4623 = vadd.f32 %v4621, %v4622
    %v4624 = vsel %vm480, %v4600, 0.0
    %v4625 = vadd.f32 %v4623, %v4624
    %v4626 = vsel %vm1469, %v4601, 0.0
    %v4627 = vadd.f32 %v4625, %v4626
    %4628 = vadd.xlane.f32.xlu0 %v4627
    %v4629 = vpop.xlane.xlu0 %4628
    %v4630 = vrot.slane %v4629, 4
    %v4631 = vadd.f32 %v4629, %v4630
    %v4632 = vrot.slane %v4631, 2
    %v4633 = vadd.f32 %v4631, %v4632
    %v4634 = vrot.slane %v4633, 1
    %v4635 = vadd.f32 %v4633, %v4634
    %s4636 = vtos %v4635
    %s4637 = sadd.f32 %s4583, %s4636
    %s4638 = sadd.f32 %s4207, %s4637
    %v4639 = vmax.f32 %v4437, 0.0
    %v4640 = vmax.f32 %v4438, 0.0
    %v4641 = vmax.f32 %v4439, 0.0
    %v4642 = vmax.f32 %v4440, 0.0
    %v4643 = vmax.f32 %v4441, 0.0
    %v4644 = vmax.f32 %v4442, 0.0
    %v4645 = vmax.f32 %v4443, 0.0
    %v4646 = vmax.f32 %v4444, 0.0
    %v4647 = vmax.f32 %v4445, 0.0
    %v4648 = vmax.f32 %v4446, 0.0
    %v4649 = vmax.f32 %v4447, 0.0
    %v4650 = vmax.f32 %v4448, 0.0
    %v4651 = vmax.f32 %v4449, 0.0
    %v4652 = vmax.f32 %v4450, 0.0
    %v4653 = vmax.f32 %v4451, 0.0
    %v4654 = vmax.f32 %v4452, 0.0
    %v4655 = vmax.f32 %v4453, 0.0
    %v4656 = vmax.f32 %v4454, 0.0
    %v4657 = vmax.f32 %v4455, 0.0
    %v4658 = vmax.f32 %v4456, 0.0
    %v4659 = vmax.f32 %v4457, 0.0
    %v4660 = vmax.f32 %v4458, 0.0
    %v4661 = vmax.f32 %v4459, 0.0
    %v4662 = vmax.f32 %v4460, 0.0
    %v4663 = vmax.f32 %v4461, 0.0
    %v4664 = vmax.f32 %v4462, 0.0
    %v4665 = vmax.f32 %v4463, 0.0
    %v4666 = vmax.f32 %v4464, 0.0
    %v4667 = vmax.f32 %v4465, 0.0
    %v4668 = vmax.f32 %v4466, 0.0
    %v4669 = vmax.f32 %v4467, 0.0
    %v4670 = vmax.f32 %v4468, 0.0
    %v4671 = vmax.f32 %v4469, 0.0
    %v4672 = vmax.f32 %v4470, 0.0
    %v4673 = vmax.f32 %v4471, 0.0
    %v4674 = vmax.f32 %v4472, 0.0
    %v4675 = vadd.f32 %v4639, %v4640
    %v4676 = vadd.f32 %v4675, %v4641
    %v4677 = vadd.f32 %v4676, %v4642
    %v4678 = vadd.f32 %v4677, %v4643
    %v4679 = vadd.f32 %v4678, %v4644
    %v4680 = vadd.f32 %v4679, %v4645
    %v4681 = vadd.f32 %v4680, %v4646
    %v4682 = vsel %vm1412, %v4647, 0.0
    %v4683 = vadd.f32 %v4681, %v4682
    %v4684 = vadd.f32 %v4683, %v4648
    %v4685 = vadd.f32 %v4684, %v4649
    %v4686 = vadd.f32 %v4685, %v4650
    %v4687 = vadd.f32 %v4686, %v4651
    %v4688 = vadd.f32 %v4687, %v4652
    %v4689 = vadd.f32 %v4688, %v4653
    %v4690 = vadd.f32 %v4689, %v4654
    %v4691 = vadd.f32 %v4690, %v4655
    %v4692 = vsel %vm1412, %v4656, 0.0
    %v4693 = vadd.f32 %v4691, %v4692
    %v4694 = vadd.f32 %v4693, %v4657
    %v4695 = vadd.f32 %v4694, %v4658
    %v4696 = vadd.f32 %v4695, %v4659
    %v4697 = vadd.f32 %v4696, %v4660
    %v4698 = vadd.f32 %v4697, %v4661
    %v4699 = vadd.f32 %v4698, %v4662
    %v4700 = vadd.f32 %v4699, %v4663
    %v4701 = vadd.f32 %v4700, %v4664
    %v4702 = vsel %vm1412, %v4665, 0.0
    %v4703 = vadd.f32 %v4701, %v4702
    %v4704 = vadd.f32 %v4703, %v4666
    %v4705 = vadd.f32 %v4704, %v4667
    %v4706 = vadd.f32 %v4705, %v4668
    %v4707 = vadd.f32 %v4706, %v4669
    %v4708 = vadd.f32 %v4707, %v4670
    %v4709 = vadd.f32 %v4708, %v4671
    %v4710 = vadd.f32 %v4709, %v4672
    %v4711 = vadd.f32 %v4710, %v4673
    %v4712 = vsel %vm1412, %v4674, 0.0
    %v4713 = vadd.f32 %v4711, %v4712
    %4714 = vadd.xlane.f32.xlu0 %v4713
    %v4715 = vpop.xlane.xlu0 %4714
    %v4716 = vrot.slane %v4715, 4
    %v4717 = vadd.f32 %v4715, %v4716
    %v4718 = vrot.slane %v4717, 2
    %v4719 = vadd.f32 %v4717, %v4718
    %v4720 = vrot.slane %v4719, 1
    %v4721 = vadd.f32 %v4719, %v4720
    %s4722 = vtos %v4721
    %s4723 = sadd.f32 %s4319, %s4722
    %s4724 = smul.f32 %s4638, 9.56535e-06
    %s4725 = scalar_lea.smem [#allocation2], 0
    %4726 = sst [smem:[%s4725]] %s4724
    %s4727 = smul.f32 %s4723, 9.56535e-06
    %s4728 = scalar_lea.smem [#allocation2], 1
    %4729 = sst [smem:[%s4728]] %s4727
    // Predicated region
    $region10: #{tv_3d.1} parent=1 // pred_check
      _
    $region11: #{tv_3d.1} parent=1 // pred_check_branch
      %4731 = sbr.rel (0) target = $region13
    $region12: #{tv_3d.1} parent=1 // pred_region
      %4733 = vsyncadd [#allocation3], 0
      %s4735 = sshll.u32 %s2, 4
      %s4736 = int_to_ptr.vmem [resolvable:$true] %s4735
      %4738 = dma.smem_to_vmem [#allocation2], 16, %s4736, [#allocation3]
    $region13: #{tv_3d.1} parent=1 // pred_fallthru
      _
    // Predicated region
    $region14: #{tv_3d.1} parent=1 // pred_check
      _
    $region15: #{tv_3d.1} parent=1 // pred_check_branch
      %4740 = sbr.rel (0) target = $region17
    $region16: #{tv_3d.1} parent=1 // pred_region
      %4742 = dma.done [#allocation3], 16
    $region17: #{tv_3d.1} parent=1 // pred_fallthru
      _
    %4743 = sfence
    %4744 = vsyncpa [#allocation3], 1

</llo_original>
